<compile_context>
chip_gen: v7x
topology: tpu7x:2x2x1
jax: 0.10.0
libtpu: 0.0.40
codegen_flags: <defaults>
</compile_context>

<pallas_src>
import functools

import jax
import jax.numpy as jnp
import numpy as np
from jax.experimental import pallas as pl
from jax.experimental.pallas import tpu as pltpu


# ----------------------------------------------------------------------------
# Pallas kernel
# ----------------------------------------------------------------------------
def _refinement_kernel(x_top_ref, x_low_ref, a_ref, w0_ref, rbw_ref,
                       b_ref, bns_ref, bnb_ref, out_ref, pad_ref,
                       *, H, W, Cin, Cout):
    """Fused RefinementModule forward for one batch element.

    Per-block shapes (batch dim squeezed):
      x_top_ref : (Cout, Ht*Wt)    low-res top feature map (flattened spatial)
      x_low_ref : (Cin,  H*W)      lateral feature map (flattened spatial)
      a_ref     : (Ht*Wt, H*W)     bilinear interpolation matrix = kron(A_h, A_w).T
      w0_ref    : (9,  Cout, Cin)  first conv, one (Cout, Cin) matrix per 3x3 tap
      rbw_ref   : (36, Cout, Cout) 4 residual-block convs x 9 taps
      b_ref     : (5,  Cout, 1)    biases of the 5 convs
      bns_ref   : (4,  Cout, 1)    folded BN scales (RB1.a, RB1.b, RB2.a, RB2.b)
      bnb_ref   : (4,  Cout, 1)    folded BN shifts
      out_ref   : (Cout, H*W)
      pad_ref   : VMEM scratch (max(Cin,Cout), H*W + 2*(W+1)) zero-padded row buffer
    """
    f32 = jnp.float32
    HW = H * W
    PADW = W + 1  # border wide enough for any +-(W+1) flat shift of a 3x3 tap

    # Zero the padded scratch; its borders provide the conv's zero padding.
    pad_ref[...] = jnp.zeros_like(pad_ref)

    # Lane masks for taps whose dx=+-1 shift bleeds across a row boundary of the
    # flattened H*W axis.
    w_idx = jax.lax.broadcasted_iota(jnp.int32, (1, HW), 1) % W
    w_ok_left = w_idx >= 1        # valid lanes for dx = -1
    w_ok_right = w_idx <= W - 2   # valid lanes for dx = +1

    def conv3x3(x, tap_w, bias, ci):
        """3x3 conv (padding=1): x (ci, H*W) f32 -> (Cout, H*W) f32."""
        pad_ref[:ci, PADW:PADW + HW] = x
        acc = jnp.zeros((Cout, HW), f32)
        for ky in range(3):
            for kx in range(3):
                dh, dw = ky - 1, kx - 1
                off = PADW + dh * W + dw
                xs = pad_ref[:ci, off:off + HW]          # x shifted by (dh, dw)
                if dw == -1:
                    xs = jnp.where(w_ok_left, xs, 0.0)
                elif dw == 1:
                    xs = jnp.where(w_ok_right, xs, 0.0)
                acc = acc + jnp.dot(tap_w(ky * 3 + kx), xs,
                                    preferred_element_type=f32)
        return acc + bias

    def residual_block(x, j):
        """ResidualBlock j (0 -> RB1, 1 -> RB2): x + conv(bn(relu(conv(bn(relu(x))))))."""
        t = jnp.maximum(x, 0.0)
        t = t * bns_ref[2 * j] + bnb_ref[2 * j]
        t = conv3x3(t, lambda k: rbw_ref[(2 * j) * 9 + k], b_ref[1 + 2 * j], Cout)
        t = jnp.maximum(t, 0.0)
        t = t * bns_ref[2 * j + 1] + bnb_ref[2 * j + 1]
        t = conv3x3(t, lambda k: rbw_ref[(2 * j + 1) * 9 + k], b_ref[2 + 2 * j], Cout)
        return x + t

    # Bilinear upsample of x_top: one MXU matmul against the precomputed matrix.
    x_top_up = jnp.dot(x_top_ref[...].astype(f32), a_ref[...],
                       preferred_element_type=f32)        # (Cout, H*W)

    y = conv3x3(x_low_ref[...].astype(f32), lambda k: w0_ref[k], b_ref[0], Cin)
    y = residual_block(y, 0)          # RB1
    y = x_top_up + y
    y = residual_block(y, 1)          # RB2
    out_ref[...] = y.astype(out_ref.dtype)


# ----------------------------------------------------------------------------
# Wrapper
# ----------------------------------------------------------------------------
def _bilinear_matrix(out_size, in_size):
    """1-D interp matrix matching F.interpolate(mode='bilinear', align_corners=False)."""
    a = np.zeros((out_size, in_size), np.float32)
    if in_size == 1:
        a[:, 0] = 1.0
        return a
    scale = in_size / out_size
    for i in range(out_size):
        src = max((i + 0.5) * scale - 0.5, 0.0)
        i0 = min(int(np.floor(src)), in_size - 1)
        i1 = min(i0 + 1, in_size - 1)
        frac = src - i0
        a[i, i0] += 1.0 - frac
        a[i, i1] += frac
    return a


def _pack_conv_w(w):
    """(Cout, Cin, 3, 3) -> (9, Cout, Cin): one matrix per 3x3 tap, row t = ky*3+kx."""
    co, ci = w.shape[0], w.shape[1]
    return jnp.transpose(w, (2, 3, 0, 1)).reshape(9, co, ci)


def refinement_module_forward(x_top, x_low, params):
    """Pallas forward of RefinementModule: RB2(bilinear(x_top) + RB1(conv(x_low)))."""
    N, Cin, H, W = x_low.shape
    Nt, Ct, Ht, Wt = x_top.shape
    Cout = params["conv0_w"].shape[0]
    assert Nt == N and Ct == Cout, "x_top must carry out_dim channels"
    HW, HtWt = H * W, Ht * Wt
    PADW = W + 1

    # Separable bilinear interpolation (align_corners=False) as one Kronecker matrix.
    a_h = _bilinear_matrix(H, Ht)
    a_w = _bilinear_matrix(W, Wt)
    a_kron_t = jnp.asarray(np.kron(a_h, a_w).T)           # (Ht*Wt, H*W) f32

    # Pack parameters into a few small, kernel-friendly arrays.
    w0 = _pack_conv_w(params["conv0_w"])                  # (9, Cout, Cin)
    rbw = jnp.concatenate(
        [_pack_conv_w(params["rb1_conv_a"][0]),
         _pack_conv_w(params["rb1_conv_b"][0]),
         _pack_conv_w(params["rb2_conv_a"][0]),
         _pack_conv_w(params["rb2_conv_b"][0])], axis=0)  # (36, Cout, Cout)
    b_all = jnp.stack(
        [params["conv0_b"], params["rb1_conv_a"][1], params["rb1_conv_b"][1],
         params["rb2_conv_a"][1], params["rb2_conv_b"][1]], axis=0)[:, :, None]
    bns = jnp.stack(
        [params["rb1_bn_a"][0], params["rb1_bn_b"][0],
         params["rb2_bn_a"][0], params["rb2_bn_b"][0]], axis=0)[:, :, None]
    bnb = jnp.stack(
        [params["rb1_bn_a"][1], params["rb1_bn_b"][1],
         params["rb2_bn_a"][1], params["rb2_bn_b"][1]], axis=0)[:, :, None]

    # Lane-dense flat views of the NCHW inputs (pure reshape, no transpose, no extra
    # HBM traffic).
    x_top_f = x_top.reshape(N, Ct, HtWt).astype(jnp.float32)
    x_low_f = x_low.reshape(N, Cin, HW).astype(jnp.float32)

    kernel = functools.partial(_refinement_kernel, H=H, W=W, Cin=Cin, Cout=Cout)

    out_flat = pl.pallas_call(
        kernel,
        out_shape=jax.ShapeDtypeStruct((N, Cout, HW), jnp.float32),
        grid_spec=pltpu.PrefetchScalarGridSpec(
            num_scalar_prefetch=0,
            grid=(N,),
            in_specs=[
                pl.BlockSpec((None, Ct, HtWt), lambda n: (n, 0, 0)),
                pl.BlockSpec((None, Cin, HW), lambda n: (n, 0, 0)),
                pl.BlockSpec((HtWt, HW), lambda n: (0, 0)),
                pl.BlockSpec((9, Cout, Cin), lambda n: (0, 0, 0)),
                pl.BlockSpec((36, Cout, Cout), lambda n: (0, 0, 0)),
                pl.BlockSpec((5, Cout, 1), lambda n: (0, 0, 0)),
                pl.BlockSpec((4, Cout, 1), lambda n: (0, 0, 0)),
                pl.BlockSpec((4, Cout, 1), lambda n: (0, 0, 0)),
            ],
            out_specs=pl.BlockSpec((None, Cout, HW), lambda n: (n, 0, 0)),
            scratch_shapes=[
                pltpu.VMEM((max(Cin, Cout), HW + 2 * PADW), jnp.float32),
            ],
        ),
        compiler_params=pltpu.CompilerParams(
            # Batch blocks are fully independent -> parallel (lets v7x use both TCs).
            dimension_semantics=("parallel",),
        ),
    )(x_top_f, x_low_f, a_kron_t, w0, rbw, b_all, bns, bnb)

    return out_flat.reshape(N, Cout, H, W)


# ----------------------------------------------------------------------------
# Pure-JAX reference and parameter init
# ----------------------------------------------------------------------------
def refinement_reference(x_top, x_low, params):
    """Pure-JAX (XLA) reference of the PyTorch RefinementModule forward."""
    hi = jax.lax.Precision.HIGHEST
    _, _, H, W = x_low.shape
    _, _, Ht, Wt = x_top.shape
    a_h = jnp.asarray(_bilinear_matrix(H, Ht))
    a_w = jnp.asarray(_bilinear_matrix(W, Wt))

    def conv3x3(x, wb):
        w, b = wb
        y = jax.lax.conv_general_dilated(
            x, w, window_strides=(1, 1), padding=((1, 1), (1, 1)),
            dimension_numbers=("NCHW", "OIHW", "NCHW"), precision=hi)
        return y + b[None, :, None, None]

    def bn(x, sc_sh):
        sc, sh = sc_sh
        return x * sc[None, :, None, None] + sh[None, :, None, None]

    def residual_block(x, tag):
        t = jax.nn.relu(x)
        t = bn(t, params[f"{tag}_bn_a"])
        t = conv3x3(t, params[f"{tag}_conv_a"])
        t = jax.nn.relu(t)
        t = bn(t, params[f"{tag}_bn_b"])
        t = conv3x3(t, params[f"{tag}_conv_b"])
        return x + t

    up = jnp.einsum("ip,ncpq,jq->ncij", a_h, x_top, a_w, precision=hi)
    y = conv3x3(x_low, (params["conv0_w"], params["conv0_b"]))
    y = residual_block(y, "rb1")
    y = up + y
    y = residual_block(y, "rb2")
    return y


def _init_params(key, in_dim, out_dim):
    ks = iter(jax.random.split(key, 32))

    def conv(ci, co):
        w = jax.random.normal(next(ks), (co, ci, 3, 3), jnp.float32) / (3.0 * float(np.sqrt(ci)))
        b = 0.1 * jax.random.normal(next(ks), (co,), jnp.float32)
        return w, b

    def bn(c):
        # InPlaceABNSync(activation='none'), inference form, folded to scale/shift.
        gamma = jax.random.uniform(next(ks), (c,), jnp.float32, 0.5, 1.5)
        beta = 0.1 * jax.random.normal(next(ks), (c,), jnp.float32)
        mean = 0.1 * jax.random.normal(next(ks), (c,), jnp.float32)
        var = jax.random.uniform(next(ks), (c,), jnp.float32, 0.5, 1.5)
        scale = gamma * jax.lax.rsqrt(var + 1e-5)
        return scale, beta - mean * scale

    params = {}
    params["conv0_w"], params["conv0_b"] = conv(in_dim, out_dim)
    for tag in ("rb1", "rb2"):
        params[f"{tag}_bn_a"] = bn(out_dim)
        params[f"{tag}_conv_a"] = conv(out_dim, out_dim)
        params[f"{tag}_bn_b"] = bn(out_dim)
        params[f"{tag}_conv_b"] = conv(out_dim, out_dim)
    return params


# ----------------------------------------------------------------------------
# Demo / self-check
# ----------------------------------------------------------------------------
if __name__ == "__main__":
    key = jax.random.PRNGKey(0)
    k_top, k_low, k_par = jax.random.split(key, 3)

    N, in_dim, out_dim = 2, 4, 8       # small out_dim for the demo (module default is 256)
    H, W = 16, 16                      # x_low spatial size
    Ht, Wt = 8, 8                      # x_top spatial size (bilinearly upsampled to HxW)

    x_low = jax.random.normal(k_low, (N, in_dim, H, W), jnp.float32)
    x_top = jax.random.normal(k_top, (N, out_dim, Ht, Wt), jnp.float32)
    params = _init_params(k_par, in_dim, out_dim)

    out = jax.jit(refinement_module_forward)(x_top, x_low, params)
    out = jax.block_until_ready(out)

    ref = refinement_reference(x_top, x_low, params)
    max_err = float(jnp.max(jnp.abs(out - ref)))
    assert out.shape == ref.shape, (out.shape, ref.shape)
    assert jnp.allclose(out, ref, rtol=2e-3, atol=2e-3), f"max abs err = {max_err}"

    print("KERNEL_OK")
</pallas_src>

<mosaic_0001>
module attributes {stable_mosaic.version = 11 : i64} {
  func.func @_refinement_kernel(%arg0: i32, %arg1: memref<1x8x64xf32, #tpu.memory_space<vmem>>, %arg2: memref<1x4x256xf32, #tpu.memory_space<vmem>>, %arg3: memref<64x256xf32, #tpu.memory_space<vmem>>, %arg4: memref<9x8x4xf32, #tpu.memory_space<vmem>>, %arg5: memref<36x8x8xf32, #tpu.memory_space<vmem>>, %arg6: memref<5x8x1xf32, #tpu.memory_space<vmem>>, %arg7: memref<4x8x1xf32, #tpu.memory_space<vmem>>, %arg8: memref<4x8x1xf32, #tpu.memory_space<vmem>>, %arg9: memref<1x8x256xf32, #tpu.memory_space<vmem>>, %arg10: memref<8x290xf32, #tpu.memory_space<vmem>>) attributes {dimension_semantics = [#tpu.dimension_semantics<parallel>], iteration_bounds = array<i64: 2>, scalar_prefetch = 0 : i64, scratch_operands = 1 : i64, tpu.core_type = #tpu.core_type<tc>, window_params = [{transform_indices = @transform_0, window_bounds = array<i64: 1, 8, 64>}, {transform_indices = @transform_1, window_bounds = array<i64: 1, 4, 256>}, {pipeline_mode = #tpu.pipeline_mode<synchronous>, transform_indices = @transform_2, window_bounds = array<i64: 64, 256>}, {pipeline_mode = #tpu.pipeline_mode<synchronous>, transform_indices = @transform_3, window_bounds = array<i64: 9, 8, 4>}, {pipeline_mode = #tpu.pipeline_mode<synchronous>, transform_indices = @transform_4, window_bounds = array<i64: 36, 8, 8>}, {pipeline_mode = #tpu.pipeline_mode<synchronous>, transform_indices = @transform_5, window_bounds = array<i64: 5, 8, 1>}, {pipeline_mode = #tpu.pipeline_mode<synchronous>, transform_indices = @transform_6, window_bounds = array<i64: 4, 8, 1>}, {pipeline_mode = #tpu.pipeline_mode<synchronous>, transform_indices = @transform_7, window_bounds = array<i64: 4, 8, 1>}, {transform_indices = @transform_8, window_bounds = array<i64: 1, 8, 256>}]} {
    %cst = arith.constant 0.000000e+00 : f32
    %0 = vector.broadcast %cst : f32 to vector<8x290xf32>
    %c0 = arith.constant 0 : index
    %c0_0 = arith.constant 0 : index
    %1 = vector.load %arg10[%c0, %c0_0] : memref<8x290xf32, #tpu.memory_space<vmem>>, vector<8x290xf32>
    tpu.vector_store %arg10[%c0, %c0_0], %0 {strides = array<i32>} : memref<8x290xf32, #tpu.memory_space<vmem>>, vector<8x290xf32>,
    %2 = tpu.iota {dimensions = array<i32: 1>} : vector<1x256xi32>
    %c16_i32 = arith.constant 16 : i32
    %c0_i32 = arith.constant 0 : i32
    %3 = arith.cmpi eq, %c16_i32, %c0_i32 : i32
    %c1_i32 = arith.constant 1 : i32
    %4 = arith.select %3, %c1_i32, %c16_i32 : i32
    %5 = vector.broadcast %4 : i32 to vector<1x256xi32>
    %6 = arith.remsi %2, %5 : vector<1x256xi32>
    %c0_i32_1 = arith.constant 0 : i32
    %7 = vector.broadcast %c0_i32_1 : i32 to vector<1x256xi32>
    %8 = arith.cmpi ne, %6, %7 : vector<1x256xi32>
    %c0_i32_2 = arith.constant 0 : i32
    %9 = vector.broadcast %c0_i32_2 : i32 to vector<1x256xi32>
    %10 = arith.cmpi slt, %6, %9 : vector<1x256xi32>
    %c0_i32_3 = arith.constant 0 : i32
    %11 = arith.cmpi slt, %4, %c0_i32_3 : i32
    %12 = vector.broadcast %11 : i1 to vector<1x256xi1>
    %13 = vector.broadcast %12 : vector<1x256xi1> to vector<1x256xi1>
    %14 = arith.xori %10, %13 : vector<1x256xi1>
    %15 = arith.andi %14, %8 : vector<1x256xi1>
    %16 = vector.broadcast %4 : i32 to vector<1x256xi32>
    %17 = arith.addi %6, %16 : vector<1x256xi32>
    %18 = arith.select %15, %17, %6 : vector<1x256xi1>, vector<1x256xi32>
    %c1_i32_4 = arith.constant 1 : i32
    %19 = vector.broadcast %c1_i32_4 : i32 to vector<1x256xi32>
    %20 = arith.cmpi sge, %18, %19 : vector<1x256xi32>
    %c14_i32 = arith.constant 14 : i32
    %21 = vector.broadcast %c14_i32 : i32 to vector<1x256xi32>
    %22 = arith.cmpi sle, %18, %21 : vector<1x256xi32>
    %c0_5 = arith.constant 0 : index
    %c0_6 = arith.constant 0 : index
    %c0_7 = arith.constant 0 : index
    %23 = vector.load %arg1[%c0_5, %c0_6, %c0_7] : memref<1x8x64xf32, #tpu.memory_space<vmem>>, vector<1x8x64xf32>
    %24 = vector.shape_cast %23 : vector<1x8x64xf32> to vector<8x64xf32>
    %c0_8 = arith.constant 0 : index
    %c0_9 = arith.constant 0 : index
    %25 = vector.load %arg3[%c0_8, %c0_9] : memref<64x256xf32, #tpu.memory_space<vmem>>, vector<64x256xf32>
    %cst_10 = arith.constant dense<0.000000e+00> : vector<8x256xf32>
    %26 = tpu.matmul %24, %25, %cst_10 {dimension_numbers = #tpu.dot_dimension_numbers<[1], [0], [0], [1], [0, 0, 1, 1], [], []>} : vector<8x64xf32>, vector<64x256xf32>, vector<8x256xf32> -> vector<8x256xf32>
    %c0_11 = arith.constant 0 : index
    %c0_12 = arith.constant 0 : index
    %c0_13 = arith.constant 0 : index
    %27 = vector.load %arg2[%c0_11, %c0_12, %c0_13] : memref<1x4x256xf32, #tpu.memory_space<vmem>>, vector<1x4x256xf32>
    %28 = vector.shape_cast %27 : vector<1x4x256xf32> to vector<4x256xf32>
    %c0_14 = arith.constant 0 : index
    %c0_15 = arith.constant 0 : index
    %c0_16 = arith.constant 0 : index
    %29 = vector.load %arg6[%c0_14, %c0_15, %c0_16] : memref<5x8x1xf32, #tpu.memory_space<vmem>>, vector<1x8x1xf32>
    %30 = vector.shape_cast %29 : vector<1x8x1xf32> to vector<8x1xf32>
    %c0_17 = arith.constant 0 : index
    %c17 = arith.constant 17 : index
    %31 = vector.load %arg10[%c0_17, %c17] : memref<8x290xf32, #tpu.memory_space<vmem>>, vector<4x256xf32>
    tpu.vector_store %arg10[%c0_17, %c17], %28 {strides = array<i32>} : memref<8x290xf32, #tpu.memory_space<vmem>>, vector<4x256xf32>,
    %cst_18 = arith.constant 0.000000e+00 : f32
    %32 = vector.broadcast %cst_18 : f32 to vector<8x256xf32>
    %c0_19 = arith.constant 0 : index
    %c0_20 = arith.constant 0 : index
    %33 = vector.load %arg10[%c0_19, %c0_20] : memref<8x290xf32, #tpu.memory_space<vmem>>, vector<4x256xf32>
    %cst_21 = arith.constant 0.000000e+00 : f32
    %34 = vector.shape_cast %20 : vector<1x256xi1> to vector<1x256xi1>
    %35 = vector.broadcast %34 : vector<1x256xi1> to vector<4x256xi1>
    %36 = vector.broadcast %cst_21 : f32 to vector<4x256xf32>
    %37 = arith.select %35, %33, %36 : vector<4x256xi1>, vector<4x256xf32>
    %c0_22 = arith.constant 0 : index
    %c0_23 = arith.constant 0 : index
    %c0_24 = arith.constant 0 : index
    %38 = vector.load %arg4[%c0_22, %c0_23, %c0_24] : memref<9x8x4xf32, #tpu.memory_space<vmem>>, vector<1x8x4xf32>
    %39 = vector.shape_cast %38 : vector<1x8x4xf32> to vector<8x4xf32>
    %cst_25 = arith.constant dense<0.000000e+00> : vector<8x256xf32>
    %40 = tpu.matmul %39, %37, %cst_25 {dimension_numbers = #tpu.dot_dimension_numbers<[1], [0], [0], [1], [0, 0, 1, 1], [], []>} : vector<8x4xf32>, vector<4x256xf32>, vector<8x256xf32> -> vector<8x256xf32>
    %41 = arith.addf %32, %40 : vector<8x256xf32>
    %c0_26 = arith.constant 0 : index
    %c1 = arith.constant 1 : index
    %42 = vector.load %arg10[%c0_26, %c1] : memref<8x290xf32, #tpu.memory_space<vmem>>, vector<4x256xf32>
    %c1_27 = arith.constant 1 : index
    %c0_28 = arith.constant 0 : index
    %c0_29 = arith.constant 0 : index
    %43 = vector.load %arg4[%c1_27, %c0_28, %c0_29] : memref<9x8x4xf32, #tpu.memory_space<vmem>>, vector<1x8x4xf32>
    %44 = vector.shape_cast %43 : vector<1x8x4xf32> to vector<8x4xf32>
    %cst_30 = arith.constant dense<0.000000e+00> : vector<8x256xf32>
    %45 = tpu.matmul %44, %42, %cst_30 {dimension_numbers = #tpu.dot_dimension_numbers<[1], [0], [0], [1], [0, 0, 1, 1], [], []>} : vector<8x4xf32>, vector<4x256xf32>, vector<8x256xf32> -> vector<8x256xf32>
    %46 = arith.addf %41, %45 : vector<8x256xf32>
    %c0_31 = arith.constant 0 : index
    %c2 = arith.constant 2 : index
    %47 = vector.load %arg10[%c0_31, %c2] : memref<8x290xf32, #tpu.memory_space<vmem>>, vector<4x256xf32>
    %cst_32 = arith.constant 0.000000e+00 : f32
    %48 = vector.shape_cast %22 : vector<1x256xi1> to vector<1x256xi1>
    %49 = vector.broadcast %48 : vector<1x256xi1> to vector<4x256xi1>
    %50 = vector.broadcast %cst_32 : f32 to vector<4x256xf32>
    %51 = arith.select %49, %47, %50 : vector<4x256xi1>, vector<4x256xf32>
    %c2_33 = arith.constant 2 : index
    %c0_34 = arith.constant 0 : index
    %c0_35 = arith.constant 0 : index
    %52 = vector.load %arg4[%c2_33, %c0_34, %c0_35] : memref<9x8x4xf32, #tpu.memory_space<vmem>>, vector<1x8x4xf32>
    %53 = vector.shape_cast %52 : vector<1x8x4xf32> to vector<8x4xf32>
    %cst_36 = arith.constant dense<0.000000e+00> : vector<8x256xf32>
    %54 = tpu.matmul %53, %51, %cst_36 {dimension_numbers = #tpu.dot_dimension_numbers<[1], [0], [0], [1], [0, 0, 1, 1], [], []>} : vector<8x4xf32>, vector<4x256xf32>, vector<8x256xf32> -> vector<8x256xf32>
    %55 = arith.addf %46, %54 : vector<8x256xf32>
    %c0_37 = arith.constant 0 : index
    %c16 = arith.constant 16 : index
    %56 = vector.load %arg10[%c0_37, %c16] : memref<8x290xf32, #tpu.memory_space<vmem>>, vector<4x256xf32>
    %cst_38 = arith.constant 0.000000e+00 : f32
    %57 = vector.shape_cast %20 : vector<1x256xi1> to vector<1x256xi1>
    %58 = vector.broadcast %57 : vector<1x256xi1> to vector<4x256xi1>
    %59 = vector.broadcast %cst_38 : f32 to vector<4x256xf32>
    %60 = arith.select %58, %56, %59 : vector<4x256xi1>, vector<4x256xf32>
    %c3 = arith.constant 3 : index
    %c0_39 = arith.constant 0 : index
    %c0_40 = arith.constant 0 : index
    %61 = vector.load %arg4[%c3, %c0_39, %c0_40] : memref<9x8x4xf32, #tpu.memory_space<vmem>>, vector<1x8x4xf32>
    %62 = vector.shape_cast %61 : vector<1x8x4xf32> to vector<8x4xf32>
    %cst_41 = arith.constant dense<0.000000e+00> : vector<8x256xf32>
    %63 = tpu.matmul %62, %60, %cst_41 {dimension_numbers = #tpu.dot_dimension_numbers<[1], [0], [0], [1], [0, 0, 1, 1], [], []>} : vector<8x4xf32>, vector<4x256xf32>, vector<8x256xf32> -> vector<8x256xf32>
    %64 = arith.addf %55, %63 : vector<8x256xf32>
    %c0_42 = arith.constant 0 : index
    %c17_43 = arith.constant 17 : index
    %65 = vector.load %arg10[%c0_42, %c17_43] : memref<8x290xf32, #tpu.memory_space<vmem>>, vector<4x256xf32>
    %c4 = arith.constant 4 : index
    %c0_44 = arith.constant 0 : index
    %c0_45 = arith.constant 0 : index
    %66 = vector.load %arg4[%c4, %c0_44, %c0_45] : memref<9x8x4xf32, #tpu.memory_space<vmem>>, vector<1x8x4xf32>
    %67 = vector.shape_cast %66 : vector<1x8x4xf32> to vector<8x4xf32>
    %cst_46 = arith.constant dense<0.000000e+00> : vector<8x256xf32>
    %68 = tpu.matmul %67, %65, %cst_46 {dimension_numbers = #tpu.dot_dimension_numbers<[1], [0], [0], [1], [0, 0, 1, 1], [], []>} : vector<8x4xf32>, vector<4x256xf32>, vector<8x256xf32> -> vector<8x256xf32>
    %69 = arith.addf %64, %68 : vector<8x256xf32>
    %c0_47 = arith.constant 0 : index
    %c18 = arith.constant 18 : index
    %70 = vector.load %arg10[%c0_47, %c18] : memref<8x290xf32, #tpu.memory_space<vmem>>, vector<4x256xf32>
    %cst_48 = arith.constant 0.000000e+00 : f32
    %71 = vector.shape_cast %22 : vector<1x256xi1> to vector<1x256xi1>
    %72 = vector.broadcast %71 : vector<1x256xi1> to vector<4x256xi1>
    %73 = vector.broadcast %cst_48 : f32 to vector<4x256xf32>
    %74 = arith.select %72, %70, %73 : vector<4x256xi1>, vector<4x256xf32>
    %c5 = arith.constant 5 : index
    %c0_49 = arith.constant 0 : index
    %c0_50 = arith.constant 0 : index
    %75 = vector.load %arg4[%c5, %c0_49, %c0_50] : memref<9x8x4xf32, #tpu.memory_space<vmem>>, vector<1x8x4xf32>
    %76 = vector.shape_cast %75 : vector<1x8x4xf32> to vector<8x4xf32>
    %cst_51 = arith.constant dense<0.000000e+00> : vector<8x256xf32>
    %77 = tpu.matmul %76, %74, %cst_51 {dimension_numbers = #tpu.dot_dimension_numbers<[1], [0], [0], [1], [0, 0, 1, 1], [], []>} : vector<8x4xf32>, vector<4x256xf32>, vector<8x256xf32> -> vector<8x256xf32>
    %78 = arith.addf %69, %77 : vector<8x256xf32>
    %c0_52 = arith.constant 0 : index
    %c32 = arith.constant 32 : index
    %79 = vector.load %arg10[%c0_52, %c32] : memref<8x290xf32, #tpu.memory_space<vmem>>, vector<4x256xf32>
    %cst_53 = arith.constant 0.000000e+00 : f32
    %80 = vector.shape_cast %20 : vector<1x256xi1> to vector<1x256xi1>
    %81 = vector.broadcast %80 : vector<1x256xi1> to vector<4x256xi1>
    %82 = vector.broadcast %cst_53 : f32 to vector<4x256xf32>
    %83 = arith.select %81, %79, %82 : vector<4x256xi1>, vector<4x256xf32>
    %c6 = arith.constant 6 : index
    %c0_54 = arith.constant 0 : index
    %c0_55 = arith.constant 0 : index
    %84 = vector.load %arg4[%c6, %c0_54, %c0_55] : memref<9x8x4xf32, #tpu.memory_space<vmem>>, vector<1x8x4xf32>
    %85 = vector.shape_cast %84 : vector<1x8x4xf32> to vector<8x4xf32>
    %cst_56 = arith.constant dense<0.000000e+00> : vector<8x256xf32>
    %86 = tpu.matmul %85, %83, %cst_56 {dimension_numbers = #tpu.dot_dimension_numbers<[1], [0], [0], [1], [0, 0, 1, 1], [], []>} : vector<8x4xf32>, vector<4x256xf32>, vector<8x256xf32> -> vector<8x256xf32>
    %87 = arith.addf %78, %86 : vector<8x256xf32>
    %c0_57 = arith.constant 0 : index
    %c33 = arith.constant 33 : index
    %88 = vector.load %arg10[%c0_57, %c33] : memref<8x290xf32, #tpu.memory_space<vmem>>, vector<4x256xf32>
    %c7 = arith.constant 7 : index
    %c0_58 = arith.constant 0 : index
    %c0_59 = arith.constant 0 : index
    %89 = vector.load %arg4[%c7, %c0_58, %c0_59] : memref<9x8x4xf32, #tpu.memory_space<vmem>>, vector<1x8x4xf32>
    %90 = vector.shape_cast %89 : vector<1x8x4xf32> to vector<8x4xf32>
    %cst_60 = arith.constant dense<0.000000e+00> : vector<8x256xf32>
    %91 = tpu.matmul %90, %88, %cst_60 {dimension_numbers = #tpu.dot_dimension_numbers<[1], [0], [0], [1], [0, 0, 1, 1], [], []>} : vector<8x4xf32>, vector<4x256xf32>, vector<8x256xf32> -> vector<8x256xf32>
    %92 = arith.addf %87, %91 : vector<8x256xf32>
    %c0_61 = arith.constant 0 : index
    %c34 = arith.constant 34 : index
    %93 = vector.load %arg10[%c0_61, %c34] : memref<8x290xf32, #tpu.memory_space<vmem>>, vector<4x256xf32>
    %cst_62 = arith.constant 0.000000e+00 : f32
    %94 = vector.shape_cast %22 : vector<1x256xi1> to vector<1x256xi1>
    %95 = vector.broadcast %94 : vector<1x256xi1> to vector<4x256xi1>
    %96 = vector.broadcast %cst_62 : f32 to vector<4x256xf32>
    %97 = arith.select %95, %93, %96 : vector<4x256xi1>, vector<4x256xf32>
    %c8 = arith.constant 8 : index
    %c0_63 = arith.constant 0 : index
    %c0_64 = arith.constant 0 : index
    %98 = vector.load %arg4[%c8, %c0_63, %c0_64] : memref<9x8x4xf32, #tpu.memory_space<vmem>>, vector<1x8x4xf32>
    %99 = vector.shape_cast %98 : vector<1x8x4xf32> to vector<8x4xf32>
    %cst_65 = arith.constant dense<0.000000e+00> : vector<8x256xf32>
    %100 = tpu.matmul %99, %97, %cst_65 {dimension_numbers = #tpu.dot_dimension_numbers<[1], [0], [0], [1], [0, 0, 1, 1], [], []>} : vector<8x4xf32>, vector<4x256xf32>, vector<8x256xf32> -> vector<8x256xf32>
    %101 = arith.addf %92, %100 : vector<8x256xf32>
    %102 = vector.broadcast %30 : vector<8x1xf32> to vector<8x256xf32>
    %103 = arith.addf %101, %102 : vector<8x256xf32>
    %cst_66 = arith.constant 0.000000e+00 : f32
    %104 = vector.broadcast %cst_66 : f32 to vector<8x256xf32>
    %105 = arith.maximumf %103, %104 : vector<8x256xf32>
    %c0_67 = arith.constant 0 : index
    %c0_68 = arith.constant 0 : index
    %c0_69 = arith.constant 0 : index
    %106 = vector.load %arg7[%c0_67, %c0_68, %c0_69] : memref<4x8x1xf32, #tpu.memory_space<vmem>>, vector<1x8x1xf32>
    %107 = vector.shape_cast %106 : vector<1x8x1xf32> to vector<8x1xf32>
    %108 = vector.broadcast %107 : vector<8x1xf32> to vector<8x256xf32>
    %109 = arith.mulf %105, %108 : vector<8x256xf32>
    %c0_70 = arith.constant 0 : index
    %c0_71 = arith.constant 0 : index
    %c0_72 = arith.constant 0 : index
    %110 = vector.load %arg8[%c0_70, %c0_71, %c0_72] : memref<4x8x1xf32, #tpu.memory_space<vmem>>, vector<1x8x1xf32>
    %111 = vector.shape_cast %110 : vector<1x8x1xf32> to vector<8x1xf32>
    %112 = vector.broadcast %111 : vector<8x1xf32> to vector<8x256xf32>
    %113 = arith.addf %109, %112 : vector<8x256xf32>
    %c1_73 = arith.constant 1 : index
    %c0_74 = arith.constant 0 : index
    %c0_75 = arith.constant 0 : index
    %114 = vector.load %arg6[%c1_73, %c0_74, %c0_75] : memref<5x8x1xf32, #tpu.memory_space<vmem>>, vector<1x8x1xf32>
    %115 = vector.shape_cast %114 : vector<1x8x1xf32> to vector<8x1xf32>
    %c0_76 = arith.constant 0 : index
    %c17_77 = arith.constant 17 : index
    %116 = vector.load %arg10[%c0_76, %c17_77] : memref<8x290xf32, #tpu.memory_space<vmem>>, vector<8x256xf32>
    tpu.vector_store %arg10[%c0_76, %c17_77], %113 {strides = array<i32>} : memref<8x290xf32, #tpu.memory_space<vmem>>, vector<8x256xf32>,
    %cst_78 = arith.constant 0.000000e+00 : f32
    %117 = vector.broadcast %cst_78 : f32 to vector<8x256xf32>
    %c0_79 = arith.constant 0 : index
    %c0_80 = arith.constant 0 : index
    %118 = vector.load %arg10[%c0_79, %c0_80] : memref<8x290xf32, #tpu.memory_space<vmem>>, vector<8x256xf32>
    %cst_81 = arith.constant 0.000000e+00 : f32
    %119 = vector.shape_cast %20 : vector<1x256xi1> to vector<1x256xi1>
    %120 = vector.broadcast %119 : vector<1x256xi1> to vector<8x256xi1>
    %121 = vector.broadcast %cst_81 : f32 to vector<8x256xf32>
    %122 = arith.select %120, %118, %121 : vector<8x256xi1>, vector<8x256xf32>
    %c0_82 = arith.constant 0 : index
    %c0_83 = arith.constant 0 : index
    %c0_84 = arith.constant 0 : index
    %123 = vector.load %arg5[%c0_82, %c0_83, %c0_84] : memref<36x8x8xf32, #tpu.memory_space<vmem>>, vector<1x8x8xf32>
    %124 = vector.shape_cast %123 : vector<1x8x8xf32> to vector<8x8xf32>
    %cst_85 = arith.constant dense<0.000000e+00> : vector<8x256xf32>
    %125 = tpu.matmul %124, %122, %cst_85 {dimension_numbers = #tpu.dot_dimension_numbers<[1], [0], [0], [1], [0, 0, 1, 1], [], []>} : vector<8x8xf32>, vector<8x256xf32>, vector<8x256xf32> -> vector<8x256xf32>
    %126 = arith.addf %117, %125 : vector<8x256xf32>
    %c0_86 = arith.constant 0 : index
    %c1_87 = arith.constant 1 : index
    %127 = vector.load %arg10[%c0_86, %c1_87] : memref<8x290xf32, #tpu.memory_space<vmem>>, vector<8x256xf32>
    %c1_88 = arith.constant 1 : index
    %c0_89 = arith.constant 0 : index
    %c0_90 = arith.constant 0 : index
    %128 = vector.load %arg5[%c1_88, %c0_89, %c0_90] : memref<36x8x8xf32, #tpu.memory_space<vmem>>, vector<1x8x8xf32>
    %129 = vector.shape_cast %128 : vector<1x8x8xf32> to vector<8x8xf32>
    %cst_91 = arith.constant dense<0.000000e+00> : vector<8x256xf32>
    %130 = tpu.matmul %129, %127, %cst_91 {dimension_numbers = #tpu.dot_dimension_numbers<[1], [0], [0], [1], [0, 0, 1, 1], [], []>} : vector<8x8xf32>, vector<8x256xf32>, vector<8x256xf32> -> vector<8x256xf32>
    %131 = arith.addf %126, %130 : vector<8x256xf32>
    %c0_92 = arith.constant 0 : index
    %c2_93 = arith.constant 2 : index
    %132 = vector.load %arg10[%c0_92, %c2_93] : memref<8x290xf32, #tpu.memory_space<vmem>>, vector<8x256xf32>
    %cst_94 = arith.constant 0.000000e+00 : f32
    %133 = vector.shape_cast %22 : vector<1x256xi1> to vector<1x256xi1>
    %134 = vector.broadcast %133 : vector<1x256xi1> to vector<8x256xi1>
    %135 = vector.broadcast %cst_94 : f32 to vector<8x256xf32>
    %136 = arith.select %134, %132, %135 : vector<8x256xi1>, vector<8x256xf32>
    %c2_95 = arith.constant 2 : index
    %c0_96 = arith.constant 0 : index
    %c0_97 = arith.constant 0 : index
    %137 = vector.load %arg5[%c2_95, %c0_96, %c0_97] : memref<36x8x8xf32, #tpu.memory_space<vmem>>, vector<1x8x8xf32>
    %138 = vector.shape_cast %137 : vector<1x8x8xf32> to vector<8x8xf32>
    %cst_98 = arith.constant dense<0.000000e+00> : vector<8x256xf32>
    %139 = tpu.matmul %138, %136, %cst_98 {dimension_numbers = #tpu.dot_dimension_numbers<[1], [0], [0], [1], [0, 0, 1, 1], [], []>} : vector<8x8xf32>, vector<8x256xf32>, vector<8x256xf32> -> vector<8x256xf32>
    %140 = arith.addf %131, %139 : vector<8x256xf32>
    %c0_99 = arith.constant 0 : index
    %c16_100 = arith.constant 16 : index
    %141 = vector.load %arg10[%c0_99, %c16_100] : memref<8x290xf32, #tpu.memory_space<vmem>>, vector<8x256xf32>
    %cst_101 = arith.constant 0.000000e+00 : f32
    %142 = vector.shape_cast %20 : vector<1x256xi1> to vector<1x256xi1>
    %143 = vector.broadcast %142 : vector<1x256xi1> to vector<8x256xi1>
    %144 = vector.broadcast %cst_101 : f32 to vector<8x256xf32>
    %145 = arith.select %143, %141, %144 : vector<8x256xi1>, vector<8x256xf32>
    %c3_102 = arith.constant 3 : index
    %c0_103 = arith.constant 0 : index
    %c0_104 = arith.constant 0 : index
    %146 = vector.load %arg5[%c3_102, %c0_103, %c0_104] : memref<36x8x8xf32, #tpu.memory_space<vmem>>, vector<1x8x8xf32>
    %147 = vector.shape_cast %146 : vector<1x8x8xf32> to vector<8x8xf32>
    %cst_105 = arith.constant dense<0.000000e+00> : vector<8x256xf32>
    %148 = tpu.matmul %147, %145, %cst_105 {dimension_numbers = #tpu.dot_dimension_numbers<[1], [0], [0], [1], [0, 0, 1, 1], [], []>} : vector<8x8xf32>, vector<8x256xf32>, vector<8x256xf32> -> vector<8x256xf32>
    %149 = arith.addf %140, %148 : vector<8x256xf32>
    %c0_106 = arith.constant 0 : index
    %c17_107 = arith.constant 17 : index
    %150 = vector.load %arg10[%c0_106, %c17_107] : memref<8x290xf32, #tpu.memory_space<vmem>>, vector<8x256xf32>
    %c4_108 = arith.constant 4 : index
    %c0_109 = arith.constant 0 : index
    %c0_110 = arith.constant 0 : index
    %151 = vector.load %arg5[%c4_108, %c0_109, %c0_110] : memref<36x8x8xf32, #tpu.memory_space<vmem>>, vector<1x8x8xf32>
    %152 = vector.shape_cast %151 : vector<1x8x8xf32> to vector<8x8xf32>
    %cst_111 = arith.constant dense<0.000000e+00> : vector<8x256xf32>
    %153 = tpu.matmul %152, %150, %cst_111 {dimension_numbers = #tpu.dot_dimension_numbers<[1], [0], [0], [1], [0, 0, 1, 1], [], []>} : vector<8x8xf32>, vector<8x256xf32>, vector<8x256xf32> -> vector<8x256xf32>
    %154 = arith.addf %149, %153 : vector<8x256xf32>
    %c0_112 = arith.constant 0 : index
    %c18_113 = arith.constant 18 : index
    %155 = vector.load %arg10[%c0_112, %c18_113] : memref<8x290xf32, #tpu.memory_space<vmem>>, vector<8x256xf32>
    %cst_114 = arith.constant 0.000000e+00 : f32
    %156 = vector.shape_cast %22 : vector<1x256xi1> to vector<1x256xi1>
    %157 = vector.broadcast %156 : vector<1x256xi1> to vector<8x256xi1>
    %158 = vector.broadcast %cst_114 : f32 to vector<8x256xf32>
    %159 = arith.select %157, %155, %158 : vector<8x256xi1>, vector<8x256xf32>
    %c5_115 = arith.constant 5 : index
    %c0_116 = arith.constant 0 : index
    %c0_117 = arith.constant 0 : index
    %160 = vector.load %arg5[%c5_115, %c0_116, %c0_117] : memref<36x8x8xf32, #tpu.memory_space<vmem>>, vector<1x8x8xf32>
    %161 = vector.shape_cast %160 : vector<1x8x8xf32> to vector<8x8xf32>
    %cst_118 = arith.constant dense<0.000000e+00> : vector<8x256xf32>
    %162 = tpu.matmul %161, %159, %cst_118 {dimension_numbers = #tpu.dot_dimension_numbers<[1], [0], [0], [1], [0, 0, 1, 1], [], []>} : vector<8x8xf32>, vector<8x256xf32>, vector<8x256xf32> -> vector<8x256xf32>
    %163 = arith.addf %154, %162 : vector<8x256xf32>
    %c0_119 = arith.constant 0 : index
    %c32_120 = arith.constant 32 : index
    %164 = vector.load %arg10[%c0_119, %c32_120] : memref<8x290xf32, #tpu.memory_space<vmem>>, vector<8x256xf32>
    %cst_121 = arith.constant 0.000000e+00 : f32
    %165 = vector.shape_cast %20 : vector<1x256xi1> to vector<1x256xi1>
    %166 = vector.broadcast %165 : vector<1x256xi1> to vector<8x256xi1>
    %167 = vector.broadcast %cst_121 : f32 to vector<8x256xf32>
    %168 = arith.select %166, %164, %167 : vector<8x256xi1>, vector<8x256xf32>
    %c6_122 = arith.constant 6 : index
    %c0_123 = arith.constant 0 : index
    %c0_124 = arith.constant 0 : index
    %169 = vector.load %arg5[%c6_122, %c0_123, %c0_124] : memref<36x8x8xf32, #tpu.memory_space<vmem>>, vector<1x8x8xf32>
    %170 = vector.shape_cast %169 : vector<1x8x8xf32> to vector<8x8xf32>
    %cst_125 = arith.constant dense<0.000000e+00> : vector<8x256xf32>
    %171 = tpu.matmul %170, %168, %cst_125 {dimension_numbers = #tpu.dot_dimension_numbers<[1], [0], [0], [1], [0, 0, 1, 1], [], []>} : vector<8x8xf32>, vector<8x256xf32>, vector<8x256xf32> -> vector<8x256xf32>
    %172 = arith.addf %163, %171 : vector<8x256xf32>
    %c0_126 = arith.constant 0 : index
    %c33_127 = arith.constant 33 : index
    %173 = vector.load %arg10[%c0_126, %c33_127] : memref<8x290xf32, #tpu.memory_space<vmem>>, vector<8x256xf32>
    %c7_128 = arith.constant 7 : index
    %c0_129 = arith.constant 0 : index
    %c0_130 = arith.constant 0 : index
    %174 = vector.load %arg5[%c7_128, %c0_129, %c0_130] : memref<36x8x8xf32, #tpu.memory_space<vmem>>, vector<1x8x8xf32>
    %175 = vector.shape_cast %174 : vector<1x8x8xf32> to vector<8x8xf32>
    %cst_131 = arith.constant dense<0.000000e+00> : vector<8x256xf32>
    %176 = tpu.matmul %175, %173, %cst_131 {dimension_numbers = #tpu.dot_dimension_numbers<[1], [0], [0], [1], [0, 0, 1, 1], [], []>} : vector<8x8xf32>, vector<8x256xf32>, vector<8x256xf32> -> vector<8x256xf32>
    %177 = arith.addf %172, %176 : vector<8x256xf32>
    %c0_132 = arith.constant 0 : index
    %c34_133 = arith.constant 34 : index
    %178 = vector.load %arg10[%c0_132, %c34_133] : memref<8x290xf32, #tpu.memory_space<vmem>>, vector<8x256xf32>
    %cst_134 = arith.constant 0.000000e+00 : f32
    %179 = vector.shape_cast %22 : vector<1x256xi1> to vector<1x256xi1>
    %180 = vector.broadcast %179 : vector<1x256xi1> to vector<8x256xi1>
    %181 = vector.broadcast %cst_134 : f32 to vector<8x256xf32>
    %182 = arith.select %180, %178, %181 : vector<8x256xi1>, vector<8x256xf32>
    %c8_135 = arith.constant 8 : index
    %c0_136 = arith.constant 0 : index
    %c0_137 = arith.constant 0 : index
    %183 = vector.load %arg5[%c8_135, %c0_136, %c0_137] : memref<36x8x8xf32, #tpu.memory_space<vmem>>, vector<1x8x8xf32>
    %184 = vector.shape_cast %183 : vector<1x8x8xf32> to vector<8x8xf32>
    %cst_138 = arith.constant dense<0.000000e+00> : vector<8x256xf32>
    %185 = tpu.matmul %184, %182, %cst_138 {dimension_numbers = #tpu.dot_dimension_numbers<[1], [0], [0], [1], [0, 0, 1, 1], [], []>} : vector<8x8xf32>, vector<8x256xf32>, vector<8x256xf32> -> vector<8x256xf32>
    %186 = arith.addf %177, %185 : vector<8x256xf32>
    %187 = vector.broadcast %115 : vector<8x1xf32> to vector<8x256xf32>
    %188 = arith.addf %186, %187 : vector<8x256xf32>
    %cst_139 = arith.constant 0.000000e+00 : f32
    %189 = vector.broadcast %cst_139 : f32 to vector<8x256xf32>
    %190 = arith.maximumf %188, %189 : vector<8x256xf32>
    %c1_140 = arith.constant 1 : index
    %c0_141 = arith.constant 0 : index
    %c0_142 = arith.constant 0 : index
    %191 = vector.load %arg7[%c1_140, %c0_141, %c0_142] : memref<4x8x1xf32, #tpu.memory_space<vmem>>, vector<1x8x1xf32>
    %192 = vector.shape_cast %191 : vector<1x8x1xf32> to vector<8x1xf32>
    %193 = vector.broadcast %192 : vector<8x1xf32> to vector<8x256xf32>
    %194 = arith.mulf %190, %193 : vector<8x256xf32>
    %c1_143 = arith.constant 1 : index
    %c0_144 = arith.constant 0 : index
    %c0_145 = arith.constant 0 : index
    %195 = vector.load %arg8[%c1_143, %c0_144, %c0_145] : memref<4x8x1xf32, #tpu.memory_space<vmem>>, vector<1x8x1xf32>
    %196 = vector.shape_cast %195 : vector<1x8x1xf32> to vector<8x1xf32>
    %197 = vector.broadcast %196 : vector<8x1xf32> to vector<8x256xf32>
    %198 = arith.addf %194, %197 : vector<8x256xf32>
    %c2_146 = arith.constant 2 : index
    %c0_147 = arith.constant 0 : index
    %c0_148 = arith.constant 0 : index
    %199 = vector.load %arg6[%c2_146, %c0_147, %c0_148] : memref<5x8x1xf32, #tpu.memory_space<vmem>>, vector<1x8x1xf32>
    %200 = vector.shape_cast %199 : vector<1x8x1xf32> to vector<8x1xf32>
    %c0_149 = arith.constant 0 : index
    %c17_150 = arith.constant 17 : index
    %201 = vector.load %arg10[%c0_149, %c17_150] : memref<8x290xf32, #tpu.memory_space<vmem>>, vector<8x256xf32>
    tpu.vector_store %arg10[%c0_149, %c17_150], %198 {strides = array<i32>} : memref<8x290xf32, #tpu.memory_space<vmem>>, vector<8x256xf32>,
    %cst_151 = arith.constant 0.000000e+00 : f32
    %202 = vector.broadcast %cst_151 : f32 to vector<8x256xf32>
    %c0_152 = arith.constant 0 : index
    %c0_153 = arith.constant 0 : index
    %203 = vector.load %arg10[%c0_152, %c0_153] : memref<8x290xf32, #tpu.memory_space<vmem>>, vector<8x256xf32>
    %cst_154 = arith.constant 0.000000e+00 : f32
    %204 = vector.shape_cast %20 : vector<1x256xi1> to vector<1x256xi1>
    %205 = vector.broadcast %204 : vector<1x256xi1> to vector<8x256xi1>
    %206 = vector.broadcast %cst_154 : f32 to vector<8x256xf32>
    %207 = arith.select %205, %203, %206 : vector<8x256xi1>, vector<8x256xf32>
    %c9 = arith.constant 9 : index
    %c0_155 = arith.constant 0 : index
    %c0_156 = arith.constant 0 : index
    %208 = vector.load %arg5[%c9, %c0_155, %c0_156] : memref<36x8x8xf32, #tpu.memory_space<vmem>>, vector<1x8x8xf32>
    %209 = vector.shape_cast %208 : vector<1x8x8xf32> to vector<8x8xf32>
    %cst_157 = arith.constant dense<0.000000e+00> : vector<8x256xf32>
    %210 = tpu.matmul %209, %207, %cst_157 {dimension_numbers = #tpu.dot_dimension_numbers<[1], [0], [0], [1], [0, 0, 1, 1], [], []>} : vector<8x8xf32>, vector<8x256xf32>, vector<8x256xf32> -> vector<8x256xf32>
    %211 = arith.addf %202, %210 : vector<8x256xf32>
    %c0_158 = arith.constant 0 : index
    %c1_159 = arith.constant 1 : index
    %212 = vector.load %arg10[%c0_158, %c1_159] : memref<8x290xf32, #tpu.memory_space<vmem>>, vector<8x256xf32>
    %c10 = arith.constant 10 : index
    %c0_160 = arith.constant 0 : index
    %c0_161 = arith.constant 0 : index
    %213 = vector.load %arg5[%c10, %c0_160, %c0_161] : memref<36x8x8xf32, #tpu.memory_space<vmem>>, vector<1x8x8xf32>
    %214 = vector.shape_cast %213 : vector<1x8x8xf32> to vector<8x8xf32>
    %cst_162 = arith.constant dense<0.000000e+00> : vector<8x256xf32>
    %215 = tpu.matmul %214, %212, %cst_162 {dimension_numbers = #tpu.dot_dimension_numbers<[1], [0], [0], [1], [0, 0, 1, 1], [], []>} : vector<8x8xf32>, vector<8x256xf32>, vector<8x256xf32> -> vector<8x256xf32>
    %216 = arith.addf %211, %215 : vector<8x256xf32>
    %c0_163 = arith.constant 0 : index
    %c2_164 = arith.constant 2 : index
    %217 = vector.load %arg10[%c0_163, %c2_164] : memref<8x290xf32, #tpu.memory_space<vmem>>, vector<8x256xf32>
    %cst_165 = arith.constant 0.000000e+00 : f32
    %218 = vector.shape_cast %22 : vector<1x256xi1> to vector<1x256xi1>
    %219 = vector.broadcast %218 : vector<1x256xi1> to vector<8x256xi1>
    %220 = vector.broadcast %cst_165 : f32 to vector<8x256xf32>
    %221 = arith.select %219, %217, %220 : vector<8x256xi1>, vector<8x256xf32>
    %c11 = arith.constant 11 : index
    %c0_166 = arith.constant 0 : index
    %c0_167 = arith.constant 0 : index
    %222 = vector.load %arg5[%c11, %c0_166, %c0_167] : memref<36x8x8xf32, #tpu.memory_space<vmem>>, vector<1x8x8xf32>
    %223 = vector.shape_cast %222 : vector<1x8x8xf32> to vector<8x8xf32>
    %cst_168 = arith.constant dense<0.000000e+00> : vector<8x256xf32>
    %224 = tpu.matmul %223, %221, %cst_168 {dimension_numbers = #tpu.dot_dimension_numbers<[1], [0], [0], [1], [0, 0, 1, 1], [], []>} : vector<8x8xf32>, vector<8x256xf32>, vector<8x256xf32> -> vector<8x256xf32>
    %225 = arith.addf %216, %224 : vector<8x256xf32>
    %c0_169 = arith.constant 0 : index
    %c16_170 = arith.constant 16 : index
    %226 = vector.load %arg10[%c0_169, %c16_170] : memref<8x290xf32, #tpu.memory_space<vmem>>, vector<8x256xf32>
    %cst_171 = arith.constant 0.000000e+00 : f32
    %227 = vector.shape_cast %20 : vector<1x256xi1> to vector<1x256xi1>
    %228 = vector.broadcast %227 : vector<1x256xi1> to vector<8x256xi1>
    %229 = vector.broadcast %cst_171 : f32 to vector<8x256xf32>
    %230 = arith.select %228, %226, %229 : vector<8x256xi1>, vector<8x256xf32>
    %c12 = arith.constant 12 : index
    %c0_172 = arith.constant 0 : index
    %c0_173 = arith.constant 0 : index
    %231 = vector.load %arg5[%c12, %c0_172, %c0_173] : memref<36x8x8xf32, #tpu.memory_space<vmem>>, vector<1x8x8xf32>
    %232 = vector.shape_cast %231 : vector<1x8x8xf32> to vector<8x8xf32>
    %cst_174 = arith.constant dense<0.000000e+00> : vector<8x256xf32>
    %233 = tpu.matmul %232, %230, %cst_174 {dimension_numbers = #tpu.dot_dimension_numbers<[1], [0], [0], [1], [0, 0, 1, 1], [], []>} : vector<8x8xf32>, vector<8x256xf32>, vector<8x256xf32> -> vector<8x256xf32>
    %234 = arith.addf %225, %233 : vector<8x256xf32>
    %c0_175 = arith.constant 0 : index
    %c17_176 = arith.constant 17 : index
    %235 = vector.load %arg10[%c0_175, %c17_176] : memref<8x290xf32, #tpu.memory_space<vmem>>, vector<8x256xf32>
    %c13 = arith.constant 13 : index
    %c0_177 = arith.constant 0 : index
    %c0_178 = arith.constant 0 : index
    %236 = vector.load %arg5[%c13, %c0_177, %c0_178] : memref<36x8x8xf32, #tpu.memory_space<vmem>>, vector<1x8x8xf32>
    %237 = vector.shape_cast %236 : vector<1x8x8xf32> to vector<8x8xf32>
    %cst_179 = arith.constant dense<0.000000e+00> : vector<8x256xf32>
    %238 = tpu.matmul %237, %235, %cst_179 {dimension_numbers = #tpu.dot_dimension_numbers<[1], [0], [0], [1], [0, 0, 1, 1], [], []>} : vector<8x8xf32>, vector<8x256xf32>, vector<8x256xf32> -> vector<8x256xf32>
    %239 = arith.addf %234, %238 : vector<8x256xf32>
    %c0_180 = arith.constant 0 : index
    %c18_181 = arith.constant 18 : index
    %240 = vector.load %arg10[%c0_180, %c18_181] : memref<8x290xf32, #tpu.memory_space<vmem>>, vector<8x256xf32>
    %cst_182 = arith.constant 0.000000e+00 : f32
    %241 = vector.shape_cast %22 : vector<1x256xi1> to vector<1x256xi1>
    %242 = vector.broadcast %241 : vector<1x256xi1> to vector<8x256xi1>
    %243 = vector.broadcast %cst_182 : f32 to vector<8x256xf32>
    %244 = arith.select %242, %240, %243 : vector<8x256xi1>, vector<8x256xf32>
    %c14 = arith.constant 14 : index
    %c0_183 = arith.constant 0 : index
    %c0_184 = arith.constant 0 : index
    %245 = vector.load %arg5[%c14, %c0_183, %c0_184] : memref<36x8x8xf32, #tpu.memory_space<vmem>>, vector<1x8x8xf32>
    %246 = vector.shape_cast %245 : vector<1x8x8xf32> to vector<8x8xf32>
    %cst_185 = arith.constant dense<0.000000e+00> : vector<8x256xf32>
    %247 = tpu.matmul %246, %244, %cst_185 {dimension_numbers = #tpu.dot_dimension_numbers<[1], [0], [0], [1], [0, 0, 1, 1], [], []>} : vector<8x8xf32>, vector<8x256xf32>, vector<8x256xf32> -> vector<8x256xf32>
    %248 = arith.addf %239, %247 : vector<8x256xf32>
    %c0_186 = arith.constant 0 : index
    %c32_187 = arith.constant 32 : index
    %249 = vector.load %arg10[%c0_186, %c32_187] : memref<8x290xf32, #tpu.memory_space<vmem>>, vector<8x256xf32>
    %cst_188 = arith.constant 0.000000e+00 : f32
    %250 = vector.shape_cast %20 : vector<1x256xi1> to vector<1x256xi1>
    %251 = vector.broadcast %250 : vector<1x256xi1> to vector<8x256xi1>
    %252 = vector.broadcast %cst_188 : f32 to vector<8x256xf32>
    %253 = arith.select %251, %249, %252 : vector<8x256xi1>, vector<8x256xf32>
    %c15 = arith.constant 15 : index
    %c0_189 = arith.constant 0 : index
    %c0_190 = arith.constant 0 : index
    %254 = vector.load %arg5[%c15, %c0_189, %c0_190] : memref<36x8x8xf32, #tpu.memory_space<vmem>>, vector<1x8x8xf32>
    %255 = vector.shape_cast %254 : vector<1x8x8xf32> to vector<8x8xf32>
    %cst_191 = arith.constant dense<0.000000e+00> : vector<8x256xf32>
    %256 = tpu.matmul %255, %253, %cst_191 {dimension_numbers = #tpu.dot_dimension_numbers<[1], [0], [0], [1], [0, 0, 1, 1], [], []>} : vector<8x8xf32>, vector<8x256xf32>, vector<8x256xf32> -> vector<8x256xf32>
    %257 = arith.addf %248, %256 : vector<8x256xf32>
    %c0_192 = arith.constant 0 : index
    %c33_193 = arith.constant 33 : index
    %258 = vector.load %arg10[%c0_192, %c33_193] : memref<8x290xf32, #tpu.memory_space<vmem>>, vector<8x256xf32>
    %c16_194 = arith.constant 16 : index
    %c0_195 = arith.constant 0 : index
    %c0_196 = arith.constant 0 : index
    %259 = vector.load %arg5[%c16_194, %c0_195, %c0_196] : memref<36x8x8xf32, #tpu.memory_space<vmem>>, vector<1x8x8xf32>
    %260 = vector.shape_cast %259 : vector<1x8x8xf32> to vector<8x8xf32>
    %cst_197 = arith.constant dense<0.000000e+00> : vector<8x256xf32>
    %261 = tpu.matmul %260, %258, %cst_197 {dimension_numbers = #tpu.dot_dimension_numbers<[1], [0], [0], [1], [0, 0, 1, 1], [], []>} : vector<8x8xf32>, vector<8x256xf32>, vector<8x256xf32> -> vector<8x256xf32>
    %262 = arith.addf %257, %261 : vector<8x256xf32>
    %c0_198 = arith.constant 0 : index
    %c34_199 = arith.constant 34 : index
    %263 = vector.load %arg10[%c0_198, %c34_199] : memref<8x290xf32, #tpu.memory_space<vmem>>, vector<8x256xf32>
    %cst_200 = arith.constant 0.000000e+00 : f32
    %264 = vector.shape_cast %22 : vector<1x256xi1> to vector<1x256xi1>
    %265 = vector.broadcast %264 : vector<1x256xi1> to vector<8x256xi1>
    %266 = vector.broadcast %cst_200 : f32 to vector<8x256xf32>
    %267 = arith.select %265, %263, %266 : vector<8x256xi1>, vector<8x256xf32>
    %c17_201 = arith.constant 17 : index
    %c0_202 = arith.constant 0 : index
    %c0_203 = arith.constant 0 : index
    %268 = vector.load %arg5[%c17_201, %c0_202, %c0_203] : memref<36x8x8xf32, #tpu.memory_space<vmem>>, vector<1x8x8xf32>
    %269 = vector.shape_cast %268 : vector<1x8x8xf32> to vector<8x8xf32>
    %cst_204 = arith.constant dense<0.000000e+00> : vector<8x256xf32>
    %270 = tpu.matmul %269, %267, %cst_204 {dimension_numbers = #tpu.dot_dimension_numbers<[1], [0], [0], [1], [0, 0, 1, 1], [], []>} : vector<8x8xf32>, vector<8x256xf32>, vector<8x256xf32> -> vector<8x256xf32>
    %271 = arith.addf %262, %270 : vector<8x256xf32>
    %272 = vector.broadcast %200 : vector<8x1xf32> to vector<8x256xf32>
    %273 = arith.addf %271, %272 : vector<8x256xf32>
    %274 = arith.addf %103, %273 : vector<8x256xf32>
    %275 = arith.addf %26, %274 : vector<8x256xf32>
    %cst_205 = arith.constant 0.000000e+00 : f32
    %276 = vector.broadcast %cst_205 : f32 to vector<8x256xf32>
    %277 = arith.maximumf %275, %276 : vector<8x256xf32>
    %c2_206 = arith.constant 2 : index
    %c0_207 = arith.constant 0 : index
    %c0_208 = arith.constant 0 : index
    %278 = vector.load %arg7[%c2_206, %c0_207, %c0_208] : memref<4x8x1xf32, #tpu.memory_space<vmem>>, vector<1x8x1xf32>
    %279 = vector.shape_cast %278 : vector<1x8x1xf32> to vector<8x1xf32>
    %280 = vector.broadcast %279 : vector<8x1xf32> to vector<8x256xf32>
    %281 = arith.mulf %277, %280 : vector<8x256xf32>
    %c2_209 = arith.constant 2 : index
    %c0_210 = arith.constant 0 : index
    %c0_211 = arith.constant 0 : index
    %282 = vector.load %arg8[%c2_209, %c0_210, %c0_211] : memref<4x8x1xf32, #tpu.memory_space<vmem>>, vector<1x8x1xf32>
    %283 = vector.shape_cast %282 : vector<1x8x1xf32> to vector<8x1xf32>
    %284 = vector.broadcast %283 : vector<8x1xf32> to vector<8x256xf32>
    %285 = arith.addf %281, %284 : vector<8x256xf32>
    %c3_212 = arith.constant 3 : index
    %c0_213 = arith.constant 0 : index
    %c0_214 = arith.constant 0 : index
    %286 = vector.load %arg6[%c3_212, %c0_213, %c0_214] : memref<5x8x1xf32, #tpu.memory_space<vmem>>, vector<1x8x1xf32>
    %287 = vector.shape_cast %286 : vector<1x8x1xf32> to vector<8x1xf32>
    %c0_215 = arith.constant 0 : index
    %c17_216 = arith.constant 17 : index
    %288 = vector.load %arg10[%c0_215, %c17_216] : memref<8x290xf32, #tpu.memory_space<vmem>>, vector<8x256xf32>
    tpu.vector_store %arg10[%c0_215, %c17_216], %285 {strides = array<i32>} : memref<8x290xf32, #tpu.memory_space<vmem>>, vector<8x256xf32>,
    %cst_217 = arith.constant 0.000000e+00 : f32
    %289 = vector.broadcast %cst_217 : f32 to vector<8x256xf32>
    %c0_218 = arith.constant 0 : index
    %c0_219 = arith.constant 0 : index
    %290 = vector.load %arg10[%c0_218, %c0_219] : memref<8x290xf32, #tpu.memory_space<vmem>>, vector<8x256xf32>
    %cst_220 = arith.constant 0.000000e+00 : f32
    %291 = vector.shape_cast %20 : vector<1x256xi1> to vector<1x256xi1>
    %292 = vector.broadcast %291 : vector<1x256xi1> to vector<8x256xi1>
    %293 = vector.broadcast %cst_220 : f32 to vector<8x256xf32>
    %294 = arith.select %292, %290, %293 : vector<8x256xi1>, vector<8x256xf32>
    %c18_221 = arith.constant 18 : index
    %c0_222 = arith.constant 0 : index
    %c0_223 = arith.constant 0 : index
    %295 = vector.load %arg5[%c18_221, %c0_222, %c0_223] : memref<36x8x8xf32, #tpu.memory_space<vmem>>, vector<1x8x8xf32>
    %296 = vector.shape_cast %295 : vector<1x8x8xf32> to vector<8x8xf32>
    %cst_224 = arith.constant dense<0.000000e+00> : vector<8x256xf32>
    %297 = tpu.matmul %296, %294, %cst_224 {dimension_numbers = #tpu.dot_dimension_numbers<[1], [0], [0], [1], [0, 0, 1, 1], [], []>} : vector<8x8xf32>, vector<8x256xf32>, vector<8x256xf32> -> vector<8x256xf32>
    %298 = arith.addf %289, %297 : vector<8x256xf32>
    %c0_225 = arith.constant 0 : index
    %c1_226 = arith.constant 1 : index
    %299 = vector.load %arg10[%c0_225, %c1_226] : memref<8x290xf32, #tpu.memory_space<vmem>>, vector<8x256xf32>
    %c19 = arith.constant 19 : index
    %c0_227 = arith.constant 0 : index
    %c0_228 = arith.constant 0 : index
    %300 = vector.load %arg5[%c19, %c0_227, %c0_228] : memref<36x8x8xf32, #tpu.memory_space<vmem>>, vector<1x8x8xf32>
    %301 = vector.shape_cast %300 : vector<1x8x8xf32> to vector<8x8xf32>
    %cst_229 = arith.constant dense<0.000000e+00> : vector<8x256xf32>
    %302 = tpu.matmul %301, %299, %cst_229 {dimension_numbers = #tpu.dot_dimension_numbers<[1], [0], [0], [1], [0, 0, 1, 1], [], []>} : vector<8x8xf32>, vector<8x256xf32>, vector<8x256xf32> -> vector<8x256xf32>
    %303 = arith.addf %298, %302 : vector<8x256xf32>
    %c0_230 = arith.constant 0 : index
    %c2_231 = arith.constant 2 : index
    %304 = vector.load %arg10[%c0_230, %c2_231] : memref<8x290xf32, #tpu.memory_space<vmem>>, vector<8x256xf32>
    %cst_232 = arith.constant 0.000000e+00 : f32
    %305 = vector.shape_cast %22 : vector<1x256xi1> to vector<1x256xi1>
    %306 = vector.broadcast %305 : vector<1x256xi1> to vector<8x256xi1>
    %307 = vector.broadcast %cst_232 : f32 to vector<8x256xf32>
    %308 = arith.select %306, %304, %307 : vector<8x256xi1>, vector<8x256xf32>
    %c20 = arith.constant 20 : index
    %c0_233 = arith.constant 0 : index
    %c0_234 = arith.constant 0 : index
    %309 = vector.load %arg5[%c20, %c0_233, %c0_234] : memref<36x8x8xf32, #tpu.memory_space<vmem>>, vector<1x8x8xf32>
    %310 = vector.shape_cast %309 : vector<1x8x8xf32> to vector<8x8xf32>
    %cst_235 = arith.constant dense<0.000000e+00> : vector<8x256xf32>
    %311 = tpu.matmul %310, %308, %cst_235 {dimension_numbers = #tpu.dot_dimension_numbers<[1], [0], [0], [1], [0, 0, 1, 1], [], []>} : vector<8x8xf32>, vector<8x256xf32>, vector<8x256xf32> -> vector<8x256xf32>
    %312 = arith.addf %303, %311 : vector<8x256xf32>
    %c0_236 = arith.constant 0 : index
    %c16_237 = arith.constant 16 : index
    %313 = vector.load %arg10[%c0_236, %c16_237] : memref<8x290xf32, #tpu.memory_space<vmem>>, vector<8x256xf32>
    %cst_238 = arith.constant 0.000000e+00 : f32
    %314 = vector.shape_cast %20 : vector<1x256xi1> to vector<1x256xi1>
    %315 = vector.broadcast %314 : vector<1x256xi1> to vector<8x256xi1>
    %316 = vector.broadcast %cst_238 : f32 to vector<8x256xf32>
    %317 = arith.select %315, %313, %316 : vector<8x256xi1>, vector<8x256xf32>
    %c21 = arith.constant 21 : index
    %c0_239 = arith.constant 0 : index
    %c0_240 = arith.constant 0 : index
    %318 = vector.load %arg5[%c21, %c0_239, %c0_240] : memref<36x8x8xf32, #tpu.memory_space<vmem>>, vector<1x8x8xf32>
    %319 = vector.shape_cast %318 : vector<1x8x8xf32> to vector<8x8xf32>
    %cst_241 = arith.constant dense<0.000000e+00> : vector<8x256xf32>
    %320 = tpu.matmul %319, %317, %cst_241 {dimension_numbers = #tpu.dot_dimension_numbers<[1], [0], [0], [1], [0, 0, 1, 1], [], []>} : vector<8x8xf32>, vector<8x256xf32>, vector<8x256xf32> -> vector<8x256xf32>
    %321 = arith.addf %312, %320 : vector<8x256xf32>
    %c0_242 = arith.constant 0 : index
    %c17_243 = arith.constant 17 : index
    %322 = vector.load %arg10[%c0_242, %c17_243] : memref<8x290xf32, #tpu.memory_space<vmem>>, vector<8x256xf32>
    %c22 = arith.constant 22 : index
    %c0_244 = arith.constant 0 : index
    %c0_245 = arith.constant 0 : index
    %323 = vector.load %arg5[%c22, %c0_244, %c0_245] : memref<36x8x8xf32, #tpu.memory_space<vmem>>, vector<1x8x8xf32>
    %324 = vector.shape_cast %323 : vector<1x8x8xf32> to vector<8x8xf32>
    %cst_246 = arith.constant dense<0.000000e+00> : vector<8x256xf32>
    %325 = tpu.matmul %324, %322, %cst_246 {dimension_numbers = #tpu.dot_dimension_numbers<[1], [0], [0], [1], [0, 0, 1, 1], [], []>} : vector<8x8xf32>, vector<8x256xf32>, vector<8x256xf32> -> vector<8x256xf32>
    %326 = arith.addf %321, %325 : vector<8x256xf32>
    %c0_247 = arith.constant 0 : index
    %c18_248 = arith.constant 18 : index
    %327 = vector.load %arg10[%c0_247, %c18_248] : memref<8x290xf32, #tpu.memory_space<vmem>>, vector<8x256xf32>
    %cst_249 = arith.constant 0.000000e+00 : f32
    %328 = vector.shape_cast %22 : vector<1x256xi1> to vector<1x256xi1>
    %329 = vector.broadcast %328 : vector<1x256xi1> to vector<8x256xi1>
    %330 = vector.broadcast %cst_249 : f32 to vector<8x256xf32>
    %331 = arith.select %329, %327, %330 : vector<8x256xi1>, vector<8x256xf32>
    %c23 = arith.constant 23 : index
    %c0_250 = arith.constant 0 : index
    %c0_251 = arith.constant 0 : index
    %332 = vector.load %arg5[%c23, %c0_250, %c0_251] : memref<36x8x8xf32, #tpu.memory_space<vmem>>, vector<1x8x8xf32>
    %333 = vector.shape_cast %332 : vector<1x8x8xf32> to vector<8x8xf32>
    %cst_252 = arith.constant dense<0.000000e+00> : vector<8x256xf32>
    %334 = tpu.matmul %333, %331, %cst_252 {dimension_numbers = #tpu.dot_dimension_numbers<[1], [0], [0], [1], [0, 0, 1, 1], [], []>} : vector<8x8xf32>, vector<8x256xf32>, vector<8x256xf32> -> vector<8x256xf32>
    %335 = arith.addf %326, %334 : vector<8x256xf32>
    %c0_253 = arith.constant 0 : index
    %c32_254 = arith.constant 32 : index
    %336 = vector.load %arg10[%c0_253, %c32_254] : memref<8x290xf32, #tpu.memory_space<vmem>>, vector<8x256xf32>
    %cst_255 = arith.constant 0.000000e+00 : f32
    %337 = vector.shape_cast %20 : vector<1x256xi1> to vector<1x256xi1>
    %338 = vector.broadcast %337 : vector<1x256xi1> to vector<8x256xi1>
    %339 = vector.broadcast %cst_255 : f32 to vector<8x256xf32>
    %340 = arith.select %338, %336, %339 : vector<8x256xi1>, vector<8x256xf32>
    %c24 = arith.constant 24 : index
    %c0_256 = arith.constant 0 : index
    %c0_257 = arith.constant 0 : index
    %341 = vector.load %arg5[%c24, %c0_256, %c0_257] : memref<36x8x8xf32, #tpu.memory_space<vmem>>, vector<1x8x8xf32>
    %342 = vector.shape_cast %341 : vector<1x8x8xf32> to vector<8x8xf32>
    %cst_258 = arith.constant dense<0.000000e+00> : vector<8x256xf32>
    %343 = tpu.matmul %342, %340, %cst_258 {dimension_numbers = #tpu.dot_dimension_numbers<[1], [0], [0], [1], [0, 0, 1, 1], [], []>} : vector<8x8xf32>, vector<8x256xf32>, vector<8x256xf32> -> vector<8x256xf32>
    %344 = arith.addf %335, %343 : vector<8x256xf32>
    %c0_259 = arith.constant 0 : index
    %c33_260 = arith.constant 33 : index
    %345 = vector.load %arg10[%c0_259, %c33_260] : memref<8x290xf32, #tpu.memory_space<vmem>>, vector<8x256xf32>
    %c25 = arith.constant 25 : index
    %c0_261 = arith.constant 0 : index
    %c0_262 = arith.constant 0 : index
    %346 = vector.load %arg5[%c25, %c0_261, %c0_262] : memref<36x8x8xf32, #tpu.memory_space<vmem>>, vector<1x8x8xf32>
    %347 = vector.shape_cast %346 : vector<1x8x8xf32> to vector<8x8xf32>
    %cst_263 = arith.constant dense<0.000000e+00> : vector<8x256xf32>
    %348 = tpu.matmul %347, %345, %cst_263 {dimension_numbers = #tpu.dot_dimension_numbers<[1], [0], [0], [1], [0, 0, 1, 1], [], []>} : vector<8x8xf32>, vector<8x256xf32>, vector<8x256xf32> -> vector<8x256xf32>
    %349 = arith.addf %344, %348 : vector<8x256xf32>
    %c0_264 = arith.constant 0 : index
    %c34_265 = arith.constant 34 : index
    %350 = vector.load %arg10[%c0_264, %c34_265] : memref<8x290xf32, #tpu.memory_space<vmem>>, vector<8x256xf32>
    %cst_266 = arith.constant 0.000000e+00 : f32
    %351 = vector.shape_cast %22 : vector<1x256xi1> to vector<1x256xi1>
    %352 = vector.broadcast %351 : vector<1x256xi1> to vector<8x256xi1>
    %353 = vector.broadcast %cst_266 : f32 to vector<8x256xf32>
    %354 = arith.select %352, %350, %353 : vector<8x256xi1>, vector<8x256xf32>
    %c26 = arith.constant 26 : index
    %c0_267 = arith.constant 0 : index
    %c0_268 = arith.constant 0 : index
    %355 = vector.load %arg5[%c26, %c0_267, %c0_268] : memref<36x8x8xf32, #tpu.memory_space<vmem>>, vector<1x8x8xf32>
    %356 = vector.shape_cast %355 : vector<1x8x8xf32> to vector<8x8xf32>
    %cst_269 = arith.constant dense<0.000000e+00> : vector<8x256xf32>
    %357 = tpu.matmul %356, %354, %cst_269 {dimension_numbers = #tpu.dot_dimension_numbers<[1], [0], [0], [1], [0, 0, 1, 1], [], []>} : vector<8x8xf32>, vector<8x256xf32>, vector<8x256xf32> -> vector<8x256xf32>
    %358 = arith.addf %349, %357 : vector<8x256xf32>
    %359 = vector.broadcast %287 : vector<8x1xf32> to vector<8x256xf32>
    %360 = arith.addf %358, %359 : vector<8x256xf32>
    %cst_270 = arith.constant 0.000000e+00 : f32
    %361 = vector.broadcast %cst_270 : f32 to vector<8x256xf32>
    %362 = arith.maximumf %360, %361 : vector<8x256xf32>
    %c3_271 = arith.constant 3 : index
    %c0_272 = arith.constant 0 : index
    %c0_273 = arith.constant 0 : index
    %363 = vector.load %arg7[%c3_271, %c0_272, %c0_273] : memref<4x8x1xf32, #tpu.memory_space<vmem>>, vector<1x8x1xf32>
    %364 = vector.shape_cast %363 : vector<1x8x1xf32> to vector<8x1xf32>
    %365 = vector.broadcast %364 : vector<8x1xf32> to vector<8x256xf32>
    %366 = arith.mulf %362, %365 : vector<8x256xf32>
    %c3_274 = arith.constant 3 : index
    %c0_275 = arith.constant 0 : index
    %c0_276 = arith.constant 0 : index
    %367 = vector.load %arg8[%c3_274, %c0_275, %c0_276] : memref<4x8x1xf32, #tpu.memory_space<vmem>>, vector<1x8x1xf32>
    %368 = vector.shape_cast %367 : vector<1x8x1xf32> to vector<8x1xf32>
    %369 = vector.broadcast %368 : vector<8x1xf32> to vector<8x256xf32>
    %370 = arith.addf %366, %369 : vector<8x256xf32>
    %c4_277 = arith.constant 4 : index
    %c0_278 = arith.constant 0 : index
    %c0_279 = arith.constant 0 : index
    %371 = vector.load %arg6[%c4_277, %c0_278, %c0_279] : memref<5x8x1xf32, #tpu.memory_space<vmem>>, vector<1x8x1xf32>
    %372 = vector.shape_cast %371 : vector<1x8x1xf32> to vector<8x1xf32>
    %c0_280 = arith.constant 0 : index
    %c17_281 = arith.constant 17 : index
    %373 = vector.load %arg10[%c0_280, %c17_281] : memref<8x290xf32, #tpu.memory_space<vmem>>, vector<8x256xf32>
    tpu.vector_store %arg10[%c0_280, %c17_281], %370 {strides = array<i32>} : memref<8x290xf32, #tpu.memory_space<vmem>>, vector<8x256xf32>,
    %cst_282 = arith.constant 0.000000e+00 : f32
    %374 = vector.broadcast %cst_282 : f32 to vector<8x256xf32>
    %c0_283 = arith.constant 0 : index
    %c0_284 = arith.constant 0 : index
    %375 = vector.load %arg10[%c0_283, %c0_284] : memref<8x290xf32, #tpu.memory_space<vmem>>, vector<8x256xf32>
    %cst_285 = arith.constant 0.000000e+00 : f32
    %376 = vector.shape_cast %20 : vector<1x256xi1> to vector<1x256xi1>
    %377 = vector.broadcast %376 : vector<1x256xi1> to vector<8x256xi1>
    %378 = vector.broadcast %cst_285 : f32 to vector<8x256xf32>
    %379 = arith.select %377, %375, %378 : vector<8x256xi1>, vector<8x256xf32>
    %c27 = arith.constant 27 : index
    %c0_286 = arith.constant 0 : index
    %c0_287 = arith.constant 0 : index
    %380 = vector.load %arg5[%c27, %c0_286, %c0_287] : memref<36x8x8xf32, #tpu.memory_space<vmem>>, vector<1x8x8xf32>
    %381 = vector.shape_cast %380 : vector<1x8x8xf32> to vector<8x8xf32>
    %cst_288 = arith.constant dense<0.000000e+00> : vector<8x256xf32>
    %382 = tpu.matmul %381, %379, %cst_288 {dimension_numbers = #tpu.dot_dimension_numbers<[1], [0], [0], [1], [0, 0, 1, 1], [], []>} : vector<8x8xf32>, vector<8x256xf32>, vector<8x256xf32> -> vector<8x256xf32>
    %383 = arith.addf %374, %382 : vector<8x256xf32>
    %c0_289 = arith.constant 0 : index
    %c1_290 = arith.constant 1 : index
    %384 = vector.load %arg10[%c0_289, %c1_290] : memref<8x290xf32, #tpu.memory_space<vmem>>, vector<8x256xf32>
    %c28 = arith.constant 28 : index
    %c0_291 = arith.constant 0 : index
    %c0_292 = arith.constant 0 : index
    %385 = vector.load %arg5[%c28, %c0_291, %c0_292] : memref<36x8x8xf32, #tpu.memory_space<vmem>>, vector<1x8x8xf32>
    %386 = vector.shape_cast %385 : vector<1x8x8xf32> to vector<8x8xf32>
    %cst_293 = arith.constant dense<0.000000e+00> : vector<8x256xf32>
    %387 = tpu.matmul %386, %384, %cst_293 {dimension_numbers = #tpu.dot_dimension_numbers<[1], [0], [0], [1], [0, 0, 1, 1], [], []>} : vector<8x8xf32>, vector<8x256xf32>, vector<8x256xf32> -> vector<8x256xf32>
    %388 = arith.addf %383, %387 : vector<8x256xf32>
    %c0_294 = arith.constant 0 : index
    %c2_295 = arith.constant 2 : index
    %389 = vector.load %arg10[%c0_294, %c2_295] : memref<8x290xf32, #tpu.memory_space<vmem>>, vector<8x256xf32>
    %cst_296 = arith.constant 0.000000e+00 : f32
    %390 = vector.shape_cast %22 : vector<1x256xi1> to vector<1x256xi1>
    %391 = vector.broadcast %390 : vector<1x256xi1> to vector<8x256xi1>
    %392 = vector.broadcast %cst_296 : f32 to vector<8x256xf32>
    %393 = arith.select %391, %389, %392 : vector<8x256xi1>, vector<8x256xf32>
    %c29 = arith.constant 29 : index
    %c0_297 = arith.constant 0 : index
    %c0_298 = arith.constant 0 : index
    %394 = vector.load %arg5[%c29, %c0_297, %c0_298] : memref<36x8x8xf32, #tpu.memory_space<vmem>>, vector<1x8x8xf32>
    %395 = vector.shape_cast %394 : vector<1x8x8xf32> to vector<8x8xf32>
    %cst_299 = arith.constant dense<0.000000e+00> : vector<8x256xf32>
    %396 = tpu.matmul %395, %393, %cst_299 {dimension_numbers = #tpu.dot_dimension_numbers<[1], [0], [0], [1], [0, 0, 1, 1], [], []>} : vector<8x8xf32>, vector<8x256xf32>, vector<8x256xf32> -> vector<8x256xf32>
    %397 = arith.addf %388, %396 : vector<8x256xf32>
    %c0_300 = arith.constant 0 : index
    %c16_301 = arith.constant 16 : index
    %398 = vector.load %arg10[%c0_300, %c16_301] : memref<8x290xf32, #tpu.memory_space<vmem>>, vector<8x256xf32>
    %cst_302 = arith.constant 0.000000e+00 : f32
    %399 = vector.shape_cast %20 : vector<1x256xi1> to vector<1x256xi1>
    %400 = vector.broadcast %399 : vector<1x256xi1> to vector<8x256xi1>
    %401 = vector.broadcast %cst_302 : f32 to vector<8x256xf32>
    %402 = arith.select %400, %398, %401 : vector<8x256xi1>, vector<8x256xf32>
    %c30 = arith.constant 30 : index
    %c0_303 = arith.constant 0 : index
    %c0_304 = arith.constant 0 : index
    %403 = vector.load %arg5[%c30, %c0_303, %c0_304] : memref<36x8x8xf32, #tpu.memory_space<vmem>>, vector<1x8x8xf32>
    %404 = vector.shape_cast %403 : vector<1x8x8xf32> to vector<8x8xf32>
    %cst_305 = arith.constant dense<0.000000e+00> : vector<8x256xf32>
    %405 = tpu.matmul %404, %402, %cst_305 {dimension_numbers = #tpu.dot_dimension_numbers<[1], [0], [0], [1], [0, 0, 1, 1], [], []>} : vector<8x8xf32>, vector<8x256xf32>, vector<8x256xf32> -> vector<8x256xf32>
    %406 = arith.addf %397, %405 : vector<8x256xf32>
    %c0_306 = arith.constant 0 : index
    %c17_307 = arith.constant 17 : index
    %407 = vector.load %arg10[%c0_306, %c17_307] : memref<8x290xf32, #tpu.memory_space<vmem>>, vector<8x256xf32>
    %c31 = arith.constant 31 : index
    %c0_308 = arith.constant 0 : index
    %c0_309 = arith.constant 0 : index
    %408 = vector.load %arg5[%c31, %c0_308, %c0_309] : memref<36x8x8xf32, #tpu.memory_space<vmem>>, vector<1x8x8xf32>
    %409 = vector.shape_cast %408 : vector<1x8x8xf32> to vector<8x8xf32>
    %cst_310 = arith.constant dense<0.000000e+00> : vector<8x256xf32>
    %410 = tpu.matmul %409, %407, %cst_310 {dimension_numbers = #tpu.dot_dimension_numbers<[1], [0], [0], [1], [0, 0, 1, 1], [], []>} : vector<8x8xf32>, vector<8x256xf32>, vector<8x256xf32> -> vector<8x256xf32>
    %411 = arith.addf %406, %410 : vector<8x256xf32>
    %c0_311 = arith.constant 0 : index
    %c18_312 = arith.constant 18 : index
    %412 = vector.load %arg10[%c0_311, %c18_312] : memref<8x290xf32, #tpu.memory_space<vmem>>, vector<8x256xf32>
    %cst_313 = arith.constant 0.000000e+00 : f32
    %413 = vector.shape_cast %22 : vector<1x256xi1> to vector<1x256xi1>
    %414 = vector.broadcast %413 : vector<1x256xi1> to vector<8x256xi1>
    %415 = vector.broadcast %cst_313 : f32 to vector<8x256xf32>
    %416 = arith.select %414, %412, %415 : vector<8x256xi1>, vector<8x256xf32>
    %c32_314 = arith.constant 32 : index
    %c0_315 = arith.constant 0 : index
    %c0_316 = arith.constant 0 : index
    %417 = vector.load %arg5[%c32_314, %c0_315, %c0_316] : memref<36x8x8xf32, #tpu.memory_space<vmem>>, vector<1x8x8xf32>
    %418 = vector.shape_cast %417 : vector<1x8x8xf32> to vector<8x8xf32>
    %cst_317 = arith.constant dense<0.000000e+00> : vector<8x256xf32>
    %419 = tpu.matmul %418, %416, %cst_317 {dimension_numbers = #tpu.dot_dimension_numbers<[1], [0], [0], [1], [0, 0, 1, 1], [], []>} : vector<8x8xf32>, vector<8x256xf32>, vector<8x256xf32> -> vector<8x256xf32>
    %420 = arith.addf %411, %419 : vector<8x256xf32>
    %c0_318 = arith.constant 0 : index
    %c32_319 = arith.constant 32 : index
    %421 = vector.load %arg10[%c0_318, %c32_319] : memref<8x290xf32, #tpu.memory_space<vmem>>, vector<8x256xf32>
    %cst_320 = arith.constant 0.000000e+00 : f32
    %422 = vector.shape_cast %20 : vector<1x256xi1> to vector<1x256xi1>
    %423 = vector.broadcast %422 : vector<1x256xi1> to vector<8x256xi1>
    %424 = vector.broadcast %cst_320 : f32 to vector<8x256xf32>
    %425 = arith.select %423, %421, %424 : vector<8x256xi1>, vector<8x256xf32>
    %c33_321 = arith.constant 33 : index
    %c0_322 = arith.constant 0 : index
    %c0_323 = arith.constant 0 : index
    %426 = vector.load %arg5[%c33_321, %c0_322, %c0_323] : memref<36x8x8xf32, #tpu.memory_space<vmem>>, vector<1x8x8xf32>
    %427 = vector.shape_cast %426 : vector<1x8x8xf32> to vector<8x8xf32>
    %cst_324 = arith.constant dense<0.000000e+00> : vector<8x256xf32>
    %428 = tpu.matmul %427, %425, %cst_324 {dimension_numbers = #tpu.dot_dimension_numbers<[1], [0], [0], [1], [0, 0, 1, 1], [], []>} : vector<8x8xf32>, vector<8x256xf32>, vector<8x256xf32> -> vector<8x256xf32>
    %429 = arith.addf %420, %428 : vector<8x256xf32>
    %c0_325 = arith.constant 0 : index
    %c33_326 = arith.constant 33 : index
    %430 = vector.load %arg10[%c0_325, %c33_326] : memref<8x290xf32, #tpu.memory_space<vmem>>, vector<8x256xf32>
    %c34_327 = arith.constant 34 : index
    %c0_328 = arith.constant 0 : index
    %c0_329 = arith.constant 0 : index
    %431 = vector.load %arg5[%c34_327, %c0_328, %c0_329] : memref<36x8x8xf32, #tpu.memory_space<vmem>>, vector<1x8x8xf32>
    %432 = vector.shape_cast %431 : vector<1x8x8xf32> to vector<8x8xf32>
    %cst_330 = arith.constant dense<0.000000e+00> : vector<8x256xf32>
    %433 = tpu.matmul %432, %430, %cst_330 {dimension_numbers = #tpu.dot_dimension_numbers<[1], [0], [0], [1], [0, 0, 1, 1], [], []>} : vector<8x8xf32>, vector<8x256xf32>, vector<8x256xf32> -> vector<8x256xf32>
    %434 = arith.addf %429, %433 : vector<8x256xf32>
    %c0_331 = arith.constant 0 : index
    %c34_332 = arith.constant 34 : index
    %435 = vector.load %arg10[%c0_331, %c34_332] : memref<8x290xf32, #tpu.memory_space<vmem>>, vector<8x256xf32>
    %cst_333 = arith.constant 0.000000e+00 : f32
    %436 = vector.shape_cast %22 : vector<1x256xi1> to vector<1x256xi1>
    %437 = vector.broadcast %436 : vector<1x256xi1> to vector<8x256xi1>
    %438 = vector.broadcast %cst_333 : f32 to vector<8x256xf32>
    %439 = arith.select %437, %435, %438 : vector<8x256xi1>, vector<8x256xf32>
    %c35 = arith.constant 35 : index
    %c0_334 = arith.constant 0 : index
    %c0_335 = arith.constant 0 : index
    %440 = vector.load %arg5[%c35, %c0_334, %c0_335] : memref<36x8x8xf32, #tpu.memory_space<vmem>>, vector<1x8x8xf32>
    %441 = vector.shape_cast %440 : vector<1x8x8xf32> to vector<8x8xf32>
    %cst_336 = arith.constant dense<0.000000e+00> : vector<8x256xf32>
    %442 = tpu.matmul %441, %439, %cst_336 {dimension_numbers = #tpu.dot_dimension_numbers<[1], [0], [0], [1], [0, 0, 1, 1], [], []>} : vector<8x8xf32>, vector<8x256xf32>, vector<8x256xf32> -> vector<8x256xf32>
    %443 = arith.addf %434, %442 : vector<8x256xf32>
    %444 = vector.broadcast %372 : vector<8x1xf32> to vector<8x256xf32>
    %445 = arith.addf %443, %444 : vector<8x256xf32>
    %446 = arith.addf %275, %445 : vector<8x256xf32>
    %c0_337 = arith.constant 0 : index
    %c0_338 = arith.constant 0 : index
    %c0_339 = arith.constant 0 : index
    %447 = vector.load %arg9[%c0_337, %c0_338, %c0_339] : memref<1x8x256xf32, #tpu.memory_space<vmem>>, vector<1x8x256xf32>
    %448 = vector.shape_cast %447 : vector<1x8x256xf32> to vector<8x256xf32>
    %449 = vector.shape_cast %446 : vector<8x256xf32> to vector<1x8x256xf32>
    tpu.vector_store %arg9[%c0_337, %c0_338, %c0_339], %449 {strides = array<i32>} : memref<1x8x256xf32, #tpu.memory_space<vmem>>, vector<1x8x256xf32>,
    return
  }
  func.func @transform_0(%arg0: i32) -> (i32, i32, i32) {
    %c0_i32 = arith.constant 0 : i32
    %c0_i32_0 = arith.constant 0 : i32
    %c0_i32_1 = arith.constant 0 : i32
    return %arg0, %c0_i32, %c0_i32_0 : i32, i32, i32
  }
  func.func @transform_1(%arg0: i32) -> (i32, i32, i32) {
    %c0_i32 = arith.constant 0 : i32
    %c0_i32_0 = arith.constant 0 : i32
    %c0_i32_1 = arith.constant 0 : i32
    return %arg0, %c0_i32, %c0_i32_0 : i32, i32, i32
  }
  func.func @transform_2(%arg0: i32) -> (i32, i32) {
    %c0_i32 = arith.constant 0 : i32
    %c0_i32_0 = arith.constant 0 : i32
    %c0_i32_1 = arith.constant 0 : i32
    return %c0_i32, %c0_i32_0 : i32, i32
  }
  func.func @transform_3(%arg0: i32) -> (i32, i32, i32) {
    %c0_i32 = arith.constant 0 : i32
    %c0_i32_0 = arith.constant 0 : i32
    %c0_i32_1 = arith.constant 0 : i32
    %c0_i32_2 = arith.constant 0 : i32
    return %c0_i32, %c0_i32_0, %c0_i32_1 : i32, i32, i32
  }
  func.func @transform_4(%arg0: i32) -> (i32, i32, i32) {
    %c0_i32 = arith.constant 0 : i32
    %c0_i32_0 = arith.constant 0 : i32
    %c0_i32_1 = arith.constant 0 : i32
    %c0_i32_2 = arith.constant 0 : i32
    return %c0_i32, %c0_i32_0, %c0_i32_1 : i32, i32, i32
  }
  func.func @transform_5(%arg0: i32) -> (i32, i32, i32) {
    %c0_i32 = arith.constant 0 : i32
    %c0_i32_0 = arith.constant 0 : i32
    %c0_i32_1 = arith.constant 0 : i32
    %c0_i32_2 = arith.constant 0 : i32
    return %c0_i32, %c0_i32_0, %c0_i32_1 : i32, i32, i32
  }
  func.func @transform_6(%arg0: i32) -> (i32, i32, i32) {
    %c0_i32 = arith.constant 0 : i32
    %c0_i32_0 = arith.constant 0 : i32
    %c0_i32_1 = arith.constant 0 : i32
    %c0_i32_2 = arith.constant 0 : i32
    return %c0_i32, %c0_i32_0, %c0_i32_1 : i32, i32, i32
  }
  func.func @transform_7(%arg0: i32) -> (i32, i32, i32) {
    %c0_i32 = arith.constant 0 : i32
    %c0_i32_0 = arith.constant 0 : i32
    %c0_i32_1 = arith.constant 0 : i32
    %c0_i32_2 = arith.constant 0 : i32
    return %c0_i32, %c0_i32_0, %c0_i32_1 : i32, i32, i32
  }
  func.func @transform_8(%arg0: i32) -> (i32, i32, i32) {
    %c0_i32 = arith.constant 0 : i32
    %c0_i32_0 = arith.constant 0 : i32
    %c0_i32_1 = arith.constant 0 : i32
    return %arg0, %c0_i32, %c0_i32_0 : i32, i32, i32
  }
}

</mosaic_0001>

<llo_original>
// kernel: refinement_module_forward.1
$region0: #{refinement_module_forward.1}
  #allocation0 [shape = 'u32[]', space=smem, size = 0x4, offset = 0x4, fixed_abs, tag = 'smem constant byte address 0x4 - core index']
  #allocation1 [shape = 'u32[144,128]{1,0:T(1,128)}', space=vmem, size = 0x12000, scoped, tag = 'internal scratch']
  #allocation2 [shape = 'f32[8,290]{1,0:T(8,128)}', space=vmem, size = 0x3000, scoped, tag = 'scratch operand']
  %s0 = inlined_call_operand.vmem [shape: f32[2,8,64], index: 0, kind: input, shape index: {}]
  %s1 = inlined_call_operand.vmem [shape: f32[2,4,256], index: 1, kind: input, shape index: {}]
  %s2 = inlined_call_operand.vmem [shape: f32[64,256], index: 2, kind: input, shape index: {}]
  %s3 = inlined_call_operand.vmem [shape: f32[9,8,4], index: 3, kind: input, shape index: {}]
  %s4 = inlined_call_operand.vmem [shape: f32[36,8,8], index: 4, kind: input, shape index: {}]
  %s5 = inlined_call_operand.vmem [shape: f32[5,8,1], index: 5, kind: input, shape index: {}]
  %s6 = inlined_call_operand.vmem [shape: f32[4,8,1], index: 6, kind: input, shape index: {}]
  %s7 = inlined_call_operand.vmem [shape: f32[4,8,1], index: 7, kind: input, shape index: {}]
  %s8 = inlined_call_operand.vmem [shape: f32[2,8,256], index: 8, kind: output, shape index: {}]
  %s9 = sld [smem:[#allocation0]]
  $region65: #{refinement_module_forward.1} parent=0
    _
  %s11 = ssub.s32 1, %s9
  %s12 = scalar_select 0, %s11, %s9
  loop: start=0, step=1, limit=4
  $region2: #{refinement_module_forward.1} parent=0 // loop_pre_header
    _
  $region3: #{refinement_module_forward.1} parent=0 // loop_header
    %s14 = sphi 0, %s18
    %p15 = scmp.ge.s32.totalorder %s14, 4
    %s24 = sphi 0, %s26
    %s27 = sphi 0, %s24
    %s28 = sphi 0, %s27
    %s44 = sphi 0, %s28
    %s50 = sphi 0, %s52
    %s53 = sphi 0, %s50
    %s54 = sphi 0, %s53
    %s70 = sphi 0, %s54
    %s74 = sphi 0, %s74
    %s76 = sphi 0, %s74
    %s77 = sphi 0, %s76
    %s91 = sphi 0, %s77
    %s95 = sphi 0, %s95
    %s97 = sphi 0, %s95
    %s98 = sphi 0, %s97
    %s112 = sphi 0, %s98
    %s116 = sphi 0, %s116
    %s118 = sphi 0, %s116
    %s119 = sphi 0, %s118
    %s133 = sphi 0, %s119
    %s137 = sphi 0, %s137
    %s139 = sphi 0, %s137
    %s140 = sphi 0, %s139
    %s154 = sphi 0, %s140
    %s158 = sphi 0, %s158
    %s160 = sphi 0, %s158
    %s161 = sphi 0, %s160
    %s175 = sphi 0, %s161
    %s179 = sphi 0, %s179
    %s181 = sphi 0, %s179
    %s182 = sphi 0, %s181
    %s196 = sphi 0, %s182
    %s202 = sphi 0, %s204
    %s205 = sphi 0, %s202
    %s206 = sphi 0, %s205
    %s222 = sphi 0, %s206
  $region4: #{refinement_module_forward.1} parent=0 // loop_header_branch
    %17 = sbr.rel (%p15) target = $region8
  $region5: #{refinement_module_forward.1} parent=0 // loop_body
    %s19 = ssub.s32 %s14, 1
    %s20 = ssub.s32 %s14, 2
    %s21 = sadd.s32 %s14, 1
    %s22 = ssub.s32 %s14, %s21
    %p23 = scmp.eq.s32.totalorder %s22, 0
    %s25 = sadd.s32 %s24, 1
    %s26 = scalar_select %p23, %s24, %s25
    %p29 = pneg %p23
    %p30 = scmp.eq.s32.totalorder %s14, 1
    %p31 = por %p29, %p30
    %p32 = scmp.ne.s32.totalorder %s24, %s27
    %p33 = scmp.eq.s32.totalorder %s14, 0
    %p34 = por %p32, %p33
    %p35 = scmp.ne.s32.totalorder %s24, %s27
    %p36 = scmp.eq.s32.totalorder %s19, 1
    %p37 = por %p35, %p36
    %p38 = scmp.ne.s32.totalorder %s27, %s28
    %p39 = scmp.eq.s32.totalorder %s19, 0
    %p40 = por %p38, %p39
    %p41 = scmp.ne.s32.totalorder %s27, %s28
    %p42 = scmp.eq.s32.totalorder %s20, 1
    %p43 = por %p41, %p42
    %p45 = scmp.ne.s32.totalorder %s28, %s44
    %p46 = scmp.eq.s32.totalorder %s20, 0
    %p47 = por %p45, %p46
    %s48 = ssub.s32 %s14, %s21
    %p49 = scmp.eq.s32.totalorder %s48, 0
    %s51 = sadd.s32 %s50, 1
    %s52 = scalar_select %p49, %s50, %s51
    %p55 = pneg %p49
    %p56 = scmp.eq.s32.totalorder %s14, 1
    %p57 = por %p55, %p56
    %p58 = scmp.ne.s32.totalorder %s50, %s53
    %p59 = scmp.eq.s32.totalorder %s14, 0
    %p60 = por %p58, %p59
    %p61 = scmp.ne.s32.totalorder %s50, %s53
    %p62 = scmp.eq.s32.totalorder %s19, 1
    %p63 = por %p61, %p62
    %p64 = scmp.ne.s32.totalorder %s53, %s54
    %p65 = scmp.eq.s32.totalorder %s19, 0
    %p66 = por %p64, %p65
    %p67 = scmp.ne.s32.totalorder %s53, %s54
    %p68 = scmp.eq.s32.totalorder %s20, 1
    %p69 = por %p67, %p68
    %p71 = scmp.ne.s32.totalorder %s54, %s70
    %p72 = scmp.eq.s32.totalorder %s20, 0
    %p73 = por %p71, %p72
    %s75 = sadd.s32 %s74, 1
    %p78 = scmp.eq.s32.totalorder %s14, 1
    %p79 = scmp.ne.s32.totalorder %s74, %s76
    %p80 = scmp.eq.s32.totalorder %s14, 0
    %p81 = por %p79, %p80
    %p82 = scmp.ne.s32.totalorder %s74, %s76
    %p83 = scmp.eq.s32.totalorder %s19, 1
    %p84 = por %p82, %p83
    %p85 = scmp.ne.s32.totalorder %s76, %s77
    %p86 = scmp.eq.s32.totalorder %s19, 0
    %p87 = por %p85, %p86
    %p88 = scmp.ne.s32.totalorder %s76, %s77
    %p89 = scmp.eq.s32.totalorder %s20, 1
    %p90 = por %p88, %p89
    %p92 = scmp.ne.s32.totalorder %s77, %s91
    %p93 = scmp.eq.s32.totalorder %s20, 0
    %p94 = por %p92, %p93
    %s96 = sadd.s32 %s95, 1
    %p99 = scmp.eq.s32.totalorder %s14, 1
    %p100 = scmp.ne.s32.totalorder %s95, %s97
    %p101 = scmp.eq.s32.totalorder %s14, 0
    %p102 = por %p100, %p101
    %p103 = scmp.ne.s32.totalorder %s95, %s97
    %p104 = scmp.eq.s32.totalorder %s19, 1
    %p105 = por %p103, %p104
    %p106 = scmp.ne.s32.totalorder %s97, %s98
    %p107 = scmp.eq.s32.totalorder %s19, 0
    %p108 = por %p106, %p107
    %p109 = scmp.ne.s32.totalorder %s97, %s98
    %p110 = scmp.eq.s32.totalorder %s20, 1
    %p111 = por %p109, %p110
    %p113 = scmp.ne.s32.totalorder %s98, %s112
    %p114 = scmp.eq.s32.totalorder %s20, 0
    %p115 = por %p113, %p114
    %s117 = sadd.s32 %s116, 1
    %p120 = scmp.eq.s32.totalorder %s14, 1
    %p121 = scmp.ne.s32.totalorder %s116, %s118
    %p122 = scmp.eq.s32.totalorder %s14, 0
    %p123 = por %p121, %p122
    %p124 = scmp.ne.s32.totalorder %s116, %s118
    %p125 = scmp.eq.s32.totalorder %s19, 1
    %p126 = por %p124, %p125
    %p127 = scmp.ne.s32.totalorder %s118, %s119
    %p128 = scmp.eq.s32.totalorder %s19, 0
    %p129 = por %p127, %p128
    %p130 = scmp.ne.s32.totalorder %s118, %s119
    %p131 = scmp.eq.s32.totalorder %s20, 1
    %p132 = por %p130, %p131
    %p134 = scmp.ne.s32.totalorder %s119, %s133
    %p135 = scmp.eq.s32.totalorder %s20, 0
    %p136 = por %p134, %p135
    %s138 = sadd.s32 %s137, 1
    %p141 = scmp.eq.s32.totalorder %s14, 1
    %p142 = scmp.ne.s32.totalorder %s137, %s139
    %p143 = scmp.eq.s32.totalorder %s14, 0
    %p144 = por %p142, %p143
    %p145 = scmp.ne.s32.totalorder %s137, %s139
    %p146 = scmp.eq.s32.totalorder %s19, 1
    %p147 = por %p145, %p146
    %p148 = scmp.ne.s32.totalorder %s139, %s140
    %p149 = scmp.eq.s32.totalorder %s19, 0
    %p150 = por %p148, %p149
    %p151 = scmp.ne.s32.totalorder %s139, %s140
    %p152 = scmp.eq.s32.totalorder %s20, 1
    %p153 = por %p151, %p152
    %p155 = scmp.ne.s32.totalorder %s140, %s154
    %p156 = scmp.eq.s32.totalorder %s20, 0
    %p157 = por %p155, %p156
    %s159 = sadd.s32 %s158, 1
    %p162 = scmp.eq.s32.totalorder %s14, 1
    %p163 = scmp.ne.s32.totalorder %s158, %s160
    %p164 = scmp.eq.s32.totalorder %s14, 0
    %p165 = por %p163, %p164
    %p166 = scmp.ne.s32.totalorder %s158, %s160
    %p167 = scmp.eq.s32.totalorder %s19, 1
    %p168 = por %p166, %p167
    %p169 = scmp.ne.s32.totalorder %s160, %s161
    %p170 = scmp.eq.s32.totalorder %s19, 0
    %p171 = por %p169, %p170
    %p172 = scmp.ne.s32.totalorder %s160, %s161
    %p173 = scmp.eq.s32.totalorder %s20, 1
    %p174 = por %p172, %p173
    %p176 = scmp.ne.s32.totalorder %s161, %s175
    %p177 = scmp.eq.s32.totalorder %s20, 0
    %p178 = por %p176, %p177
    %s180 = sadd.s32 %s179, 1
    %p183 = scmp.eq.s32.totalorder %s14, 1
    %p184 = scmp.ne.s32.totalorder %s179, %s181
    %p185 = scmp.eq.s32.totalorder %s14, 0
    %p186 = por %p184, %p185
    %p187 = scmp.ne.s32.totalorder %s179, %s181
    %p188 = scmp.eq.s32.totalorder %s19, 1
    %p189 = por %p187, %p188
    %p190 = scmp.ne.s32.totalorder %s181, %s182
    %p191 = scmp.eq.s32.totalorder %s19, 0
    %p192 = por %p190, %p191
    %p193 = scmp.ne.s32.totalorder %s181, %s182
    %p194 = scmp.eq.s32.totalorder %s20, 1
    %p195 = por %p193, %p194
    %p197 = scmp.ne.s32.totalorder %s182, %s196
    %p198 = scmp.eq.s32.totalorder %s20, 0
    %p199 = por %p197, %p198
    %s200 = ssub.s32 %s14, %s21
    %p201 = scmp.eq.s32.totalorder %s200, 0
    %s203 = sadd.s32 %s202, 1
    %s204 = scalar_select %p201, %s202, %s203
    %p207 = pneg %p201
    %p208 = scmp.eq.s32.totalorder %s14, 1
    %p209 = por %p207, %p208
    %p210 = scmp.ne.s32.totalorder %s202, %s205
    %p211 = scmp.eq.s32.totalorder %s14, 0
    %p212 = por %p210, %p211
    %p213 = scmp.ne.s32.totalorder %s202, %s205
    %p214 = scmp.eq.s32.totalorder %s19, 1
    %p215 = por %p213, %p214
    %p216 = scmp.ne.s32.totalorder %s205, %s206
    %p217 = scmp.eq.s32.totalorder %s19, 0
    %p218 = por %p216, %p217
    %p219 = scmp.ne.s32.totalorder %s205, %s206
    %p220 = scmp.eq.s32.totalorder %s20, 1
    %p221 = por %p219, %p220
    %p223 = scmp.ne.s32.totalorder %s206, %s222
    %p224 = scmp.eq.s32.totalorder %s20, 0
    %p225 = por %p223, %p224
    %p226 = scmp.le.s32.totalorder 1, %s14
    %p227 = scmp.lt.s32.totalorder %s14, 3
    %p228 = pnand %p226, %p227
    %p229 = pneg %p228
    // Predicated region
    $region9: #{refinement_module_forward.1} parent=5 // pred_check
      _
    $region10: #{refinement_module_forward.1} parent=5 // pred_check_branch
      %231 = sbr.rel (%p228) target = $region12
    $region11: #{refinement_module_forward.1} parent=5 // pred_region
      %s232 = ssub.s32 %s14, 1
      // Predicated region
      $region13: #{refinement_module_forward.1} parent=11 // pred_check
        %p233 = pneg %p87
      $region14: #{refinement_module_forward.1} parent=11 // pred_check_branch
        %235 = sbr.rel (%p233) target = $region16
      $region15: #{refinement_module_forward.1} parent=11 // pred_region
        _
      $region16: #{refinement_module_forward.1} parent=11 // pred_fallthru
        _
      // Predicated region
      $region17: #{refinement_module_forward.1} parent=11 // pred_check
        %p236 = pneg %p108
      $region18: #{refinement_module_forward.1} parent=11 // pred_check_branch
        %238 = sbr.rel (%p236) target = $region20
      $region19: #{refinement_module_forward.1} parent=11 // pred_region
        _
      $region20: #{refinement_module_forward.1} parent=11 // pred_fallthru
        _
      // Predicated region
      $region21: #{refinement_module_forward.1} parent=11 // pred_check
        %p239 = pneg %p129
      $region22: #{refinement_module_forward.1} parent=11 // pred_check_branch
        %241 = sbr.rel (%p239) target = $region24
      $region23: #{refinement_module_forward.1} parent=11 // pred_region
        _
      $region24: #{refinement_module_forward.1} parent=11 // pred_fallthru
        _
      // Predicated region
      $region25: #{refinement_module_forward.1} parent=11 // pred_check
        %p242 = pneg %p150
      $region26: #{refinement_module_forward.1} parent=11 // pred_check_branch
        %244 = sbr.rel (%p242) target = $region28
      $region27: #{refinement_module_forward.1} parent=11 // pred_region
        _
      $region28: #{refinement_module_forward.1} parent=11 // pred_fallthru
        _
      // Predicated region
      $region29: #{refinement_module_forward.1} parent=11 // pred_check
        %p245 = pneg %p171
      $region30: #{refinement_module_forward.1} parent=11 // pred_check_branch
        %247 = sbr.rel (%p245) target = $region32
      $region31: #{refinement_module_forward.1} parent=11 // pred_region
        _
      $region32: #{refinement_module_forward.1} parent=11 // pred_fallthru
        _
      // Predicated region
      $region33: #{refinement_module_forward.1} parent=11 // pred_check
        %p248 = pneg %p192
      $region34: #{refinement_module_forward.1} parent=11 // pred_check_branch
        %250 = sbr.rel (%p248) target = $region36
      $region35: #{refinement_module_forward.1} parent=11 // pred_region
        _
      $region36: #{refinement_module_forward.1} parent=11 // pred_fallthru
        _
    $region12: #{refinement_module_forward.1} parent=5 // pred_fallthru
      _
    %p251 = scmp.lt.s32.totalorder %s14, 2
    // Predicated region
    $region37: #{refinement_module_forward.1} parent=5 // pred_check
      %p252 = pneg %p251
    $region38: #{refinement_module_forward.1} parent=5 // pred_check_branch
      %254 = sbr.rel (%p252) target = $region40
    $region39: #{refinement_module_forward.1} parent=5 // pred_region
      // Predicated region
      $region41: #{refinement_module_forward.1} parent=39 // pred_check
        %p255 = pneg %p34
      $region42: #{refinement_module_forward.1} parent=39 // pred_check_branch
        %257 = sbr.rel (%p255) target = $region44
      $region43: #{refinement_module_forward.1} parent=39 // pred_region
        %p258 = scmp.lt.s32.totalorder %s14, 1
        %s259 = scalar_select %p258, %s14, 1
        %s260 = smul.addr %s259, 8
        %s261 = scalar_lea.vmem %s0, %s260
      $region44: #{refinement_module_forward.1} parent=39 // pred_fallthru
        _
      // Predicated region
      $region45: #{refinement_module_forward.1} parent=39 // pred_check
        %p262 = pneg %p60
      $region46: #{refinement_module_forward.1} parent=39 // pred_check_branch
        %264 = sbr.rel (%p262) target = $region48
      $region47: #{refinement_module_forward.1} parent=39 // pred_region
        %p265 = scmp.lt.s32.totalorder %s14, 1
        %s266 = scalar_select %p265, %s14, 1
        %s267 = smul.addr %s266, 2
        %s268 = smul.addr %s267, 4
        %s269 = scalar_lea.vmem %s1, %s268
      $region48: #{refinement_module_forward.1} parent=39 // pred_fallthru
        _
    $region40: #{refinement_module_forward.1} parent=5 // pred_fallthru
      _
    %p270 = scmp.le.s32.totalorder 1, %s14
    %p271 = scmp.lt.s32.totalorder %s14, 3
    %p272 = pnand %p270, %p271
    %p273 = pneg %p272
    // Predicated region
    $region49: #{refinement_module_forward.1} parent=5 // pred_check
      _
    $region50: #{refinement_module_forward.1} parent=5 // pred_check_branch
      %275 = sbr.rel (%p272) target = $region52
    $region51: #{refinement_module_forward.1} parent=5 // pred_region
      %s276 = ssub.s32 %s14, 1
      %p277 = scmp.lt.s32.totalorder %s19, 1
      %s278 = scalar_select %p277, %s19, 1
      %s279 = smul.addr %s278, 8
      %s280 = scalar_lea.vmem %s0, %s279
      %p281 = pneg %p40
      %p282 = pneg %p37
      %p283 = scmp.lt.s32.totalorder %s19, 1
      %s284 = scalar_select %p283, %s19, 1
      %s285 = smul.addr %s284, 2
      %s286 = smul.addr %s285, 4
      %s287 = scalar_lea.vmem %s1, %s286
      %p288 = pneg %p66
      %p289 = pneg %p63
      %p290 = pneg %p87
      %p291 = pneg %p84
      %p292 = pneg %p108
      %p293 = pneg %p105
      %p294 = pneg %p129
      %p295 = pneg %p126
      %p296 = pneg %p150
      %p297 = pneg %p147
      %p298 = pneg %p171
      %p299 = pneg %p168
      %p300 = pneg %p192
      %p301 = pneg %p189
      %p302 = pneg %p218
      %p303 = pneg %p215
      %p304 = scmp.lt.s32.totalorder %s19, 1
      %s305 = scalar_select %p304, %s19, 1
      %s306 = smul.addr %s305, 2
      %s307 = smul.addr %s306, 8
      %s308 = scalar_lea.vmem %s8, %s307
      %p309 = scmp.lt.s32.totalorder %s19, 1
      %s310 = scalar_select %p309, %s19, 1
      %s311 = smul.addr %s310, 8
      %s312 = scalar_lea.vmem %s0, %s311
      %p313 = scmp.lt.s32.totalorder %s19, 1
      %s314 = scalar_select %p313, %s19, 1
      %s315 = smul.addr %s314, 2
      %s316 = smul.addr %s315, 4
      %s317 = scalar_lea.vmem %s1, %s316
      %p318 = scmp.lt.s32.totalorder %s19, 1
      %s319 = scalar_select %p318, %s19, 1
      %s320 = smul.addr %s319, 2
      %s321 = smul.addr %s320, 8
      %s322 = scalar_lea.vmem %s8, %s321
      %323 = vst [vmem:[#allocation2] sm:$0xff] 0.0
      %324 = vst [vmem:[#allocation2 + $0x8] sm:$0xff] 0.0
      %vm325 = vcmask 277504
      %326 = vst.msk [vmem:[#allocation2 + $0x10] sm:$0xff] %vm325, 0.0
      %v327 = vlaneseq
      %v328 = vand.u32 %v327, 127
      %v329 = vadd.s32 %v328, 128
      %vm330 = vcmp.lt.s32.totalorder %v328, 0
      %v331 = vsub.s32 0, %v328
      %v332 = vsel %vm330, %v331, %v328
      %v333 = vshrl.u32 %v332, 4
      %v334 = vand.u32 %v332, 15
      %v335 = vsub.s32 0, %v334
      %v336 = vsel %vm330, %v335, %v334
      %vm337 = vcmp.lt.s32.totalorder %v329, 0
      %v338 = vsub.s32 0, %v329
      %v339 = vsel %vm337, %v338, %v329
      %v340 = vshrl.u32 %v339, 4
      %v341 = vand.u32 %v339, 15
      %v342 = vsub.s32 0, %v341
      %v343 = vsel %vm337, %v342, %v341
      %vm344 = vcmp.ne.s32.totalorder %v336, 0
      %vm345 = vcmp.ne.s32.totalorder %v343, 0
      %vm346 = vcmp.lt.s32.totalorder %v336, 0
      %vm347 = vcmp.lt.s32.totalorder %v343, 0
      %vm348 = vmand %vm346, %vm344
      %vm349 = vmand %vm347, %vm345
      %v350 = vadd.s32 %v336, 16
      %v351 = vadd.s32 %v343, 16
      %v352 = vsel %vm348, %v350, %v336
      %v353 = vsel %vm349, %v351, %v343
      %vm354 = vcmp.ge.s32.totalorder %v352, 1
      %vm355 = vcmp.ge.s32.totalorder %v353, 1
      %vm356 = vcmp.le.s32.totalorder %v352, 14
      %vm357 = vcmp.le.s32.totalorder %v353, 14
      %v358 = vld [vmem:[%s312] sm:$0xff]
      %v359 = vld [vmem:[%s2] sm:$0xff]
      %v360 = vld [vmem:[%s2 + $0x8] sm:$0xff]
      %v361 = vld [vmem:[%s2 + $0x10] sm:$0xff]
      %v362 = vld [vmem:[%s2 + $0x18] sm:$0xff]
      %v363 = vld [vmem:[%s2 + $0x20] sm:$0xff]
      %v364 = vld [vmem:[%s2 + $0x28] sm:$0xff]
      %v365 = vld [vmem:[%s2 + $0x30] sm:$0xff]
      %v366 = vld [vmem:[%s2 + $0x38] sm:$0xff]
      %v367 = vld [vmem:[%s2 + $0x40] sm:$0xff]
      %v368 = vld [vmem:[%s2 + $0x48] sm:$0xff]
      %v369 = vld [vmem:[%s2 + $0x50] sm:$0xff]
      %v370 = vld [vmem:[%s2 + $0x58] sm:$0xff]
      %v371 = vld [vmem:[%s2 + $0x60] sm:$0xff]
      %v372 = vld [vmem:[%s2 + $0x68] sm:$0xff]
      %v373 = vld [vmem:[%s2 + $0x70] sm:$0xff]
      %v374 = vld [vmem:[%s2 + $0x78] sm:$0xff]
      %v375 = vld [vmem:[%s317] sm:$0xff]
      %v376 = vld [vmem:[%s5] sm:$0xff]
      %v378 = vcombine.high %v375, %v375
      %379 = vrot.lane.b32.xlu0 %v375, 17
      %v380 = vpop.permute.xlu0 %379
      %381 = vrot.lane.b32.xlu0 %v378, 17
      %v382 = vpop.permute.xlu0 %381
      %vm383 = vcmask 138240
      %v384 = vsel %vm383, %v380, %v382
      %vm388 = vcmask 1043592
      %389 = vst.msk [vmem:[#allocation2] sm:$0xf] %vm388, %v380
      %390 = vst [vmem:[#allocation2 + $0x8] sm:$0xf] %v384
      %vm391 = vcmask 134144
      %392 = vst.msk [vmem:[#allocation2 + $0x10] sm:$0xf] %vm391, %v382
      %v393 = vld [vmem:[#allocation2] sm:$0xf]
      %v394 = vld [vmem:[#allocation2 + $0x8] sm:$0xf]
      %v395 = vsel %vm354, 1, 0
      %v396 = vsel %vm355, 1, 0
      %vm397 = vcmp.eq.s32.totalorder %v395, 1
      %vm398 = vcmp.eq.s32.totalorder %v396, 1
      %v399 = vsel %vm397, %v393, 0.0
      %v400 = vsel %vm398, %v394, 0.0
      %v401 = vld [vmem:[%s3] sm:$0xff]
      %v402 = vld [vmem:[#allocation2 + $0x10] sm:$0xf]
      %s403 = scalar_lea.vmem %s3, 8
      %v404 = vld [vmem:[%s403] sm:$0xff]
      %408 = vrot.lane.b32.xlu0 %v393, 127
      %v409 = vpop.permute.xlu0 %408
      %410 = vrot.lane.b32.xlu0 %v394, 127
      %v411 = vpop.permute.xlu0 %410
      %412 = vrot.lane.b32.xlu0 %v402, 127
      %v413 = vpop.permute.xlu0 %412
      %vm414 = vcmask 1039360
      %v415 = vsel %vm414, %v409, %v411
      %v416 = vsel %vm414, %v411, %v413
      %vm417 = vcmask 31744
      %v419 = vsel %vm417, %v404, 0
      %vm421 = vcmask 1043456
      %v422 = vsel %vm421, %v415, 0
      %v424 = vsel %vm421, %v416, 0
      %426 = vmatprep.subr.mxu0 %v424
      %427 = vmatpush1.msra.mxu0 %v422
      %428 = vmatprep.subr.mxu0 0.0
      %429 = vmatpush1.msra.mxu0 0.0
      %430 = vmatprep.subr.mxu0 0.0
      %431 = vmatpush1.msra.mxu0 0.0
      %432 = vmatprep.subr.mxu0 0.0
      %433 = vmatpush1.msra.mxu0 0.0
      %434 = vmatprep.subr.mxu0 0.0
      %435 = vmatpush1.msra.mxu0 0.0
      %436 = vmatprep.subr.mxu0 0.0
      %437 = vmatpush1.msra.mxu0 0.0
      %438 = vmatprep.subr.mxu0 0.0
      %439 = vmatpush1.msra.mxu0 0.0
      %440 = vmatprep.subr.mxu0 0.0
      %441 = vmatpush1.msra.mxu0 0.0
      %442 = vmatprep.subr.mxu0 0.0
      %443 = vmatpush1.msra.mxu0 0.0
      %444 = vmatprep.subr.mxu0 0.0
      %445 = vmatpush1.msra.mxu0 0.0
      %446 = vmatprep.subr.mxu0 0.0
      %447 = vmatpush1.msra.mxu0 0.0
      %448 = vmatprep.subr.mxu0 0.0
      %449 = vmatpush1.msra.mxu0 0.0
      %450 = vmatprep.subr.mxu0 0.0
      %451 = vmatpush1.msra.mxu0 0.0
      %452 = vmatprep.subr.mxu0 0.0
      %453 = vmatpush1.msra.mxu0 0.0
      %454 = vmatprep.subr.mxu0 0.0
      %455 = vmatpush1.msra.mxu0 0.0
      %456 = vmatprep.subr.mxu0 0.0
      %457 = vmatpush1.msra.mxu0 0.0
      %458 = vmatprep.subr.mxu0 0.0
      %459 = vmatpush1.msra.mxu0 0.0
      %460 = vmatprep.subr.mxu0 0.0
      %461 = vmatpush1.msra.mxu0 0.0
      %462 = vmatprep.subr.mxu0 0.0
      %463 = vmatpush1.msra.mxu0 0.0
      %464 = vmatprep.subr.mxu0 0.0
      %465 = vmatpush1.msra.mxu0 0.0
      %466 = vmatprep.subr.mxu0 0.0
      %467 = vmatpush1.msra.mxu0 0.0
      %468 = vmatprep.subr.mxu0 0.0
      %469 = vmatpush1.msra.mxu0 0.0
      %470 = vmatprep.subr.mxu0 0.0
      %471 = vmatpush1.msra.mxu0 0.0
      %472 = vmatprep.subr.mxu0 0.0
      %473 = vmatpush1.msra.mxu0 0.0
      %474 = vmatprep.subr.mxu0 0.0
      %475 = vmatpush1.msra.mxu0 0.0
      %476 = vmatprep.subr.mxu0 0.0
      %477 = vmatpush1.msra.mxu0 0.0
      %478 = vmatprep.subr.mxu0 0.0
      %479 = vmatpush1.msra.mxu0 0.0
      %480 = vmatprep.subr.mxu0 0.0
      %481 = vmatpush1.msra.mxu0 0.0
      %482 = vmatprep.subr.mxu0 0.0
      %483 = vmatpush1.msra.mxu0 0.0
      %484 = vmatprep.subr.mxu0 0.0
      %485 = vmatpush1.msra.mxu0 0.0
      %486 = vmatprep.subr.mxu0 0.0
      %487 = vmatpush1.msra.mxu0 0.0
      %488 = vmatprep.subr.mxu0 0.0
      %489 = vmatpush1.msra.mxu0 0.0
      %490 = vmatprep.mubr.f32.mxu0 0.0
      %491 = vmatmul.mubr.f32.gmra.mrb[0].mxu0 %v419
      %v492 = vpop.f32.mrb[0].mxu0
      %v493 = vadd.f32 0.0, %v492
      %v494 = vpop.f32.mrb[0].mxu0
      %v495 = vadd.f32 0.0, %v494
      %496 = vdwg.mxu0
      %v498 = vsel %vm417, %v401, 0
      %v501 = vsel %vm421, %v399, 0
      %v504 = vsel %vm421, %v400, 0
      %506 = vmatprep.subr.mxu0 %v504
      %507 = vmatpush1.msra.mxu0 %v501
      %508 = vmatprep.subr.mxu0 0.0
      %509 = vmatpush1.msra.mxu0 0.0
      %510 = vmatprep.subr.mxu0 0.0
      %511 = vmatpush1.msra.mxu0 0.0
      %512 = vmatprep.subr.mxu0 0.0
      %513 = vmatpush1.msra.mxu0 0.0
      %514 = vmatprep.subr.mxu0 0.0
      %515 = vmatpush1.msra.mxu0 0.0
      %516 = vmatprep.subr.mxu0 0.0
      %517 = vmatpush1.msra.mxu0 0.0
      %518 = vmatprep.subr.mxu0 0.0
      %519 = vmatpush1.msra.mxu0 0.0
      %520 = vmatprep.subr.mxu0 0.0
      %521 = vmatpush1.msra.mxu0 0.0
      %522 = vmatprep.subr.mxu0 0.0
      %523 = vmatpush1.msra.mxu0 0.0
      %524 = vmatprep.subr.mxu0 0.0
      %525 = vmatpush1.msra.mxu0 0.0
      %526 = vmatprep.subr.mxu0 0.0
      %527 = vmatpush1.msra.mxu0 0.0
      %528 = vmatprep.subr.mxu0 0.0
      %529 = vmatpush1.msra.mxu0 0.0
      %530 = vmatprep.subr.mxu0 0.0
      %531 = vmatpush1.msra.mxu0 0.0
      %532 = vmatprep.subr.mxu0 0.0
      %533 = vmatpush1.msra.mxu0 0.0
      %534 = vmatprep.subr.mxu0 0.0
      %535 = vmatpush1.msra.mxu0 0.0
      %536 = vmatprep.subr.mxu0 0.0
      %537 = vmatpush1.msra.mxu0 0.0
      %538 = vmatprep.subr.mxu0 0.0
      %539 = vmatpush1.msra.mxu0 0.0
      %540 = vmatprep.subr.mxu0 0.0
      %541 = vmatpush1.msra.mxu0 0.0
      %542 = vmatprep.subr.mxu0 0.0
      %543 = vmatpush1.msra.mxu0 0.0
      %544 = vmatprep.subr.mxu0 0.0
      %545 = vmatpush1.msra.mxu0 0.0
      %546 = vmatprep.subr.mxu0 0.0
      %547 = vmatpush1.msra.mxu0 0.0
      %548 = vmatprep.subr.mxu0 0.0
      %549 = vmatpush1.msra.mxu0 0.0
      %550 = vmatprep.subr.mxu0 0.0
      %551 = vmatpush1.msra.mxu0 0.0
      %552 = vmatprep.subr.mxu0 0.0
      %553 = vmatpush1.msra.mxu0 0.0
      %554 = vmatprep.subr.mxu0 0.0
      %555 = vmatpush1.msra.mxu0 0.0
      %556 = vmatprep.subr.mxu0 0.0
      %557 = vmatpush1.msra.mxu0 0.0
      %558 = vmatprep.subr.mxu0 0.0
      %559 = vmatpush1.msra.mxu0 0.0
      %560 = vmatprep.subr.mxu0 0.0
      %561 = vmatpush1.msra.mxu0 0.0
      %562 = vmatprep.subr.mxu0 0.0
      %563 = vmatpush1.msra.mxu0 0.0
      %564 = vmatprep.subr.mxu0 0.0
      %565 = vmatpush1.msra.mxu0 0.0
      %566 = vmatprep.subr.mxu0 0.0
      %567 = vmatpush1.msra.mxu0 0.0
      %568 = vmatprep.subr.mxu0 0.0
      %569 = vmatpush1.msra.mxu0 0.0
      %570 = vmatprep.mubr.f32.mxu0 0.0
      %571 = vmatmul.mubr.f32.gmra.mrb[0].mxu0 %v498
      %v572 = vpop.f32.mrb[0].mxu0
      %v573 = vadd.f32 %v493, %v572
      %v574 = vpop.f32.mrb[0].mxu0
      %v575 = vadd.f32 %v495, %v574
      %576 = vdwg.mxu0
      %v577 = vsel %vm356, 1, 0
      %v578 = vsel %vm357, 1, 0
      %vm579 = vcmp.eq.s32.totalorder %v577, 1
      %vm580 = vcmp.eq.s32.totalorder %v578, 1
      %581 = vrot.lane.b32.xlu0 %v393, 126
      %v582 = vpop.permute.xlu0 %581
      %583 = vrot.lane.b32.xlu0 %v394, 126
      %v584 = vpop.permute.xlu0 %583
      %585 = vrot.lane.b32.xlu0 %v402, 126
      %v586 = vpop.permute.xlu0 %585
      %vm587 = vcmask 1031168
      %v588 = vsel %vm587, %v582, %v584
      %v589 = vsel %vm587, %v584, %v586
      %v592 = vsel %vm579, %v588, 0.0
      %v593 = vsel %vm580, %v589, 0.0
      %s594 = scalar_lea.vmem %s3, 16
      %v595 = vld [vmem:[%s594] sm:$0xff]
      %v597 = vsel %vm417, %v595, 0
      %v600 = vsel %vm421, %v592, 0
      %v603 = vsel %vm421, %v593, 0
      %605 = vmatprep.subr.mxu0 %v603
      %606 = vmatpush1.msra.mxu0 %v600
      %607 = vmatprep.subr.mxu0 0.0
      %608 = vmatpush1.msra.mxu0 0.0
      %609 = vmatprep.subr.mxu0 0.0
      %610 = vmatpush1.msra.mxu0 0.0
      %611 = vmatprep.subr.mxu0 0.0
      %612 = vmatpush1.msra.mxu0 0.0
      %613 = vmatprep.subr.mxu0 0.0
      %614 = vmatpush1.msra.mxu0 0.0
      %615 = vmatprep.subr.mxu0 0.0
      %616 = vmatpush1.msra.mxu0 0.0
      %617 = vmatprep.subr.mxu0 0.0
      %618 = vmatpush1.msra.mxu0 0.0
      %619 = vmatprep.subr.mxu0 0.0
      %620 = vmatpush1.msra.mxu0 0.0
      %621 = vmatprep.subr.mxu0 0.0
      %622 = vmatpush1.msra.mxu0 0.0
      %623 = vmatprep.subr.mxu0 0.0
      %624 = vmatpush1.msra.mxu0 0.0
      %625 = vmatprep.subr.mxu0 0.0
      %626 = vmatpush1.msra.mxu0 0.0
      %627 = vmatprep.subr.mxu0 0.0
      %628 = vmatpush1.msra.mxu0 0.0
      %629 = vmatprep.subr.mxu0 0.0
      %630 = vmatpush1.msra.mxu0 0.0
      %631 = vmatprep.subr.mxu0 0.0
      %632 = vmatpush1.msra.mxu0 0.0
      %633 = vmatprep.subr.mxu0 0.0
      %634 = vmatpush1.msra.mxu0 0.0
      %635 = vmatprep.subr.mxu0 0.0
      %636 = vmatpush1.msra.mxu0 0.0
      %637 = vmatprep.subr.mxu0 0.0
      %638 = vmatpush1.msra.mxu0 0.0
      %639 = vmatprep.subr.mxu0 0.0
      %640 = vmatpush1.msra.mxu0 0.0
      %641 = vmatprep.subr.mxu0 0.0
      %642 = vmatpush1.msra.mxu0 0.0
      %643 = vmatprep.subr.mxu0 0.0
      %644 = vmatpush1.msra.mxu0 0.0
      %645 = vmatprep.subr.mxu0 0.0
      %646 = vmatpush1.msra.mxu0 0.0
      %647 = vmatprep.subr.mxu0 0.0
      %648 = vmatpush1.msra.mxu0 0.0
      %649 = vmatprep.subr.mxu0 0.0
      %650 = vmatpush1.msra.mxu0 0.0
      %651 = vmatprep.subr.mxu0 0.0
      %652 = vmatpush1.msra.mxu0 0.0
      %653 = vmatprep.subr.mxu0 0.0
      %654 = vmatpush1.msra.mxu0 0.0
      %655 = vmatprep.subr.mxu0 0.0
      %656 = vmatpush1.msra.mxu0 0.0
      %657 = vmatprep.subr.mxu0 0.0
      %658 = vmatpush1.msra.mxu0 0.0
      %659 = vmatprep.subr.mxu0 0.0
      %660 = vmatpush1.msra.mxu0 0.0
      %661 = vmatprep.subr.mxu0 0.0
      %662 = vmatpush1.msra.mxu0 0.0
      %663 = vmatprep.subr.mxu0 0.0
      %664 = vmatpush1.msra.mxu0 0.0
      %665 = vmatprep.subr.mxu0 0.0
      %666 = vmatpush1.msra.mxu0 0.0
      %667 = vmatprep.subr.mxu0 0.0
      %668 = vmatpush1.msra.mxu0 0.0
      %669 = vmatprep.mubr.f32.mxu0 0.0
      %670 = vmatmul.mubr.f32.gmra.mrb[0].mxu0 %v597
      %v671 = vpop.f32.mrb[0].mxu0
      %v672 = vadd.f32 0.0, %v671
      %v673 = vpop.f32.mrb[0].mxu0
      %v674 = vadd.f32 0.0, %v673
      %675 = vdwg.mxu0
      %v676 = vadd.f32 %v573, %v672
      %v677 = vadd.f32 %v575, %v674
      %678 = vrot.lane.b32.xlu0 %v393, 112
      %v679 = vpop.permute.xlu0 %678
      %680 = vrot.lane.b32.xlu0 %v394, 112
      %v681 = vpop.permute.xlu0 %680
      %682 = vrot.lane.b32.xlu0 %v402, 112
      %v683 = vpop.permute.xlu0 %682
      %vm684 = vcmask 916480
      %v685 = vsel %vm684, %v679, %v681
      %v686 = vsel %vm684, %v681, %v683
      %v689 = vsel %vm397, %v685, 0.0
      %v690 = vsel %vm398, %v686, 0.0
      %s691 = scalar_lea.vmem %s3, 24
      %v692 = vld [vmem:[%s691] sm:$0xff]
      %v694 = vsel %vm417, %v692, 0
      %v697 = vsel %vm421, %v689, 0
      %v700 = vsel %vm421, %v690, 0
      %702 = vmatprep.subr.mxu0 %v700
      %703 = vmatpush1.msra.mxu0 %v697
      %704 = vmatprep.subr.mxu0 0.0
      %705 = vmatpush1.msra.mxu0 0.0
      %706 = vmatprep.subr.mxu0 0.0
      %707 = vmatpush1.msra.mxu0 0.0
      %708 = vmatprep.subr.mxu0 0.0
      %709 = vmatpush1.msra.mxu0 0.0
      %710 = vmatprep.subr.mxu0 0.0
      %711 = vmatpush1.msra.mxu0 0.0
      %712 = vmatprep.subr.mxu0 0.0
      %713 = vmatpush1.msra.mxu0 0.0
      %714 = vmatprep.subr.mxu0 0.0
      %715 = vmatpush1.msra.mxu0 0.0
      %716 = vmatprep.subr.mxu0 0.0
      %717 = vmatpush1.msra.mxu0 0.0
      %718 = vmatprep.subr.mxu0 0.0
      %719 = vmatpush1.msra.mxu0 0.0
      %720 = vmatprep.subr.mxu0 0.0
      %721 = vmatpush1.msra.mxu0 0.0
      %722 = vmatprep.subr.mxu0 0.0
      %723 = vmatpush1.msra.mxu0 0.0
      %724 = vmatprep.subr.mxu0 0.0
      %725 = vmatpush1.msra.mxu0 0.0
      %726 = vmatprep.subr.mxu0 0.0
      %727 = vmatpush1.msra.mxu0 0.0
      %728 = vmatprep.subr.mxu0 0.0
      %729 = vmatpush1.msra.mxu0 0.0
      %730 = vmatprep.subr.mxu0 0.0
      %731 = vmatpush1.msra.mxu0 0.0
      %732 = vmatprep.subr.mxu0 0.0
      %733 = vmatpush1.msra.mxu0 0.0
      %734 = vmatprep.subr.mxu0 0.0
      %735 = vmatpush1.msra.mxu0 0.0
      %736 = vmatprep.subr.mxu0 0.0
      %737 = vmatpush1.msra.mxu0 0.0
      %738 = vmatprep.subr.mxu0 0.0
      %739 = vmatpush1.msra.mxu0 0.0
      %740 = vmatprep.subr.mxu0 0.0
      %741 = vmatpush1.msra.mxu0 0.0
      %742 = vmatprep.subr.mxu0 0.0
      %743 = vmatpush1.msra.mxu0 0.0
      %744 = vmatprep.subr.mxu0 0.0
      %745 = vmatpush1.msra.mxu0 0.0
      %746 = vmatprep.subr.mxu0 0.0
      %747 = vmatpush1.msra.mxu0 0.0
      %748 = vmatprep.subr.mxu0 0.0
      %749 = vmatpush1.msra.mxu0 0.0
      %750 = vmatprep.subr.mxu0 0.0
      %751 = vmatpush1.msra.mxu0 0.0
      %752 = vmatprep.subr.mxu0 0.0
      %753 = vmatpush1.msra.mxu0 0.0
      %754 = vmatprep.subr.mxu0 0.0
      %755 = vmatpush1.msra.mxu0 0.0
      %756 = vmatprep.subr.mxu0 0.0
      %757 = vmatpush1.msra.mxu0 0.0
      %758 = vmatprep.subr.mxu0 0.0
      %759 = vmatpush1.msra.mxu0 0.0
      %760 = vmatprep.subr.mxu0 0.0
      %761 = vmatpush1.msra.mxu0 0.0
      %762 = vmatprep.subr.mxu0 0.0
      %763 = vmatpush1.msra.mxu0 0.0
      %764 = vmatprep.subr.mxu0 0.0
      %765 = vmatpush1.msra.mxu0 0.0
      %766 = vmatprep.mubr.f32.mxu0 0.0
      %767 = vmatmul.mubr.f32.gmra.mrb[0].mxu0 %v694
      %v768 = vpop.f32.mrb[0].mxu0
      %v769 = vadd.f32 0.0, %v768
      %v770 = vpop.f32.mrb[0].mxu0
      %v771 = vadd.f32 0.0, %v770
      %772 = vdwg.mxu0
      %v773 = vadd.f32 %v676, %v769
      %v774 = vadd.f32 %v677, %v771
      %s775 = scalar_lea.vmem %s3, 32
      %v776 = vld [vmem:[%s775] sm:$0xff]
      %777 = vrot.lane.b32.xlu0 %v393, 111
      %v778 = vpop.permute.xlu0 %777
      %779 = vrot.lane.b32.xlu0 %v394, 111
      %v780 = vpop.permute.xlu0 %779
      %781 = vrot.lane.b32.xlu0 %v402, 111
      %v782 = vpop.permute.xlu0 %781
      %vm783 = vcmask 908288
      %v784 = vsel %vm783, %v778, %v780
      %v785 = vsel %vm783, %v780, %v782
      %v787 = vsel %vm417, %v776, 0
      %v789 = vsel %vm421, %v784, 0
      %v791 = vsel %vm421, %v785, 0
      %793 = vmatprep.subr.mxu0 %v791
      %794 = vmatpush1.msra.mxu0 %v789
      %795 = vmatprep.subr.mxu0 0.0
      %796 = vmatpush1.msra.mxu0 0.0
      %797 = vmatprep.subr.mxu0 0.0
      %798 = vmatpush1.msra.mxu0 0.0
      %799 = vmatprep.subr.mxu0 0.0
      %800 = vmatpush1.msra.mxu0 0.0
      %801 = vmatprep.subr.mxu0 0.0
      %802 = vmatpush1.msra.mxu0 0.0
      %803 = vmatprep.subr.mxu0 0.0
      %804 = vmatpush1.msra.mxu0 0.0
      %805 = vmatprep.subr.mxu0 0.0
      %806 = vmatpush1.msra.mxu0 0.0
      %807 = vmatprep.subr.mxu0 0.0
      %808 = vmatpush1.msra.mxu0 0.0
      %809 = vmatprep.subr.mxu0 0.0
      %810 = vmatpush1.msra.mxu0 0.0
      %811 = vmatprep.subr.mxu0 0.0
      %812 = vmatpush1.msra.mxu0 0.0
      %813 = vmatprep.subr.mxu0 0.0
      %814 = vmatpush1.msra.mxu0 0.0
      %815 = vmatprep.subr.mxu0 0.0
      %816 = vmatpush1.msra.mxu0 0.0
      %817 = vmatprep.subr.mxu0 0.0
      %818 = vmatpush1.msra.mxu0 0.0
      %819 = vmatprep.subr.mxu0 0.0
      %820 = vmatpush1.msra.mxu0 0.0
      %821 = vmatprep.subr.mxu0 0.0
      %822 = vmatpush1.msra.mxu0 0.0
      %823 = vmatprep.subr.mxu0 0.0
      %824 = vmatpush1.msra.mxu0 0.0
      %825 = vmatprep.subr.mxu0 0.0
      %826 = vmatpush1.msra.mxu0 0.0
      %827 = vmatprep.subr.mxu0 0.0
      %828 = vmatpush1.msra.mxu0 0.0
      %829 = vmatprep.subr.mxu0 0.0
      %830 = vmatpush1.msra.mxu0 0.0
      %831 = vmatprep.subr.mxu0 0.0
      %832 = vmatpush1.msra.mxu0 0.0
      %833 = vmatprep.subr.mxu0 0.0
      %834 = vmatpush1.msra.mxu0 0.0
      %835 = vmatprep.subr.mxu0 0.0
      %836 = vmatpush1.msra.mxu0 0.0
      %837 = vmatprep.subr.mxu0 0.0
      %838 = vmatpush1.msra.mxu0 0.0
      %839 = vmatprep.subr.mxu0 0.0
      %840 = vmatpush1.msra.mxu0 0.0
      %841 = vmatprep.subr.mxu0 0.0
      %842 = vmatpush1.msra.mxu0 0.0
      %843 = vmatprep.subr.mxu0 0.0
      %844 = vmatpush1.msra.mxu0 0.0
      %845 = vmatprep.subr.mxu0 0.0
      %846 = vmatpush1.msra.mxu0 0.0
      %847 = vmatprep.subr.mxu0 0.0
      %848 = vmatpush1.msra.mxu0 0.0
      %849 = vmatprep.subr.mxu0 0.0
      %850 = vmatpush1.msra.mxu0 0.0
      %851 = vmatprep.subr.mxu0 0.0
      %852 = vmatpush1.msra.mxu0 0.0
      %853 = vmatprep.subr.mxu0 0.0
      %854 = vmatpush1.msra.mxu0 0.0
      %855 = vmatprep.subr.mxu0 0.0
      %856 = vmatpush1.msra.mxu0 0.0
      %857 = vmatprep.mubr.f32.mxu0 0.0
      %858 = vmatmul.mubr.f32.gmra.mrb[0].mxu0 %v787
      %v859 = vpop.f32.mrb[0].mxu0
      %v860 = vadd.f32 0.0, %v859
      %v861 = vpop.f32.mrb[0].mxu0
      %v862 = vadd.f32 0.0, %v861
      %863 = vdwg.mxu0
      %v864 = vadd.f32 %v773, %v860
      %v865 = vadd.f32 %v774, %v862
      %866 = vrot.lane.b32.xlu0 %v393, 110
      %v867 = vpop.permute.xlu0 %866
      %868 = vrot.lane.b32.xlu0 %v394, 110
      %v869 = vpop.permute.xlu0 %868
      %870 = vrot.lane.b32.xlu0 %v402, 110
      %v871 = vpop.permute.xlu0 %870
      %vm872 = vcmask 900096
      %v873 = vsel %vm872, %v867, %v869
      %v874 = vsel %vm872, %v869, %v871
      %v877 = vsel %vm579, %v873, 0.0
      %v878 = vsel %vm580, %v874, 0.0
      %s879 = scalar_lea.vmem %s3, 40
      %v880 = vld [vmem:[%s879] sm:$0xff]
      %v882 = vsel %vm417, %v880, 0
      %v885 = vsel %vm421, %v877, 0
      %v888 = vsel %vm421, %v878, 0
      %890 = vmatprep.subr.mxu0 %v888
      %891 = vmatpush1.msra.mxu0 %v885
      %892 = vmatprep.subr.mxu0 0.0
      %893 = vmatpush1.msra.mxu0 0.0
      %894 = vmatprep.subr.mxu0 0.0
      %895 = vmatpush1.msra.mxu0 0.0
      %896 = vmatprep.subr.mxu0 0.0
      %897 = vmatpush1.msra.mxu0 0.0
      %898 = vmatprep.subr.mxu0 0.0
      %899 = vmatpush1.msra.mxu0 0.0
      %900 = vmatprep.subr.mxu0 0.0
      %901 = vmatpush1.msra.mxu0 0.0
      %902 = vmatprep.subr.mxu0 0.0
      %903 = vmatpush1.msra.mxu0 0.0
      %904 = vmatprep.subr.mxu0 0.0
      %905 = vmatpush1.msra.mxu0 0.0
      %906 = vmatprep.subr.mxu0 0.0
      %907 = vmatpush1.msra.mxu0 0.0
      %908 = vmatprep.subr.mxu0 0.0
      %909 = vmatpush1.msra.mxu0 0.0
      %910 = vmatprep.subr.mxu0 0.0
      %911 = vmatpush1.msra.mxu0 0.0
      %912 = vmatprep.subr.mxu0 0.0
      %913 = vmatpush1.msra.mxu0 0.0
      %914 = vmatprep.subr.mxu0 0.0
      %915 = vmatpush1.msra.mxu0 0.0
      %916 = vmatprep.subr.mxu0 0.0
      %917 = vmatpush1.msra.mxu0 0.0
      %918 = vmatprep.subr.mxu0 0.0
      %919 = vmatpush1.msra.mxu0 0.0
      %920 = vmatprep.subr.mxu0 0.0
      %921 = vmatpush1.msra.mxu0 0.0
      %922 = vmatprep.subr.mxu0 0.0
      %923 = vmatpush1.msra.mxu0 0.0
      %924 = vmatprep.subr.mxu0 0.0
      %925 = vmatpush1.msra.mxu0 0.0
      %926 = vmatprep.subr.mxu0 0.0
      %927 = vmatpush1.msra.mxu0 0.0
      %928 = vmatprep.subr.mxu0 0.0
      %929 = vmatpush1.msra.mxu0 0.0
      %930 = vmatprep.subr.mxu0 0.0
      %931 = vmatpush1.msra.mxu0 0.0
      %932 = vmatprep.subr.mxu0 0.0
      %933 = vmatpush1.msra.mxu0 0.0
      %934 = vmatprep.subr.mxu0 0.0
      %935 = vmatpush1.msra.mxu0 0.0
      %936 = vmatprep.subr.mxu0 0.0
      %937 = vmatpush1.msra.mxu0 0.0
      %938 = vmatprep.subr.mxu0 0.0
      %939 = vmatpush1.msra.mxu0 0.0
      %940 = vmatprep.subr.mxu0 0.0
      %941 = vmatpush1.msra.mxu0 0.0
      %942 = vmatprep.subr.mxu0 0.0
      %943 = vmatpush1.msra.mxu0 0.0
      %944 = vmatprep.subr.mxu0 0.0
      %945 = vmatpush1.msra.mxu0 0.0
      %946 = vmatprep.subr.mxu0 0.0
      %947 = vmatpush1.msra.mxu0 0.0
      %948 = vmatprep.subr.mxu0 0.0
      %949 = vmatpush1.msra.mxu0 0.0
      %950 = vmatprep.subr.mxu0 0.0
      %951 = vmatpush1.msra.mxu0 0.0
      %952 = vmatprep.subr.mxu0 0.0
      %953 = vmatpush1.msra.mxu0 0.0
      %954 = vmatprep.mubr.f32.mxu0 0.0
      %955 = vmatmul.mubr.f32.gmra.mrb[0].mxu0 %v882
      %v956 = vpop.f32.mrb[0].mxu0
      %v957 = vadd.f32 0.0, %v956
      %v958 = vpop.f32.mrb[0].mxu0
      %v959 = vadd.f32 0.0, %v958
      %960 = vdwg.mxu0
      %v961 = vadd.f32 %v864, %v957
      %v962 = vadd.f32 %v865, %v959
      %963 = vrot.lane.b32.xlu0 %v393, 96
      %v964 = vpop.permute.xlu0 %963
      %965 = vrot.lane.b32.xlu0 %v394, 96
      %v966 = vpop.permute.xlu0 %965
      %967 = vrot.lane.b32.xlu0 %v402, 96
      %v968 = vpop.permute.xlu0 %967
      %vm969 = vcmask 785408
      %v970 = vsel %vm969, %v964, %v966
      %v971 = vsel %vm969, %v966, %v968
      %v974 = vsel %vm397, %v970, 0.0
      %v975 = vsel %vm398, %v971, 0.0
      %s976 = scalar_lea.vmem %s3, 48
      %v977 = vld [vmem:[%s976] sm:$0xff]
      %v979 = vsel %vm417, %v977, 0
      %v982 = vsel %vm421, %v974, 0
      %v985 = vsel %vm421, %v975, 0
      %987 = vmatprep.subr.mxu0 %v985
      %988 = vmatpush1.msra.mxu0 %v982
      %989 = vmatprep.subr.mxu0 0.0
      %990 = vmatpush1.msra.mxu0 0.0
      %991 = vmatprep.subr.mxu0 0.0
      %992 = vmatpush1.msra.mxu0 0.0
      %993 = vmatprep.subr.mxu0 0.0
      %994 = vmatpush1.msra.mxu0 0.0
      %995 = vmatprep.subr.mxu0 0.0
      %996 = vmatpush1.msra.mxu0 0.0
      %997 = vmatprep.subr.mxu0 0.0
      %998 = vmatpush1.msra.mxu0 0.0
      %999 = vmatprep.subr.mxu0 0.0
      %1000 = vmatpush1.msra.mxu0 0.0
      %1001 = vmatprep.subr.mxu0 0.0
      %1002 = vmatpush1.msra.mxu0 0.0
      %1003 = vmatprep.subr.mxu0 0.0
      %1004 = vmatpush1.msra.mxu0 0.0
      %1005 = vmatprep.subr.mxu0 0.0
      %1006 = vmatpush1.msra.mxu0 0.0
      %1007 = vmatprep.subr.mxu0 0.0
      %1008 = vmatpush1.msra.mxu0 0.0
      %1009 = vmatprep.subr.mxu0 0.0
      %1010 = vmatpush1.msra.mxu0 0.0
      %1011 = vmatprep.subr.mxu0 0.0
      %1012 = vmatpush1.msra.mxu0 0.0
      %1013 = vmatprep.subr.mxu0 0.0
      %1014 = vmatpush1.msra.mxu0 0.0
      %1015 = vmatprep.subr.mxu0 0.0
      %1016 = vmatpush1.msra.mxu0 0.0
      %1017 = vmatprep.subr.mxu0 0.0
      %1018 = vmatpush1.msra.mxu0 0.0
      %1019 = vmatprep.subr.mxu0 0.0
      %1020 = vmatpush1.msra.mxu0 0.0
      %1021 = vmatprep.subr.mxu0 0.0
      %1022 = vmatpush1.msra.mxu0 0.0
      %1023 = vmatprep.subr.mxu0 0.0
      %1024 = vmatpush1.msra.mxu0 0.0
      %1025 = vmatprep.subr.mxu0 0.0
      %1026 = vmatpush1.msra.mxu0 0.0
      %1027 = vmatprep.subr.mxu0 0.0
      %1028 = vmatpush1.msra.mxu0 0.0
      %1029 = vmatprep.subr.mxu0 0.0
      %1030 = vmatpush1.msra.mxu0 0.0
      %1031 = vmatprep.subr.mxu0 0.0
      %1032 = vmatpush1.msra.mxu0 0.0
      %1033 = vmatprep.subr.mxu0 0.0
      %1034 = vmatpush1.msra.mxu0 0.0
      %1035 = vmatprep.subr.mxu0 0.0
      %1036 = vmatpush1.msra.mxu0 0.0
      %1037 = vmatprep.subr.mxu0 0.0
      %1038 = vmatpush1.msra.mxu0 0.0
      %1039 = vmatprep.subr.mxu0 0.0
      %1040 = vmatpush1.msra.mxu0 0.0
      %1041 = vmatprep.subr.mxu0 0.0
      %1042 = vmatpush1.msra.mxu0 0.0
      %1043 = vmatprep.subr.mxu0 0.0
      %1044 = vmatpush1.msra.mxu0 0.0
      %1045 = vmatprep.subr.mxu0 0.0
      %1046 = vmatpush1.msra.mxu0 0.0
      %1047 = vmatprep.subr.mxu0 0.0
      %1048 = vmatpush1.msra.mxu0 0.0
      %1049 = vmatprep.subr.mxu0 0.0
      %1050 = vmatpush1.msra.mxu0 0.0
      %1051 = vmatprep.mubr.f32.mxu0 0.0
      %1052 = vmatmul.mubr.f32.gmra.mrb[0].mxu0 %v979
      %v1053 = vpop.f32.mrb[0].mxu0
      %v1054 = vadd.f32 0.0, %v1053
      %v1055 = vpop.f32.mrb[0].mxu0
      %v1056 = vadd.f32 0.0, %v1055
      %1057 = vdwg.mxu0
      %v1058 = vadd.f32 %v961, %v1054
      %v1059 = vadd.f32 %v962, %v1056
      %s1060 = scalar_lea.vmem %s3, 56
      %v1061 = vld [vmem:[%s1060] sm:$0xff]
      %1062 = vrot.lane.b32.xlu0 %v393, 95
      %v1063 = vpop.permute.xlu0 %1062
      %1064 = vrot.lane.b32.xlu0 %v394, 95
      %v1065 = vpop.permute.xlu0 %1064
      %1066 = vrot.lane.b32.xlu0 %v402, 95
      %v1067 = vpop.permute.xlu0 %1066
      %vm1068 = vcmask 777216
      %v1069 = vsel %vm1068, %v1063, %v1065
      %v1070 = vsel %vm1068, %v1065, %v1067
      %v1072 = vsel %vm417, %v1061, 0
      %v1074 = vsel %vm421, %v1069, 0
      %v1076 = vsel %vm421, %v1070, 0
      %1078 = vmatprep.subr.mxu0 %v1076
      %1079 = vmatpush1.msra.mxu0 %v1074
      %1080 = vmatprep.subr.mxu0 0.0
      %1081 = vmatpush1.msra.mxu0 0.0
      %1082 = vmatprep.subr.mxu0 0.0
      %1083 = vmatpush1.msra.mxu0 0.0
      %1084 = vmatprep.subr.mxu0 0.0
      %1085 = vmatpush1.msra.mxu0 0.0
      %1086 = vmatprep.subr.mxu0 0.0
      %1087 = vmatpush1.msra.mxu0 0.0
      %1088 = vmatprep.subr.mxu0 0.0
      %1089 = vmatpush1.msra.mxu0 0.0
      %1090 = vmatprep.subr.mxu0 0.0
      %1091 = vmatpush1.msra.mxu0 0.0
      %1092 = vmatprep.subr.mxu0 0.0
      %1093 = vmatpush1.msra.mxu0 0.0
      %1094 = vmatprep.subr.mxu0 0.0
      %1095 = vmatpush1.msra.mxu0 0.0
      %1096 = vmatprep.subr.mxu0 0.0
      %1097 = vmatpush1.msra.mxu0 0.0
      %1098 = vmatprep.subr.mxu0 0.0
      %1099 = vmatpush1.msra.mxu0 0.0
      %1100 = vmatprep.subr.mxu0 0.0
      %1101 = vmatpush1.msra.mxu0 0.0
      %1102 = vmatprep.subr.mxu0 0.0
      %1103 = vmatpush1.msra.mxu0 0.0
      %1104 = vmatprep.subr.mxu0 0.0
      %1105 = vmatpush1.msra.mxu0 0.0
      %1106 = vmatprep.subr.mxu0 0.0
      %1107 = vmatpush1.msra.mxu0 0.0
      %1108 = vmatprep.subr.mxu0 0.0
      %1109 = vmatpush1.msra.mxu0 0.0
      %1110 = vmatprep.subr.mxu0 0.0
      %1111 = vmatpush1.msra.mxu0 0.0
      %1112 = vmatprep.subr.mxu0 0.0
      %1113 = vmatpush1.msra.mxu0 0.0
      %1114 = vmatprep.subr.mxu0 0.0
      %1115 = vmatpush1.msra.mxu0 0.0
      %1116 = vmatprep.subr.mxu0 0.0
      %1117 = vmatpush1.msra.mxu0 0.0
      %1118 = vmatprep.subr.mxu0 0.0
      %1119 = vmatpush1.msra.mxu0 0.0
      %1120 = vmatprep.subr.mxu0 0.0
      %1121 = vmatpush1.msra.mxu0 0.0
      %1122 = vmatprep.subr.mxu0 0.0
      %1123 = vmatpush1.msra.mxu0 0.0
      %1124 = vmatprep.subr.mxu0 0.0
      %1125 = vmatpush1.msra.mxu0 0.0
      %1126 = vmatprep.subr.mxu0 0.0
      %1127 = vmatpush1.msra.mxu0 0.0
      %1128 = vmatprep.subr.mxu0 0.0
      %1129 = vmatpush1.msra.mxu0 0.0
      %1130 = vmatprep.subr.mxu0 0.0
      %1131 = vmatpush1.msra.mxu0 0.0
      %1132 = vmatprep.subr.mxu0 0.0
      %1133 = vmatpush1.msra.mxu0 0.0
      %1134 = vmatprep.subr.mxu0 0.0
      %1135 = vmatpush1.msra.mxu0 0.0
      %1136 = vmatprep.subr.mxu0 0.0
      %1137 = vmatpush1.msra.mxu0 0.0
      %1138 = vmatprep.subr.mxu0 0.0
      %1139 = vmatpush1.msra.mxu0 0.0
      %1140 = vmatprep.subr.mxu0 0.0
      %1141 = vmatpush1.msra.mxu0 0.0
      %1142 = vmatprep.mubr.f32.mxu0 0.0
      %1143 = vmatmul.mubr.f32.gmra.mrb[0].mxu0 %v1072
      %v1144 = vpop.f32.mrb[0].mxu0
      %v1145 = vadd.f32 0.0, %v1144
      %v1146 = vpop.f32.mrb[0].mxu0
      %v1147 = vadd.f32 0.0, %v1146
      %1148 = vdwg.mxu0
      %v1149 = vadd.f32 %v1058, %v1145
      %v1150 = vadd.f32 %v1059, %v1147
      %1151 = vrot.lane.b32.xlu0 %v393, 94
      %v1152 = vpop.permute.xlu0 %1151
      %1153 = vrot.lane.b32.xlu0 %v394, 94
      %v1154 = vpop.permute.xlu0 %1153
      %1155 = vrot.lane.b32.xlu0 %v402, 94
      %v1156 = vpop.permute.xlu0 %1155
      %vm1157 = vcmask 769024
      %v1158 = vsel %vm1157, %v1152, %v1154
      %v1159 = vsel %vm1157, %v1154, %v1156
      %v1162 = vsel %vm579, %v1158, 0.0
      %v1163 = vsel %vm580, %v1159, 0.0
      %s1164 = scalar_lea.vmem %s3, 64
      %v1165 = vld [vmem:[%s1164] sm:$0xff]
      %v1167 = vsel %vm417, %v1165, 0
      %v1170 = vsel %vm421, %v1162, 0
      %v1173 = vsel %vm421, %v1163, 0
      %1175 = vmatprep.subr.mxu0 %v1173
      %1176 = vmatpush1.msra.mxu0 %v1170
      %1177 = vmatprep.subr.mxu0 0.0
      %1178 = vmatpush1.msra.mxu0 0.0
      %1179 = vmatprep.subr.mxu0 0.0
      %1180 = vmatpush1.msra.mxu0 0.0
      %1181 = vmatprep.subr.mxu0 0.0
      %1182 = vmatpush1.msra.mxu0 0.0
      %1183 = vmatprep.subr.mxu0 0.0
      %1184 = vmatpush1.msra.mxu0 0.0
      %1185 = vmatprep.subr.mxu0 0.0
      %1186 = vmatpush1.msra.mxu0 0.0
      %1187 = vmatprep.subr.mxu0 0.0
      %1188 = vmatpush1.msra.mxu0 0.0
      %1189 = vmatprep.subr.mxu0 0.0
      %1190 = vmatpush1.msra.mxu0 0.0
      %1191 = vmatprep.subr.mxu0 0.0
      %1192 = vmatpush1.msra.mxu0 0.0
      %1193 = vmatprep.subr.mxu0 0.0
      %1194 = vmatpush1.msra.mxu0 0.0
      %1195 = vmatprep.subr.mxu0 0.0
      %1196 = vmatpush1.msra.mxu0 0.0
      %1197 = vmatprep.subr.mxu0 0.0
      %1198 = vmatpush1.msra.mxu0 0.0
      %1199 = vmatprep.subr.mxu0 0.0
      %1200 = vmatpush1.msra.mxu0 0.0
      %1201 = vmatprep.subr.mxu0 0.0
      %1202 = vmatpush1.msra.mxu0 0.0
      %1203 = vmatprep.subr.mxu0 0.0
      %1204 = vmatpush1.msra.mxu0 0.0
      %1205 = vmatprep.subr.mxu0 0.0
      %1206 = vmatpush1.msra.mxu0 0.0
      %1207 = vmatprep.subr.mxu0 0.0
      %1208 = vmatpush1.msra.mxu0 0.0
      %1209 = vmatprep.subr.mxu0 0.0
      %1210 = vmatpush1.msra.mxu0 0.0
      %1211 = vmatprep.subr.mxu0 0.0
      %1212 = vmatpush1.msra.mxu0 0.0
      %1213 = vmatprep.subr.mxu0 0.0
      %1214 = vmatpush1.msra.mxu0 0.0
      %1215 = vmatprep.subr.mxu0 0.0
      %1216 = vmatpush1.msra.mxu0 0.0
      %1217 = vmatprep.subr.mxu0 0.0
      %1218 = vmatpush1.msra.mxu0 0.0
      %1219 = vmatprep.subr.mxu0 0.0
      %1220 = vmatpush1.msra.mxu0 0.0
      %1221 = vmatprep.subr.mxu0 0.0
      %1222 = vmatpush1.msra.mxu0 0.0
      %1223 = vmatprep.subr.mxu0 0.0
      %1224 = vmatpush1.msra.mxu0 0.0
      %1225 = vmatprep.subr.mxu0 0.0
      %1226 = vmatpush1.msra.mxu0 0.0
      %1227 = vmatprep.subr.mxu0 0.0
      %1228 = vmatpush1.msra.mxu0 0.0
      %1229 = vmatprep.subr.mxu0 0.0
      %1230 = vmatpush1.msra.mxu0 0.0
      %1231 = vmatprep.subr.mxu0 0.0
      %1232 = vmatpush1.msra.mxu0 0.0
      %1233 = vmatprep.subr.mxu0 0.0
      %1234 = vmatpush1.msra.mxu0 0.0
      %1235 = vmatprep.subr.mxu0 0.0
      %1236 = vmatpush1.msra.mxu0 0.0
      %1237 = vmatprep.subr.mxu0 0.0
      %1238 = vmatpush1.msra.mxu0 0.0
      %1239 = vmatprep.mubr.f32.mxu0 0.0
      %1240 = vmatmul.mubr.f32.gmra.mrb[0].mxu0 %v1167
      %v1241 = vpop.f32.mrb[0].mxu0
      %v1242 = vadd.f32 0.0, %v1241
      %v1243 = vpop.f32.mrb[0].mxu0
      %v1244 = vadd.f32 0.0, %v1243
      %1245 = vdwg.mxu0
      %v1246 = vadd.f32 %v1149, %v1242
      %v1247 = vadd.f32 %v1150, %v1244
      %1249 = vset.pattern.permute.xlu0 0
      %1250 = vperm.xlu0 %1249, %v376
      %v1251 = vpop.permute.xlu0 %1250
      %v1253 = vadd.f32 %v1246, %v1251
      %v1254 = vadd.f32 %v1247, %v1251
      %v1255 = vmax.f32 %v1253, 0.0
      %v1256 = vmax.f32 %v1254, 0.0
      %v1257 = vld [vmem:[%s6] sm:$0xff]
      %1259 = vset.pattern.permute.xlu0 0
      %1260 = vperm.xlu0 %1259, %v1257
      %v1261 = vpop.permute.xlu0 %1260
      %v1263 = vmul.f32 %v1255, %v1261
      %v1264 = vmul.f32 %v1256, %v1261
      %v1265 = vld [vmem:[%s7] sm:$0xff]
      %1267 = vset.pattern.permute.xlu0 0
      %1268 = vperm.xlu0 %1267, %v1265
      %v1269 = vpop.permute.xlu0 %1268
      %v1271 = vadd.f32 %v1263, %v1269
      %v1272 = vadd.f32 %v1264, %v1269
      %s1273 = scalar_lea.vmem %s5, 8
      %v1274 = vld [vmem:[%s1273] sm:$0xff]
      %1277 = vrot.lane.b32.xlu0 %v1271, 17
      %v1278 = vpop.permute.xlu0 %1277
      %1279 = vrot.lane.b32.xlu0 %v1272, 17
      %v1280 = vpop.permute.xlu0 %1279
      %v1281 = vsel %vm383, %v1278, %v1280
      %vm1285 = vcmask 1047688
      %1286 = vst.msk [vmem:[#allocation2] sm:$0xff] %vm1285, %v1278
      %1287 = vst [vmem:[#allocation2 + $0x8] sm:$0xff] %v1281
      %1288 = vst.msk [vmem:[#allocation2 + $0x10] sm:$0xff] %vm383, %v1280
      %v1289 = vld [vmem:[#allocation2] sm:$0xff]
      %v1290 = vld [vmem:[#allocation2 + $0x8] sm:$0xff]
      %v1291 = vsel %vm397, %v1289, 0.0
      %v1292 = vsel %vm398, %v1290, 0.0
      %v1293 = vld [vmem:[%s4] sm:$0xff]
      %v1294 = vld [vmem:[#allocation2 + $0x10] sm:$0xff]
      %s1295 = scalar_lea.vmem %s4, 8
      %v1296 = vld [vmem:[%s1295] sm:$0xff]
      %1300 = vrot.lane.b32.xlu0 %v1289, 127
      %v1301 = vpop.permute.xlu0 %1300
      %1302 = vrot.lane.b32.xlu0 %v1290, 127
      %v1303 = vpop.permute.xlu0 %1302
      %1304 = vrot.lane.b32.xlu0 %v1294, 127
      %v1305 = vpop.permute.xlu0 %1304
      %v1306 = vsel %vm414, %v1301, %v1303
      %v1307 = vsel %vm414, %v1303, %v1305
      %vm1310 = vcmask 64512
      %v1312 = vsel %vm1310, %v1296, 0
      %1314 = vmatprep.subr.mxu0 %v1307
      %1315 = vmatpush1.msra.mxu0 %v1306
      %1316 = vmatprep.subr.mxu0 0.0
      %1317 = vmatpush1.msra.mxu0 0.0
      %1318 = vmatprep.subr.mxu0 0.0
      %1319 = vmatpush1.msra.mxu0 0.0
      %1320 = vmatprep.subr.mxu0 0.0
      %1321 = vmatpush1.msra.mxu0 0.0
      %1322 = vmatprep.subr.mxu0 0.0
      %1323 = vmatpush1.msra.mxu0 0.0
      %1324 = vmatprep.subr.mxu0 0.0
      %1325 = vmatpush1.msra.mxu0 0.0
      %1326 = vmatprep.subr.mxu0 0.0
      %1327 = vmatpush1.msra.mxu0 0.0
      %1328 = vmatprep.subr.mxu0 0.0
      %1329 = vmatpush1.msra.mxu0 0.0
      %1330 = vmatprep.subr.mxu0 0.0
      %1331 = vmatpush1.msra.mxu0 0.0
      %1332 = vmatprep.subr.mxu0 0.0
      %1333 = vmatpush1.msra.mxu0 0.0
      %1334 = vmatprep.subr.mxu0 0.0
      %1335 = vmatpush1.msra.mxu0 0.0
      %1336 = vmatprep.subr.mxu0 0.0
      %1337 = vmatpush1.msra.mxu0 0.0
      %1338 = vmatprep.subr.mxu0 0.0
      %1339 = vmatpush1.msra.mxu0 0.0
      %1340 = vmatprep.subr.mxu0 0.0
      %1341 = vmatpush1.msra.mxu0 0.0
      %1342 = vmatprep.subr.mxu0 0.0
      %1343 = vmatpush1.msra.mxu0 0.0
      %1344 = vmatprep.subr.mxu0 0.0
      %1345 = vmatpush1.msra.mxu0 0.0
      %1346 = vmatprep.subr.mxu0 0.0
      %1347 = vmatpush1.msra.mxu0 0.0
      %1348 = vmatprep.subr.mxu0 0.0
      %1349 = vmatpush1.msra.mxu0 0.0
      %1350 = vmatprep.subr.mxu0 0.0
      %1351 = vmatpush1.msra.mxu0 0.0
      %1352 = vmatprep.subr.mxu0 0.0
      %1353 = vmatpush1.msra.mxu0 0.0
      %1354 = vmatprep.subr.mxu0 0.0
      %1355 = vmatpush1.msra.mxu0 0.0
      %1356 = vmatprep.subr.mxu0 0.0
      %1357 = vmatpush1.msra.mxu0 0.0
      %1358 = vmatprep.subr.mxu0 0.0
      %1359 = vmatpush1.msra.mxu0 0.0
      %1360 = vmatprep.subr.mxu0 0.0
      %1361 = vmatpush1.msra.mxu0 0.0
      %1362 = vmatprep.subr.mxu0 0.0
      %1363 = vmatpush1.msra.mxu0 0.0
      %1364 = vmatprep.subr.mxu0 0.0
      %1365 = vmatpush1.msra.mxu0 0.0
      %1366 = vmatprep.subr.mxu0 0.0
      %1367 = vmatpush1.msra.mxu0 0.0
      %1368 = vmatprep.subr.mxu0 0.0
      %1369 = vmatpush1.msra.mxu0 0.0
      %1370 = vmatprep.subr.mxu0 0.0
      %1371 = vmatpush1.msra.mxu0 0.0
      %1372 = vmatprep.subr.mxu0 0.0
      %1373 = vmatpush1.msra.mxu0 0.0
      %1374 = vmatprep.subr.mxu0 0.0
      %1375 = vmatpush1.msra.mxu0 0.0
      %1376 = vmatprep.subr.mxu0 0.0
      %1377 = vmatpush1.msra.mxu0 0.0
      %1378 = vmatprep.mubr.f32.mxu0 0.0
      %1379 = vmatmul.mubr.f32.gmra.mrb[0].mxu0 %v1312
      %v1380 = vpop.f32.mrb[0].mxu0
      %v1381 = vadd.f32 0.0, %v1380
      %v1382 = vpop.f32.mrb[0].mxu0
      %v1383 = vadd.f32 0.0, %v1382
      %1384 = vdwg.mxu0
      %v1386 = vsel %vm1310, %v1293, 0
      %1388 = vmatprep.subr.mxu0 %v1292
      %1389 = vmatpush1.msra.mxu0 %v1291
      %1390 = vmatprep.subr.mxu0 0.0
      %1391 = vmatpush1.msra.mxu0 0.0
      %1392 = vmatprep.subr.mxu0 0.0
      %1393 = vmatpush1.msra.mxu0 0.0
      %1394 = vmatprep.subr.mxu0 0.0
      %1395 = vmatpush1.msra.mxu0 0.0
      %1396 = vmatprep.subr.mxu0 0.0
      %1397 = vmatpush1.msra.mxu0 0.0
      %1398 = vmatprep.subr.mxu0 0.0
      %1399 = vmatpush1.msra.mxu0 0.0
      %1400 = vmatprep.subr.mxu0 0.0
      %1401 = vmatpush1.msra.mxu0 0.0
      %1402 = vmatprep.subr.mxu0 0.0
      %1403 = vmatpush1.msra.mxu0 0.0
      %1404 = vmatprep.subr.mxu0 0.0
      %1405 = vmatpush1.msra.mxu0 0.0
      %1406 = vmatprep.subr.mxu0 0.0
      %1407 = vmatpush1.msra.mxu0 0.0
      %1408 = vmatprep.subr.mxu0 0.0
      %1409 = vmatpush1.msra.mxu0 0.0
      %1410 = vmatprep.subr.mxu0 0.0
      %1411 = vmatpush1.msra.mxu0 0.0
      %1412 = vmatprep.subr.mxu0 0.0
      %1413 = vmatpush1.msra.mxu0 0.0
      %1414 = vmatprep.subr.mxu0 0.0
      %1415 = vmatpush1.msra.mxu0 0.0
      %1416 = vmatprep.subr.mxu0 0.0
      %1417 = vmatpush1.msra.mxu0 0.0
      %1418 = vmatprep.subr.mxu0 0.0
      %1419 = vmatpush1.msra.mxu0 0.0
      %1420 = vmatprep.subr.mxu0 0.0
      %1421 = vmatpush1.msra.mxu0 0.0
      %1422 = vmatprep.subr.mxu0 0.0
      %1423 = vmatpush1.msra.mxu0 0.0
      %1424 = vmatprep.subr.mxu0 0.0
      %1425 = vmatpush1.msra.mxu0 0.0
      %1426 = vmatprep.subr.mxu0 0.0
      %1427 = vmatpush1.msra.mxu0 0.0
      %1428 = vmatprep.subr.mxu0 0.0
      %1429 = vmatpush1.msra.mxu0 0.0
      %1430 = vmatprep.subr.mxu0 0.0
      %1431 = vmatpush1.msra.mxu0 0.0
      %1432 = vmatprep.subr.mxu0 0.0
      %1433 = vmatpush1.msra.mxu0 0.0
      %1434 = vmatprep.subr.mxu0 0.0
      %1435 = vmatpush1.msra.mxu0 0.0
      %1436 = vmatprep.subr.mxu0 0.0
      %1437 = vmatpush1.msra.mxu0 0.0
      %1438 = vmatprep.subr.mxu0 0.0
      %1439 = vmatpush1.msra.mxu0 0.0
      %1440 = vmatprep.subr.mxu0 0.0
      %1441 = vmatpush1.msra.mxu0 0.0
      %1442 = vmatprep.subr.mxu0 0.0
      %1443 = vmatpush1.msra.mxu0 0.0
      %1444 = vmatprep.subr.mxu0 0.0
      %1445 = vmatpush1.msra.mxu0 0.0
      %1446 = vmatprep.subr.mxu0 0.0
      %1447 = vmatpush1.msra.mxu0 0.0
      %1448 = vmatprep.subr.mxu0 0.0
      %1449 = vmatpush1.msra.mxu0 0.0
      %1450 = vmatprep.subr.mxu0 0.0
      %1451 = vmatpush1.msra.mxu0 0.0
      %1452 = vmatprep.mubr.f32.mxu0 0.0
      %1453 = vmatmul.mubr.f32.gmra.mrb[0].mxu0 %v1386
      %v1454 = vpop.f32.mrb[0].mxu0
      %v1455 = vadd.f32 %v1381, %v1454
      %v1456 = vpop.f32.mrb[0].mxu0
      %v1457 = vadd.f32 %v1383, %v1456
      %1458 = vdwg.mxu0
      %1459 = vrot.lane.b32.xlu0 %v1289, 126
      %v1460 = vpop.permute.xlu0 %1459
      %1461 = vrot.lane.b32.xlu0 %v1290, 126
      %v1462 = vpop.permute.xlu0 %1461
      %1463 = vrot.lane.b32.xlu0 %v1294, 126
      %v1464 = vpop.permute.xlu0 %1463
      %v1465 = vsel %vm587, %v1460, %v1462
      %v1466 = vsel %vm587, %v1462, %v1464
      %v1469 = vsel %vm579, %v1465, 0.0
      %v1470 = vsel %vm580, %v1466, 0.0
      %s1471 = scalar_lea.vmem %s4, 16
      %v1472 = vld [vmem:[%s1471] sm:$0xff]
      %v1474 = vsel %vm1310, %v1472, 0
      %1476 = vmatprep.subr.mxu0 %v1470
      %1477 = vmatpush1.msra.mxu0 %v1469
      %1478 = vmatprep.subr.mxu0 0.0
      %1479 = vmatpush1.msra.mxu0 0.0
      %1480 = vmatprep.subr.mxu0 0.0
      %1481 = vmatpush1.msra.mxu0 0.0
      %1482 = vmatprep.subr.mxu0 0.0
      %1483 = vmatpush1.msra.mxu0 0.0
      %1484 = vmatprep.subr.mxu0 0.0
      %1485 = vmatpush1.msra.mxu0 0.0
      %1486 = vmatprep.subr.mxu0 0.0
      %1487 = vmatpush1.msra.mxu0 0.0
      %1488 = vmatprep.subr.mxu0 0.0
      %1489 = vmatpush1.msra.mxu0 0.0
      %1490 = vmatprep.subr.mxu0 0.0
      %1491 = vmatpush1.msra.mxu0 0.0
      %1492 = vmatprep.subr.mxu0 0.0
      %1493 = vmatpush1.msra.mxu0 0.0
      %1494 = vmatprep.subr.mxu0 0.0
      %1495 = vmatpush1.msra.mxu0 0.0
      %1496 = vmatprep.subr.mxu0 0.0
      %1497 = vmatpush1.msra.mxu0 0.0
      %1498 = vmatprep.subr.mxu0 0.0
      %1499 = vmatpush1.msra.mxu0 0.0
      %1500 = vmatprep.subr.mxu0 0.0
      %1501 = vmatpush1.msra.mxu0 0.0
      %1502 = vmatprep.subr.mxu0 0.0
      %1503 = vmatpush1.msra.mxu0 0.0
      %1504 = vmatprep.subr.mxu0 0.0
      %1505 = vmatpush1.msra.mxu0 0.0
      %1506 = vmatprep.subr.mxu0 0.0
      %1507 = vmatpush1.msra.mxu0 0.0
      %1508 = vmatprep.subr.mxu0 0.0
      %1509 = vmatpush1.msra.mxu0 0.0
      %1510 = vmatprep.subr.mxu0 0.0
      %1511 = vmatpush1.msra.mxu0 0.0
      %1512 = vmatprep.subr.mxu0 0.0
      %1513 = vmatpush1.msra.mxu0 0.0
      %1514 = vmatprep.subr.mxu0 0.0
      %1515 = vmatpush1.msra.mxu0 0.0
      %1516 = vmatprep.subr.mxu0 0.0
      %1517 = vmatpush1.msra.mxu0 0.0
      %1518 = vmatprep.subr.mxu0 0.0
      %1519 = vmatpush1.msra.mxu0 0.0
      %1520 = vmatprep.subr.mxu0 0.0
      %1521 = vmatpush1.msra.mxu0 0.0
      %1522 = vmatprep.subr.mxu0 0.0
      %1523 = vmatpush1.msra.mxu0 0.0
      %1524 = vmatprep.subr.mxu0 0.0
      %1525 = vmatpush1.msra.mxu0 0.0
      %1526 = vmatprep.subr.mxu0 0.0
      %1527 = vmatpush1.msra.mxu0 0.0
      %1528 = vmatprep.subr.mxu0 0.0
      %1529 = vmatpush1.msra.mxu0 0.0
      %1530 = vmatprep.subr.mxu0 0.0
      %1531 = vmatpush1.msra.mxu0 0.0
      %1532 = vmatprep.subr.mxu0 0.0
      %1533 = vmatpush1.msra.mxu0 0.0
      %1534 = vmatprep.subr.mxu0 0.0
      %1535 = vmatpush1.msra.mxu0 0.0
      %1536 = vmatprep.subr.mxu0 0.0
      %1537 = vmatpush1.msra.mxu0 0.0
      %1538 = vmatprep.subr.mxu0 0.0
      %1539 = vmatpush1.msra.mxu0 0.0
      %1540 = vmatprep.mubr.f32.mxu0 0.0
      %1541 = vmatmul.mubr.f32.gmra.mrb[0].mxu0 %v1474
      %v1542 = vpop.f32.mrb[0].mxu0
      %v1543 = vadd.f32 0.0, %v1542
      %v1544 = vpop.f32.mrb[0].mxu0
      %v1545 = vadd.f32 0.0, %v1544
      %1546 = vdwg.mxu0
      %v1547 = vadd.f32 %v1455, %v1543
      %v1548 = vadd.f32 %v1457, %v1545
      %1549 = vrot.lane.b32.xlu0 %v1289, 112
      %v1550 = vpop.permute.xlu0 %1549
      %1551 = vrot.lane.b32.xlu0 %v1290, 112
      %v1552 = vpop.permute.xlu0 %1551
      %1553 = vrot.lane.b32.xlu0 %v1294, 112
      %v1554 = vpop.permute.xlu0 %1553
      %v1555 = vsel %vm684, %v1550, %v1552
      %v1556 = vsel %vm684, %v1552, %v1554
      %v1559 = vsel %vm397, %v1555, 0.0
      %v1560 = vsel %vm398, %v1556, 0.0
      %s1561 = scalar_lea.vmem %s4, 24
      %v1562 = vld [vmem:[%s1561] sm:$0xff]
      %v1564 = vsel %vm1310, %v1562, 0
      %1566 = vmatprep.subr.mxu0 %v1560
      %1567 = vmatpush1.msra.mxu0 %v1559
      %1568 = vmatprep.subr.mxu0 0.0
      %1569 = vmatpush1.msra.mxu0 0.0
      %1570 = vmatprep.subr.mxu0 0.0
      %1571 = vmatpush1.msra.mxu0 0.0
      %1572 = vmatprep.subr.mxu0 0.0
      %1573 = vmatpush1.msra.mxu0 0.0
      %1574 = vmatprep.subr.mxu0 0.0
      %1575 = vmatpush1.msra.mxu0 0.0
      %1576 = vmatprep.subr.mxu0 0.0
      %1577 = vmatpush1.msra.mxu0 0.0
      %1578 = vmatprep.subr.mxu0 0.0
      %1579 = vmatpush1.msra.mxu0 0.0
      %1580 = vmatprep.subr.mxu0 0.0
      %1581 = vmatpush1.msra.mxu0 0.0
      %1582 = vmatprep.subr.mxu0 0.0
      %1583 = vmatpush1.msra.mxu0 0.0
      %1584 = vmatprep.subr.mxu0 0.0
      %1585 = vmatpush1.msra.mxu0 0.0
      %1586 = vmatprep.subr.mxu0 0.0
      %1587 = vmatpush1.msra.mxu0 0.0
      %1588 = vmatprep.subr.mxu0 0.0
      %1589 = vmatpush1.msra.mxu0 0.0
      %1590 = vmatprep.subr.mxu0 0.0
      %1591 = vmatpush1.msra.mxu0 0.0
      %1592 = vmatprep.subr.mxu0 0.0
      %1593 = vmatpush1.msra.mxu0 0.0
      %1594 = vmatprep.subr.mxu0 0.0
      %1595 = vmatpush1.msra.mxu0 0.0
      %1596 = vmatprep.subr.mxu0 0.0
      %1597 = vmatpush1.msra.mxu0 0.0
      %1598 = vmatprep.subr.mxu0 0.0
      %1599 = vmatpush1.msra.mxu0 0.0
      %1600 = vmatprep.subr.mxu0 0.0
      %1601 = vmatpush1.msra.mxu0 0.0
      %1602 = vmatprep.subr.mxu0 0.0
      %1603 = vmatpush1.msra.mxu0 0.0
      %1604 = vmatprep.subr.mxu0 0.0
      %1605 = vmatpush1.msra.mxu0 0.0
      %1606 = vmatprep.subr.mxu0 0.0
      %1607 = vmatpush1.msra.mxu0 0.0
      %1608 = vmatprep.subr.mxu0 0.0
      %1609 = vmatpush1.msra.mxu0 0.0
      %1610 = vmatprep.subr.mxu0 0.0
      %1611 = vmatpush1.msra.mxu0 0.0
      %1612 = vmatprep.subr.mxu0 0.0
      %1613 = vmatpush1.msra.mxu0 0.0
      %1614 = vmatprep.subr.mxu0 0.0
      %1615 = vmatpush1.msra.mxu0 0.0
      %1616 = vmatprep.subr.mxu0 0.0
      %1617 = vmatpush1.msra.mxu0 0.0
      %1618 = vmatprep.subr.mxu0 0.0
      %1619 = vmatpush1.msra.mxu0 0.0
      %1620 = vmatprep.subr.mxu0 0.0
      %1621 = vmatpush1.msra.mxu0 0.0
      %1622 = vmatprep.subr.mxu0 0.0
      %1623 = vmatpush1.msra.mxu0 0.0
      %1624 = vmatprep.subr.mxu0 0.0
      %1625 = vmatpush1.msra.mxu0 0.0
      %1626 = vmatprep.subr.mxu0 0.0
      %1627 = vmatpush1.msra.mxu0 0.0
      %1628 = vmatprep.subr.mxu0 0.0
      %1629 = vmatpush1.msra.mxu0 0.0
      %1630 = vmatprep.mubr.f32.mxu0 0.0
      %1631 = vmatmul.mubr.f32.gmra.mrb[0].mxu0 %v1564
      %v1632 = vpop.f32.mrb[0].mxu0
      %v1633 = vadd.f32 0.0, %v1632
      %v1634 = vpop.f32.mrb[0].mxu0
      %v1635 = vadd.f32 0.0, %v1634
      %1636 = vdwg.mxu0
      %v1637 = vadd.f32 %v1547, %v1633
      %v1638 = vadd.f32 %v1548, %v1635
      %s1639 = scalar_lea.vmem %s4, 32
      %v1640 = vld [vmem:[%s1639] sm:$0xff]
      %1641 = vrot.lane.b32.xlu0 %v1289, 111
      %v1642 = vpop.permute.xlu0 %1641
      %1643 = vrot.lane.b32.xlu0 %v1290, 111
      %v1644 = vpop.permute.xlu0 %1643
      %1645 = vrot.lane.b32.xlu0 %v1294, 111
      %v1646 = vpop.permute.xlu0 %1645
      %v1647 = vsel %vm783, %v1642, %v1644
      %v1648 = vsel %vm783, %v1644, %v1646
      %v1652 = vsel %vm1310, %v1640, 0
      %1654 = vmatprep.subr.mxu0 %v1648
      %1655 = vmatpush1.msra.mxu0 %v1647
      %1656 = vmatprep.subr.mxu0 0.0
      %1657 = vmatpush1.msra.mxu0 0.0
      %1658 = vmatprep.subr.mxu0 0.0
      %1659 = vmatpush1.msra.mxu0 0.0
      %1660 = vmatprep.subr.mxu0 0.0
      %1661 = vmatpush1.msra.mxu0 0.0
      %1662 = vmatprep.subr.mxu0 0.0
      %1663 = vmatpush1.msra.mxu0 0.0
      %1664 = vmatprep.subr.mxu0 0.0
      %1665 = vmatpush1.msra.mxu0 0.0
      %1666 = vmatprep.subr.mxu0 0.0
      %1667 = vmatpush1.msra.mxu0 0.0
      %1668 = vmatprep.subr.mxu0 0.0
      %1669 = vmatpush1.msra.mxu0 0.0
      %1670 = vmatprep.subr.mxu0 0.0
      %1671 = vmatpush1.msra.mxu0 0.0
      %1672 = vmatprep.subr.mxu0 0.0
      %1673 = vmatpush1.msra.mxu0 0.0
      %1674 = vmatprep.subr.mxu0 0.0
      %1675 = vmatpush1.msra.mxu0 0.0
      %1676 = vmatprep.subr.mxu0 0.0
      %1677 = vmatpush1.msra.mxu0 0.0
      %1678 = vmatprep.subr.mxu0 0.0
      %1679 = vmatpush1.msra.mxu0 0.0
      %1680 = vmatprep.subr.mxu0 0.0
      %1681 = vmatpush1.msra.mxu0 0.0
      %1682 = vmatprep.subr.mxu0 0.0
      %1683 = vmatpush1.msra.mxu0 0.0
      %1684 = vmatprep.subr.mxu0 0.0
      %1685 = vmatpush1.msra.mxu0 0.0
      %1686 = vmatprep.subr.mxu0 0.0
      %1687 = vmatpush1.msra.mxu0 0.0
      %1688 = vmatprep.subr.mxu0 0.0
      %1689 = vmatpush1.msra.mxu0 0.0
      %1690 = vmatprep.subr.mxu0 0.0
      %1691 = vmatpush1.msra.mxu0 0.0
      %1692 = vmatprep.subr.mxu0 0.0
      %1693 = vmatpush1.msra.mxu0 0.0
      %1694 = vmatprep.subr.mxu0 0.0
      %1695 = vmatpush1.msra.mxu0 0.0
      %1696 = vmatprep.subr.mxu0 0.0
      %1697 = vmatpush1.msra.mxu0 0.0
      %1698 = vmatprep.subr.mxu0 0.0
      %1699 = vmatpush1.msra.mxu0 0.0
      %1700 = vmatprep.subr.mxu0 0.0
      %1701 = vmatpush1.msra.mxu0 0.0
      %1702 = vmatprep.subr.mxu0 0.0
      %1703 = vmatpush1.msra.mxu0 0.0
      %1704 = vmatprep.subr.mxu0 0.0
      %1705 = vmatpush1.msra.mxu0 0.0
      %1706 = vmatprep.subr.mxu0 0.0
      %1707 = vmatpush1.msra.mxu0 0.0
      %1708 = vmatprep.subr.mxu0 0.0
      %1709 = vmatpush1.msra.mxu0 0.0
      %1710 = vmatprep.subr.mxu0 0.0
      %1711 = vmatpush1.msra.mxu0 0.0
      %1712 = vmatprep.subr.mxu0 0.0
      %1713 = vmatpush1.msra.mxu0 0.0
      %1714 = vmatprep.subr.mxu0 0.0
      %1715 = vmatpush1.msra.mxu0 0.0
      %1716 = vmatprep.subr.mxu0 0.0
      %1717 = vmatpush1.msra.mxu0 0.0
      %1718 = vmatprep.mubr.f32.mxu0 0.0
      %1719 = vmatmul.mubr.f32.gmra.mrb[0].mxu0 %v1652
      %v1720 = vpop.f32.mrb[0].mxu0
      %v1721 = vadd.f32 0.0, %v1720
      %v1722 = vpop.f32.mrb[0].mxu0
      %v1723 = vadd.f32 0.0, %v1722
      %1724 = vdwg.mxu0
      %v1725 = vadd.f32 %v1637, %v1721
      %v1726 = vadd.f32 %v1638, %v1723
      %1727 = vrot.lane.b32.xlu0 %v1289, 110
      %v1728 = vpop.permute.xlu0 %1727
      %1729 = vrot.lane.b32.xlu0 %v1290, 110
      %v1730 = vpop.permute.xlu0 %1729
      %1731 = vrot.lane.b32.xlu0 %v1294, 110
      %v1732 = vpop.permute.xlu0 %1731
      %v1733 = vsel %vm872, %v1728, %v1730
      %v1734 = vsel %vm872, %v1730, %v1732
      %v1737 = vsel %vm579, %v1733, 0.0
      %v1738 = vsel %vm580, %v1734, 0.0
      %s1739 = scalar_lea.vmem %s4, 40
      %v1740 = vld [vmem:[%s1739] sm:$0xff]
      %v1742 = vsel %vm1310, %v1740, 0
      %1744 = vmatprep.subr.mxu0 %v1738
      %1745 = vmatpush1.msra.mxu0 %v1737
      %1746 = vmatprep.subr.mxu0 0.0
      %1747 = vmatpush1.msra.mxu0 0.0
      %1748 = vmatprep.subr.mxu0 0.0
      %1749 = vmatpush1.msra.mxu0 0.0
      %1750 = vmatprep.subr.mxu0 0.0
      %1751 = vmatpush1.msra.mxu0 0.0
      %1752 = vmatprep.subr.mxu0 0.0
      %1753 = vmatpush1.msra.mxu0 0.0
      %1754 = vmatprep.subr.mxu0 0.0
      %1755 = vmatpush1.msra.mxu0 0.0
      %1756 = vmatprep.subr.mxu0 0.0
      %1757 = vmatpush1.msra.mxu0 0.0
      %1758 = vmatprep.subr.mxu0 0.0
      %1759 = vmatpush1.msra.mxu0 0.0
      %1760 = vmatprep.subr.mxu0 0.0
      %1761 = vmatpush1.msra.mxu0 0.0
      %1762 = vmatprep.subr.mxu0 0.0
      %1763 = vmatpush1.msra.mxu0 0.0
      %1764 = vmatprep.subr.mxu0 0.0
      %1765 = vmatpush1.msra.mxu0 0.0
      %1766 = vmatprep.subr.mxu0 0.0
      %1767 = vmatpush1.msra.mxu0 0.0
      %1768 = vmatprep.subr.mxu0 0.0
      %1769 = vmatpush1.msra.mxu0 0.0
      %1770 = vmatprep.subr.mxu0 0.0
      %1771 = vmatpush1.msra.mxu0 0.0
      %1772 = vmatprep.subr.mxu0 0.0
      %1773 = vmatpush1.msra.mxu0 0.0
      %1774 = vmatprep.subr.mxu0 0.0
      %1775 = vmatpush1.msra.mxu0 0.0
      %1776 = vmatprep.subr.mxu0 0.0
      %1777 = vmatpush1.msra.mxu0 0.0
      %1778 = vmatprep.subr.mxu0 0.0
      %1779 = vmatpush1.msra.mxu0 0.0
      %1780 = vmatprep.subr.mxu0 0.0
      %1781 = vmatpush1.msra.mxu0 0.0
      %1782 = vmatprep.subr.mxu0 0.0
      %1783 = vmatpush1.msra.mxu0 0.0
      %1784 = vmatprep.subr.mxu0 0.0
      %1785 = vmatpush1.msra.mxu0 0.0
      %1786 = vmatprep.subr.mxu0 0.0
      %1787 = vmatpush1.msra.mxu0 0.0
      %1788 = vmatprep.subr.mxu0 0.0
      %1789 = vmatpush1.msra.mxu0 0.0
      %1790 = vmatprep.subr.mxu0 0.0
      %1791 = vmatpush1.msra.mxu0 0.0
      %1792 = vmatprep.subr.mxu0 0.0
      %1793 = vmatpush1.msra.mxu0 0.0
      %1794 = vmatprep.subr.mxu0 0.0
      %1795 = vmatpush1.msra.mxu0 0.0
      %1796 = vmatprep.subr.mxu0 0.0
      %1797 = vmatpush1.msra.mxu0 0.0
      %1798 = vmatprep.subr.mxu0 0.0
      %1799 = vmatpush1.msra.mxu0 0.0
      %1800 = vmatprep.subr.mxu0 0.0
      %1801 = vmatpush1.msra.mxu0 0.0
      %1802 = vmatprep.subr.mxu0 0.0
      %1803 = vmatpush1.msra.mxu0 0.0
      %1804 = vmatprep.subr.mxu0 0.0
      %1805 = vmatpush1.msra.mxu0 0.0
      %1806 = vmatprep.subr.mxu0 0.0
      %1807 = vmatpush1.msra.mxu0 0.0
      %1808 = vmatprep.mubr.f32.mxu0 0.0
      %1809 = vmatmul.mubr.f32.gmra.mrb[0].mxu0 %v1742
      %v1810 = vpop.f32.mrb[0].mxu0
      %v1811 = vadd.f32 0.0, %v1810
      %v1812 = vpop.f32.mrb[0].mxu0
      %v1813 = vadd.f32 0.0, %v1812
      %1814 = vdwg.mxu0
      %v1815 = vadd.f32 %v1725, %v1811
      %v1816 = vadd.f32 %v1726, %v1813
      %1817 = vrot.lane.b32.xlu0 %v1289, 96
      %v1818 = vpop.permute.xlu0 %1817
      %1819 = vrot.lane.b32.xlu0 %v1290, 96
      %v1820 = vpop.permute.xlu0 %1819
      %1821 = vrot.lane.b32.xlu0 %v1294, 96
      %v1822 = vpop.permute.xlu0 %1821
      %v1823 = vsel %vm969, %v1818, %v1820
      %v1824 = vsel %vm969, %v1820, %v1822
      %v1827 = vsel %vm397, %v1823, 0.0
      %v1828 = vsel %vm398, %v1824, 0.0
      %s1829 = scalar_lea.vmem %s4, 48
      %v1830 = vld [vmem:[%s1829] sm:$0xff]
      %v1832 = vsel %vm1310, %v1830, 0
      %1834 = vmatprep.subr.mxu0 %v1828
      %1835 = vmatpush1.msra.mxu0 %v1827
      %1836 = vmatprep.subr.mxu0 0.0
      %1837 = vmatpush1.msra.mxu0 0.0
      %1838 = vmatprep.subr.mxu0 0.0
      %1839 = vmatpush1.msra.mxu0 0.0
      %1840 = vmatprep.subr.mxu0 0.0
      %1841 = vmatpush1.msra.mxu0 0.0
      %1842 = vmatprep.subr.mxu0 0.0
      %1843 = vmatpush1.msra.mxu0 0.0
      %1844 = vmatprep.subr.mxu0 0.0
      %1845 = vmatpush1.msra.mxu0 0.0
      %1846 = vmatprep.subr.mxu0 0.0
      %1847 = vmatpush1.msra.mxu0 0.0
      %1848 = vmatprep.subr.mxu0 0.0
      %1849 = vmatpush1.msra.mxu0 0.0
      %1850 = vmatprep.subr.mxu0 0.0
      %1851 = vmatpush1.msra.mxu0 0.0
      %1852 = vmatprep.subr.mxu0 0.0
      %1853 = vmatpush1.msra.mxu0 0.0
      %1854 = vmatprep.subr.mxu0 0.0
      %1855 = vmatpush1.msra.mxu0 0.0
      %1856 = vmatprep.subr.mxu0 0.0
      %1857 = vmatpush1.msra.mxu0 0.0
      %1858 = vmatprep.subr.mxu0 0.0
      %1859 = vmatpush1.msra.mxu0 0.0
      %1860 = vmatprep.subr.mxu0 0.0
      %1861 = vmatpush1.msra.mxu0 0.0
      %1862 = vmatprep.subr.mxu0 0.0
      %1863 = vmatpush1.msra.mxu0 0.0
      %1864 = vmatprep.subr.mxu0 0.0
      %1865 = vmatpush1.msra.mxu0 0.0
      %1866 = vmatprep.subr.mxu0 0.0
      %1867 = vmatpush1.msra.mxu0 0.0
      %1868 = vmatprep.subr.mxu0 0.0
      %1869 = vmatpush1.msra.mxu0 0.0
      %1870 = vmatprep.subr.mxu0 0.0
      %1871 = vmatpush1.msra.mxu0 0.0
      %1872 = vmatprep.subr.mxu0 0.0
      %1873 = vmatpush1.msra.mxu0 0.0
      %1874 = vmatprep.subr.mxu0 0.0
      %1875 = vmatpush1.msra.mxu0 0.0
      %1876 = vmatprep.subr.mxu0 0.0
      %1877 = vmatpush1.msra.mxu0 0.0
      %1878 = vmatprep.subr.mxu0 0.0
      %1879 = vmatpush1.msra.mxu0 0.0
      %1880 = vmatprep.subr.mxu0 0.0
      %1881 = vmatpush1.msra.mxu0 0.0
      %1882 = vmatprep.subr.mxu0 0.0
      %1883 = vmatpush1.msra.mxu0 0.0
      %1884 = vmatprep.subr.mxu0 0.0
      %1885 = vmatpush1.msra.mxu0 0.0
      %1886 = vmatprep.subr.mxu0 0.0
      %1887 = vmatpush1.msra.mxu0 0.0
      %1888 = vmatprep.subr.mxu0 0.0
      %1889 = vmatpush1.msra.mxu0 0.0
      %1890 = vmatprep.subr.mxu0 0.0
      %1891 = vmatpush1.msra.mxu0 0.0
      %1892 = vmatprep.subr.mxu0 0.0
      %1893 = vmatpush1.msra.mxu0 0.0
      %1894 = vmatprep.subr.mxu0 0.0
      %1895 = vmatpush1.msra.mxu0 0.0
      %1896 = vmatprep.subr.mxu0 0.0
      %1897 = vmatpush1.msra.mxu0 0.0
      %1898 = vmatprep.mubr.f32.mxu0 0.0
      %1899 = vmatmul.mubr.f32.gmra.mrb[0].mxu0 %v1832
      %v1900 = vpop.f32.mrb[0].mxu0
      %v1901 = vadd.f32 0.0, %v1900
      %v1902 = vpop.f32.mrb[0].mxu0
      %v1903 = vadd.f32 0.0, %v1902
      %1904 = vdwg.mxu0
      %v1905 = vadd.f32 %v1815, %v1901
      %v1906 = vadd.f32 %v1816, %v1903
      %s1907 = scalar_lea.vmem %s4, 56
      %v1908 = vld [vmem:[%s1907] sm:$0xff]
      %1909 = vrot.lane.b32.xlu0 %v1289, 95
      %v1910 = vpop.permute.xlu0 %1909
      %1911 = vrot.lane.b32.xlu0 %v1290, 95
      %v1912 = vpop.permute.xlu0 %1911
      %1913 = vrot.lane.b32.xlu0 %v1294, 95
      %v1914 = vpop.permute.xlu0 %1913
      %v1915 = vsel %vm1068, %v1910, %v1912
      %v1916 = vsel %vm1068, %v1912, %v1914
      %v1920 = vsel %vm1310, %v1908, 0
      %1922 = vmatprep.subr.mxu0 %v1916
      %1923 = vmatpush1.msra.mxu0 %v1915
      %1924 = vmatprep.subr.mxu0 0.0
      %1925 = vmatpush1.msra.mxu0 0.0
      %1926 = vmatprep.subr.mxu0 0.0
      %1927 = vmatpush1.msra.mxu0 0.0
      %1928 = vmatprep.subr.mxu0 0.0
      %1929 = vmatpush1.msra.mxu0 0.0
      %1930 = vmatprep.subr.mxu0 0.0
      %1931 = vmatpush1.msra.mxu0 0.0
      %1932 = vmatprep.subr.mxu0 0.0
      %1933 = vmatpush1.msra.mxu0 0.0
      %1934 = vmatprep.subr.mxu0 0.0
      %1935 = vmatpush1.msra.mxu0 0.0
      %1936 = vmatprep.subr.mxu0 0.0
      %1937 = vmatpush1.msra.mxu0 0.0
      %1938 = vmatprep.subr.mxu0 0.0
      %1939 = vmatpush1.msra.mxu0 0.0
      %1940 = vmatprep.subr.mxu0 0.0
      %1941 = vmatpush1.msra.mxu0 0.0
      %1942 = vmatprep.subr.mxu0 0.0
      %1943 = vmatpush1.msra.mxu0 0.0
      %1944 = vmatprep.subr.mxu0 0.0
      %1945 = vmatpush1.msra.mxu0 0.0
      %1946 = vmatprep.subr.mxu0 0.0
      %1947 = vmatpush1.msra.mxu0 0.0
      %1948 = vmatprep.subr.mxu0 0.0
      %1949 = vmatpush1.msra.mxu0 0.0
      %1950 = vmatprep.subr.mxu0 0.0
      %1951 = vmatpush1.msra.mxu0 0.0
      %1952 = vmatprep.subr.mxu0 0.0
      %1953 = vmatpush1.msra.mxu0 0.0
      %1954 = vmatprep.subr.mxu0 0.0
      %1955 = vmatpush1.msra.mxu0 0.0
      %1956 = vmatprep.subr.mxu0 0.0
      %1957 = vmatpush1.msra.mxu0 0.0
      %1958 = vmatprep.subr.mxu0 0.0
      %1959 = vmatpush1.msra.mxu0 0.0
      %1960 = vmatprep.subr.mxu0 0.0
      %1961 = vmatpush1.msra.mxu0 0.0
      %1962 = vmatprep.subr.mxu0 0.0
      %1963 = vmatpush1.msra.mxu0 0.0
      %1964 = vmatprep.subr.mxu0 0.0
      %1965 = vmatpush1.msra.mxu0 0.0
      %1966 = vmatprep.subr.mxu0 0.0
      %1967 = vmatpush1.msra.mxu0 0.0
      %1968 = vmatprep.subr.mxu0 0.0
      %1969 = vmatpush1.msra.mxu0 0.0
      %1970 = vmatprep.subr.mxu0 0.0
      %1971 = vmatpush1.msra.mxu0 0.0
      %1972 = vmatprep.subr.mxu0 0.0
      %1973 = vmatpush1.msra.mxu0 0.0
      %1974 = vmatprep.subr.mxu0 0.0
      %1975 = vmatpush1.msra.mxu0 0.0
      %1976 = vmatprep.subr.mxu0 0.0
      %1977 = vmatpush1.msra.mxu0 0.0
      %1978 = vmatprep.subr.mxu0 0.0
      %1979 = vmatpush1.msra.mxu0 0.0
      %1980 = vmatprep.subr.mxu0 0.0
      %1981 = vmatpush1.msra.mxu0 0.0
      %1982 = vmatprep.subr.mxu0 0.0
      %1983 = vmatpush1.msra.mxu0 0.0
      %1984 = vmatprep.subr.mxu0 0.0
      %1985 = vmatpush1.msra.mxu0 0.0
      %1986 = vmatprep.mubr.f32.mxu0 0.0
      %1987 = vmatmul.mubr.f32.gmra.mrb[0].mxu0 %v1920
      %v1988 = vpop.f32.mrb[0].mxu0
      %v1989 = vadd.f32 0.0, %v1988
      %v1990 = vpop.f32.mrb[0].mxu0
      %v1991 = vadd.f32 0.0, %v1990
      %1992 = vdwg.mxu0
      %v1993 = vadd.f32 %v1905, %v1989
      %v1994 = vadd.f32 %v1906, %v1991
      %1995 = vrot.lane.b32.xlu0 %v1289, 94
      %v1996 = vpop.permute.xlu0 %1995
      %1997 = vrot.lane.b32.xlu0 %v1290, 94
      %v1998 = vpop.permute.xlu0 %1997
      %1999 = vrot.lane.b32.xlu0 %v1294, 94
      %v2000 = vpop.permute.xlu0 %1999
      %v2001 = vsel %vm1157, %v1996, %v1998
      %v2002 = vsel %vm1157, %v1998, %v2000
      %v2005 = vsel %vm579, %v2001, 0.0
      %v2006 = vsel %vm580, %v2002, 0.0
      %s2007 = scalar_lea.vmem %s4, 64
      %v2008 = vld [vmem:[%s2007] sm:$0xff]
      %v2010 = vsel %vm1310, %v2008, 0
      %2012 = vmatprep.subr.mxu0 %v2006
      %2013 = vmatpush1.msra.mxu0 %v2005
      %2014 = vmatprep.subr.mxu0 0.0
      %2015 = vmatpush1.msra.mxu0 0.0
      %2016 = vmatprep.subr.mxu0 0.0
      %2017 = vmatpush1.msra.mxu0 0.0
      %2018 = vmatprep.subr.mxu0 0.0
      %2019 = vmatpush1.msra.mxu0 0.0
      %2020 = vmatprep.subr.mxu0 0.0
      %2021 = vmatpush1.msra.mxu0 0.0
      %2022 = vmatprep.subr.mxu0 0.0
      %2023 = vmatpush1.msra.mxu0 0.0
      %2024 = vmatprep.subr.mxu0 0.0
      %2025 = vmatpush1.msra.mxu0 0.0
      %2026 = vmatprep.subr.mxu0 0.0
      %2027 = vmatpush1.msra.mxu0 0.0
      %2028 = vmatprep.subr.mxu0 0.0
      %2029 = vmatpush1.msra.mxu0 0.0
      %2030 = vmatprep.subr.mxu0 0.0
      %2031 = vmatpush1.msra.mxu0 0.0
      %2032 = vmatprep.subr.mxu0 0.0
      %2033 = vmatpush1.msra.mxu0 0.0
      %2034 = vmatprep.subr.mxu0 0.0
      %2035 = vmatpush1.msra.mxu0 0.0
      %2036 = vmatprep.subr.mxu0 0.0
      %2037 = vmatpush1.msra.mxu0 0.0
      %2038 = vmatprep.subr.mxu0 0.0
      %2039 = vmatpush1.msra.mxu0 0.0
      %2040 = vmatprep.subr.mxu0 0.0
      %2041 = vmatpush1.msra.mxu0 0.0
      %2042 = vmatprep.subr.mxu0 0.0
      %2043 = vmatpush1.msra.mxu0 0.0
      %2044 = vmatprep.subr.mxu0 0.0
      %2045 = vmatpush1.msra.mxu0 0.0
      %2046 = vmatprep.subr.mxu0 0.0
      %2047 = vmatpush1.msra.mxu0 0.0
      %2048 = vmatprep.subr.mxu0 0.0
      %2049 = vmatpush1.msra.mxu0 0.0
      %2050 = vmatprep.subr.mxu0 0.0
      %2051 = vmatpush1.msra.mxu0 0.0
      %2052 = vmatprep.subr.mxu0 0.0
      %2053 = vmatpush1.msra.mxu0 0.0
      %2054 = vmatprep.subr.mxu0 0.0
      %2055 = vmatpush1.msra.mxu0 0.0
      %2056 = vmatprep.subr.mxu0 0.0
      %2057 = vmatpush1.msra.mxu0 0.0
      %2058 = vmatprep.subr.mxu0 0.0
      %2059 = vmatpush1.msra.mxu0 0.0
      %2060 = vmatprep.subr.mxu0 0.0
      %2061 = vmatpush1.msra.mxu0 0.0
      %2062 = vmatprep.subr.mxu0 0.0
      %2063 = vmatpush1.msra.mxu0 0.0
      %2064 = vmatprep.subr.mxu0 0.0
      %2065 = vmatpush1.msra.mxu0 0.0
      %2066 = vmatprep.subr.mxu0 0.0
      %2067 = vmatpush1.msra.mxu0 0.0
      %2068 = vmatprep.subr.mxu0 0.0
      %2069 = vmatpush1.msra.mxu0 0.0
      %2070 = vmatprep.subr.mxu0 0.0
      %2071 = vmatpush1.msra.mxu0 0.0
      %2072 = vmatprep.subr.mxu0 0.0
      %2073 = vmatpush1.msra.mxu0 0.0
      %2074 = vmatprep.subr.mxu0 0.0
      %2075 = vmatpush1.msra.mxu0 0.0
      %2076 = vmatprep.mubr.f32.mxu0 0.0
      %2077 = vmatmul.mubr.f32.gmra.mrb[0].mxu0 %v2010
      %v2078 = vpop.f32.mrb[0].mxu0
      %v2079 = vadd.f32 0.0, %v2078
      %v2080 = vpop.f32.mrb[0].mxu0
      %v2081 = vadd.f32 0.0, %v2080
      %2082 = vdwg.mxu0
      %v2083 = vadd.f32 %v1993, %v2079
      %v2084 = vadd.f32 %v1994, %v2081
      %2086 = vset.pattern.permute.xlu0 0
      %2087 = vperm.xlu0 %2086, %v1274
      %v2088 = vpop.permute.xlu0 %2087
      %v2090 = vadd.f32 %v2083, %v2088
      %v2091 = vadd.f32 %v2084, %v2088
      %v2092 = vmax.f32 %v2090, 0.0
      %v2093 = vmax.f32 %v2091, 0.0
      %s2094 = scalar_lea.vmem %s6, 8
      %v2095 = vld [vmem:[%s2094] sm:$0xff]
      %2097 = vset.pattern.permute.xlu0 0
      %2098 = vperm.xlu0 %2097, %v2095
      %v2099 = vpop.permute.xlu0 %2098
      %v2101 = vmul.f32 %v2092, %v2099
      %v2102 = vmul.f32 %v2093, %v2099
      %s2103 = scalar_lea.vmem %s7, 8
      %v2104 = vld [vmem:[%s2103] sm:$0xff]
      %2106 = vset.pattern.permute.xlu0 0
      %2107 = vperm.xlu0 %2106, %v2104
      %v2108 = vpop.permute.xlu0 %2107
      %v2110 = vadd.f32 %v2101, %v2108
      %v2111 = vadd.f32 %v2102, %v2108
      %s2112 = scalar_lea.vmem %s5, 16
      %v2113 = vld [vmem:[%s2112] sm:$0xff]
      %2116 = vrot.lane.b32.xlu0 %v2110, 17
      %v2117 = vpop.permute.xlu0 %2116
      %2118 = vrot.lane.b32.xlu0 %v2111, 17
      %v2119 = vpop.permute.xlu0 %2118
      %v2120 = vsel %vm383, %v2117, %v2119
      %2124 = vst.msk [vmem:[#allocation2] sm:$0xff] %vm1285, %v2117
      %2125 = vst [vmem:[#allocation2 + $0x8] sm:$0xff] %v2120
      %2126 = vst.msk [vmem:[#allocation2 + $0x10] sm:$0xff] %vm383, %v2119
      %v2127 = vld [vmem:[#allocation2] sm:$0xff]
      %v2128 = vld [vmem:[#allocation2 + $0x8] sm:$0xff]
      %v2129 = vsel %vm397, %v2127, 0.0
      %v2130 = vsel %vm398, %v2128, 0.0
      %s2131 = scalar_lea.vmem %s4, 72
      %v2132 = vld [vmem:[%s2131] sm:$0xff]
      %v2133 = vld [vmem:[#allocation2 + $0x10] sm:$0xff]
      %s2134 = scalar_lea.vmem %s4, 80
      %v2135 = vld [vmem:[%s2134] sm:$0xff]
      %2139 = vrot.lane.b32.xlu0 %v2127, 127
      %v2140 = vpop.permute.xlu0 %2139
      %2141 = vrot.lane.b32.xlu0 %v2128, 127
      %v2142 = vpop.permute.xlu0 %2141
      %2143 = vrot.lane.b32.xlu0 %v2133, 127
      %v2144 = vpop.permute.xlu0 %2143
      %v2145 = vsel %vm414, %v2140, %v2142
      %v2146 = vsel %vm414, %v2142, %v2144
      %v2150 = vsel %vm1310, %v2135, 0
      %2152 = vmatprep.subr.mxu0 %v2146
      %2153 = vmatpush1.msra.mxu0 %v2145
      %2154 = vmatprep.subr.mxu0 0.0
      %2155 = vmatpush1.msra.mxu0 0.0
      %2156 = vmatprep.subr.mxu0 0.0
      %2157 = vmatpush1.msra.mxu0 0.0
      %2158 = vmatprep.subr.mxu0 0.0
      %2159 = vmatpush1.msra.mxu0 0.0
      %2160 = vmatprep.subr.mxu0 0.0
      %2161 = vmatpush1.msra.mxu0 0.0
      %2162 = vmatprep.subr.mxu0 0.0
      %2163 = vmatpush1.msra.mxu0 0.0
      %2164 = vmatprep.subr.mxu0 0.0
      %2165 = vmatpush1.msra.mxu0 0.0
      %2166 = vmatprep.subr.mxu0 0.0
      %2167 = vmatpush1.msra.mxu0 0.0
      %2168 = vmatprep.subr.mxu0 0.0
      %2169 = vmatpush1.msra.mxu0 0.0
      %2170 = vmatprep.subr.mxu0 0.0
      %2171 = vmatpush1.msra.mxu0 0.0
      %2172 = vmatprep.subr.mxu0 0.0
      %2173 = vmatpush1.msra.mxu0 0.0
      %2174 = vmatprep.subr.mxu0 0.0
      %2175 = vmatpush1.msra.mxu0 0.0
      %2176 = vmatprep.subr.mxu0 0.0
      %2177 = vmatpush1.msra.mxu0 0.0
      %2178 = vmatprep.subr.mxu0 0.0
      %2179 = vmatpush1.msra.mxu0 0.0
      %2180 = vmatprep.subr.mxu0 0.0
      %2181 = vmatpush1.msra.mxu0 0.0
      %2182 = vmatprep.subr.mxu0 0.0
      %2183 = vmatpush1.msra.mxu0 0.0
      %2184 = vmatprep.subr.mxu0 0.0
      %2185 = vmatpush1.msra.mxu0 0.0
      %2186 = vmatprep.subr.mxu0 0.0
      %2187 = vmatpush1.msra.mxu0 0.0
      %2188 = vmatprep.subr.mxu0 0.0
      %2189 = vmatpush1.msra.mxu0 0.0
      %2190 = vmatprep.subr.mxu0 0.0
      %2191 = vmatpush1.msra.mxu0 0.0
      %2192 = vmatprep.subr.mxu0 0.0
      %2193 = vmatpush1.msra.mxu0 0.0
      %2194 = vmatprep.subr.mxu0 0.0
      %2195 = vmatpush1.msra.mxu0 0.0
      %2196 = vmatprep.subr.mxu0 0.0
      %2197 = vmatpush1.msra.mxu0 0.0
      %2198 = vmatprep.subr.mxu0 0.0
      %2199 = vmatpush1.msra.mxu0 0.0
      %2200 = vmatprep.subr.mxu0 0.0
      %2201 = vmatpush1.msra.mxu0 0.0
      %2202 = vmatprep.subr.mxu0 0.0
      %2203 = vmatpush1.msra.mxu0 0.0
      %2204 = vmatprep.subr.mxu0 0.0
      %2205 = vmatpush1.msra.mxu0 0.0
      %2206 = vmatprep.subr.mxu0 0.0
      %2207 = vmatpush1.msra.mxu0 0.0
      %2208 = vmatprep.subr.mxu0 0.0
      %2209 = vmatpush1.msra.mxu0 0.0
      %2210 = vmatprep.subr.mxu0 0.0
      %2211 = vmatpush1.msra.mxu0 0.0
      %2212 = vmatprep.subr.mxu0 0.0
      %2213 = vmatpush1.msra.mxu0 0.0
      %2214 = vmatprep.subr.mxu0 0.0
      %2215 = vmatpush1.msra.mxu0 0.0
      %2216 = vmatprep.mubr.f32.mxu0 0.0
      %2217 = vmatmul.mubr.f32.gmra.mrb[0].mxu0 %v2150
      %v2218 = vpop.f32.mrb[0].mxu0
      %v2219 = vadd.f32 0.0, %v2218
      %v2220 = vpop.f32.mrb[0].mxu0
      %v2221 = vadd.f32 0.0, %v2220
      %2222 = vdwg.mxu0
      %v2224 = vsel %vm1310, %v2132, 0
      %2226 = vmatprep.subr.mxu0 %v2130
      %2227 = vmatpush1.msra.mxu0 %v2129
      %2228 = vmatprep.subr.mxu0 0.0
      %2229 = vmatpush1.msra.mxu0 0.0
      %2230 = vmatprep.subr.mxu0 0.0
      %2231 = vmatpush1.msra.mxu0 0.0
      %2232 = vmatprep.subr.mxu0 0.0
      %2233 = vmatpush1.msra.mxu0 0.0
      %2234 = vmatprep.subr.mxu0 0.0
      %2235 = vmatpush1.msra.mxu0 0.0
      %2236 = vmatprep.subr.mxu0 0.0
      %2237 = vmatpush1.msra.mxu0 0.0
      %2238 = vmatprep.subr.mxu0 0.0
      %2239 = vmatpush1.msra.mxu0 0.0
      %2240 = vmatprep.subr.mxu0 0.0
      %2241 = vmatpush1.msra.mxu0 0.0
      %2242 = vmatprep.subr.mxu0 0.0
      %2243 = vmatpush1.msra.mxu0 0.0
      %2244 = vmatprep.subr.mxu0 0.0
      %2245 = vmatpush1.msra.mxu0 0.0
      %2246 = vmatprep.subr.mxu0 0.0
      %2247 = vmatpush1.msra.mxu0 0.0
      %2248 = vmatprep.subr.mxu0 0.0
      %2249 = vmatpush1.msra.mxu0 0.0
      %2250 = vmatprep.subr.mxu0 0.0
      %2251 = vmatpush1.msra.mxu0 0.0
      %2252 = vmatprep.subr.mxu0 0.0
      %2253 = vmatpush1.msra.mxu0 0.0
      %2254 = vmatprep.subr.mxu0 0.0
      %2255 = vmatpush1.msra.mxu0 0.0
      %2256 = vmatprep.subr.mxu0 0.0
      %2257 = vmatpush1.msra.mxu0 0.0
      %2258 = vmatprep.subr.mxu0 0.0
      %2259 = vmatpush1.msra.mxu0 0.0
      %2260 = vmatprep.subr.mxu0 0.0
      %2261 = vmatpush1.msra.mxu0 0.0
      %2262 = vmatprep.subr.mxu0 0.0
      %2263 = vmatpush1.msra.mxu0 0.0
      %2264 = vmatprep.subr.mxu0 0.0
      %2265 = vmatpush1.msra.mxu0 0.0
      %2266 = vmatprep.subr.mxu0 0.0
      %2267 = vmatpush1.msra.mxu0 0.0
      %2268 = vmatprep.subr.mxu0 0.0
      %2269 = vmatpush1.msra.mxu0 0.0
      %2270 = vmatprep.subr.mxu0 0.0
      %2271 = vmatpush1.msra.mxu0 0.0
      %2272 = vmatprep.subr.mxu0 0.0
      %2273 = vmatpush1.msra.mxu0 0.0
      %2274 = vmatprep.subr.mxu0 0.0
      %2275 = vmatpush1.msra.mxu0 0.0
      %2276 = vmatprep.subr.mxu0 0.0
      %2277 = vmatpush1.msra.mxu0 0.0
      %2278 = vmatprep.subr.mxu0 0.0
      %2279 = vmatpush1.msra.mxu0 0.0
      %2280 = vmatprep.subr.mxu0 0.0
      %2281 = vmatpush1.msra.mxu0 0.0
      %2282 = vmatprep.subr.mxu0 0.0
      %2283 = vmatpush1.msra.mxu0 0.0
      %2284 = vmatprep.subr.mxu0 0.0
      %2285 = vmatpush1.msra.mxu0 0.0
      %2286 = vmatprep.subr.mxu0 0.0
      %2287 = vmatpush1.msra.mxu0 0.0
      %2288 = vmatprep.subr.mxu0 0.0
      %2289 = vmatpush1.msra.mxu0 0.0
      %2290 = vmatprep.mubr.f32.mxu0 0.0
      %2291 = vmatmul.mubr.f32.gmra.mrb[0].mxu0 %v2224
      %v2292 = vpop.f32.mrb[0].mxu0
      %v2293 = vadd.f32 %v2219, %v2292
      %v2294 = vpop.f32.mrb[0].mxu0
      %v2295 = vadd.f32 %v2221, %v2294
      %2296 = vdwg.mxu0
      %2297 = vrot.lane.b32.xlu0 %v2127, 126
      %v2298 = vpop.permute.xlu0 %2297
      %2299 = vrot.lane.b32.xlu0 %v2128, 126
      %v2300 = vpop.permute.xlu0 %2299
      %2301 = vrot.lane.b32.xlu0 %v2133, 126
      %v2302 = vpop.permute.xlu0 %2301
      %v2303 = vsel %vm587, %v2298, %v2300
      %v2304 = vsel %vm587, %v2300, %v2302
      %v2307 = vsel %vm579, %v2303, 0.0
      %v2308 = vsel %vm580, %v2304, 0.0
      %s2309 = scalar_lea.vmem %s4, 88
      %v2310 = vld [vmem:[%s2309] sm:$0xff]
      %v2312 = vsel %vm1310, %v2310, 0
      %2314 = vmatprep.subr.mxu0 %v2308
      %2315 = vmatpush1.msra.mxu0 %v2307
      %2316 = vmatprep.subr.mxu0 0.0
      %2317 = vmatpush1.msra.mxu0 0.0
      %2318 = vmatprep.subr.mxu0 0.0
      %2319 = vmatpush1.msra.mxu0 0.0
      %2320 = vmatprep.subr.mxu0 0.0
      %2321 = vmatpush1.msra.mxu0 0.0
      %2322 = vmatprep.subr.mxu0 0.0
      %2323 = vmatpush1.msra.mxu0 0.0
      %2324 = vmatprep.subr.mxu0 0.0
      %2325 = vmatpush1.msra.mxu0 0.0
      %2326 = vmatprep.subr.mxu0 0.0
      %2327 = vmatpush1.msra.mxu0 0.0
      %2328 = vmatprep.subr.mxu0 0.0
      %2329 = vmatpush1.msra.mxu0 0.0
      %2330 = vmatprep.subr.mxu0 0.0
      %2331 = vmatpush1.msra.mxu0 0.0
      %2332 = vmatprep.subr.mxu0 0.0
      %2333 = vmatpush1.msra.mxu0 0.0
      %2334 = vmatprep.subr.mxu0 0.0
      %2335 = vmatpush1.msra.mxu0 0.0
      %2336 = vmatprep.subr.mxu0 0.0
      %2337 = vmatpush1.msra.mxu0 0.0
      %2338 = vmatprep.subr.mxu0 0.0
      %2339 = vmatpush1.msra.mxu0 0.0
      %2340 = vmatprep.subr.mxu0 0.0
      %2341 = vmatpush1.msra.mxu0 0.0
      %2342 = vmatprep.subr.mxu0 0.0
      %2343 = vmatpush1.msra.mxu0 0.0
      %2344 = vmatprep.subr.mxu0 0.0
      %2345 = vmatpush1.msra.mxu0 0.0
      %2346 = vmatprep.subr.mxu0 0.0
      %2347 = vmatpush1.msra.mxu0 0.0
      %2348 = vmatprep.subr.mxu0 0.0
      %2349 = vmatpush1.msra.mxu0 0.0
      %2350 = vmatprep.subr.mxu0 0.0
      %2351 = vmatpush1.msra.mxu0 0.0
      %2352 = vmatprep.subr.mxu0 0.0
      %2353 = vmatpush1.msra.mxu0 0.0
      %2354 = vmatprep.subr.mxu0 0.0
      %2355 = vmatpush1.msra.mxu0 0.0
      %2356 = vmatprep.subr.mxu0 0.0
      %2357 = vmatpush1.msra.mxu0 0.0
      %2358 = vmatprep.subr.mxu0 0.0
      %2359 = vmatpush1.msra.mxu0 0.0
      %2360 = vmatprep.subr.mxu0 0.0
      %2361 = vmatpush1.msra.mxu0 0.0
      %2362 = vmatprep.subr.mxu0 0.0
      %2363 = vmatpush1.msra.mxu0 0.0
      %2364 = vmatprep.subr.mxu0 0.0
      %2365 = vmatpush1.msra.mxu0 0.0
      %2366 = vmatprep.subr.mxu0 0.0
      %2367 = vmatpush1.msra.mxu0 0.0
      %2368 = vmatprep.subr.mxu0 0.0
      %2369 = vmatpush1.msra.mxu0 0.0
      %2370 = vmatprep.subr.mxu0 0.0
      %2371 = vmatpush1.msra.mxu0 0.0
      %2372 = vmatprep.subr.mxu0 0.0
      %2373 = vmatpush1.msra.mxu0 0.0
      %2374 = vmatprep.subr.mxu0 0.0
      %2375 = vmatpush1.msra.mxu0 0.0
      %2376 = vmatprep.subr.mxu0 0.0
      %2377 = vmatpush1.msra.mxu0 0.0
      %2378 = vmatprep.mubr.f32.mxu0 0.0
      %2379 = vmatmul.mubr.f32.gmra.mrb[0].mxu0 %v2312
      %v2380 = vpop.f32.mrb[0].mxu0
      %v2381 = vadd.f32 0.0, %v2380
      %v2382 = vpop.f32.mrb[0].mxu0
      %v2383 = vadd.f32 0.0, %v2382
      %2384 = vdwg.mxu0
      %v2385 = vadd.f32 %v2293, %v2381
      %v2386 = vadd.f32 %v2295, %v2383
      %2387 = vrot.lane.b32.xlu0 %v2127, 112
      %v2388 = vpop.permute.xlu0 %2387
      %2389 = vrot.lane.b32.xlu0 %v2128, 112
      %v2390 = vpop.permute.xlu0 %2389
      %2391 = vrot.lane.b32.xlu0 %v2133, 112
      %v2392 = vpop.permute.xlu0 %2391
      %v2393 = vsel %vm684, %v2388, %v2390
      %v2394 = vsel %vm684, %v2390, %v2392
      %v2397 = vsel %vm397, %v2393, 0.0
      %v2398 = vsel %vm398, %v2394, 0.0
      %s2399 = scalar_lea.vmem %s4, 96
      %v2400 = vld [vmem:[%s2399] sm:$0xff]
      %v2402 = vsel %vm1310, %v2400, 0
      %2404 = vmatprep.subr.mxu0 %v2398
      %2405 = vmatpush1.msra.mxu0 %v2397
      %2406 = vmatprep.subr.mxu0 0.0
      %2407 = vmatpush1.msra.mxu0 0.0
      %2408 = vmatprep.subr.mxu0 0.0
      %2409 = vmatpush1.msra.mxu0 0.0
      %2410 = vmatprep.subr.mxu0 0.0
      %2411 = vmatpush1.msra.mxu0 0.0
      %2412 = vmatprep.subr.mxu0 0.0
      %2413 = vmatpush1.msra.mxu0 0.0
      %2414 = vmatprep.subr.mxu0 0.0
      %2415 = vmatpush1.msra.mxu0 0.0
      %2416 = vmatprep.subr.mxu0 0.0
      %2417 = vmatpush1.msra.mxu0 0.0
      %2418 = vmatprep.subr.mxu0 0.0
      %2419 = vmatpush1.msra.mxu0 0.0
      %2420 = vmatprep.subr.mxu0 0.0
      %2421 = vmatpush1.msra.mxu0 0.0
      %2422 = vmatprep.subr.mxu0 0.0
      %2423 = vmatpush1.msra.mxu0 0.0
      %2424 = vmatprep.subr.mxu0 0.0
      %2425 = vmatpush1.msra.mxu0 0.0
      %2426 = vmatprep.subr.mxu0 0.0
      %2427 = vmatpush1.msra.mxu0 0.0
      %2428 = vmatprep.subr.mxu0 0.0
      %2429 = vmatpush1.msra.mxu0 0.0
      %2430 = vmatprep.subr.mxu0 0.0
      %2431 = vmatpush1.msra.mxu0 0.0
      %2432 = vmatprep.subr.mxu0 0.0
      %2433 = vmatpush1.msra.mxu0 0.0
      %2434 = vmatprep.subr.mxu0 0.0
      %2435 = vmatpush1.msra.mxu0 0.0
      %2436 = vmatprep.subr.mxu0 0.0
      %2437 = vmatpush1.msra.mxu0 0.0
      %2438 = vmatprep.subr.mxu0 0.0
      %2439 = vmatpush1.msra.mxu0 0.0
      %2440 = vmatprep.subr.mxu0 0.0
      %2441 = vmatpush1.msra.mxu0 0.0
      %2442 = vmatprep.subr.mxu0 0.0
      %2443 = vmatpush1.msra.mxu0 0.0
      %2444 = vmatprep.subr.mxu0 0.0
      %2445 = vmatpush1.msra.mxu0 0.0
      %2446 = vmatprep.subr.mxu0 0.0
      %2447 = vmatpush1.msra.mxu0 0.0
      %2448 = vmatprep.subr.mxu0 0.0
      %2449 = vmatpush1.msra.mxu0 0.0
      %2450 = vmatprep.subr.mxu0 0.0
      %2451 = vmatpush1.msra.mxu0 0.0
      %2452 = vmatprep.subr.mxu0 0.0
      %2453 = vmatpush1.msra.mxu0 0.0
      %2454 = vmatprep.subr.mxu0 0.0
      %2455 = vmatpush1.msra.mxu0 0.0
      %2456 = vmatprep.subr.mxu0 0.0
      %2457 = vmatpush1.msra.mxu0 0.0
      %2458 = vmatprep.subr.mxu0 0.0
      %2459 = vmatpush1.msra.mxu0 0.0
      %2460 = vmatprep.subr.mxu0 0.0
      %2461 = vmatpush1.msra.mxu0 0.0
      %2462 = vmatprep.subr.mxu0 0.0
      %2463 = vmatpush1.msra.mxu0 0.0
      %2464 = vmatprep.subr.mxu0 0.0
      %2465 = vmatpush1.msra.mxu0 0.0
      %2466 = vmatprep.subr.mxu0 0.0
      %2467 = vmatpush1.msra.mxu0 0.0
      %2468 = vmatprep.mubr.f32.mxu0 0.0
      %2469 = vmatmul.mubr.f32.gmra.mrb[0].mxu0 %v2402
      %v2470 = vpop.f32.mrb[0].mxu0
      %v2471 = vadd.f32 0.0, %v2470
      %v2472 = vpop.f32.mrb[0].mxu0
      %v2473 = vadd.f32 0.0, %v2472
      %2474 = vdwg.mxu0
      %v2475 = vadd.f32 %v2385, %v2471
      %v2476 = vadd.f32 %v2386, %v2473
      %s2477 = scalar_lea.vmem %s4, 104
      %v2478 = vld [vmem:[%s2477] sm:$0xff]
      %2479 = vrot.lane.b32.xlu0 %v2127, 111
      %v2480 = vpop.permute.xlu0 %2479
      %2481 = vrot.lane.b32.xlu0 %v2128, 111
      %v2482 = vpop.permute.xlu0 %2481
      %2483 = vrot.lane.b32.xlu0 %v2133, 111
      %v2484 = vpop.permute.xlu0 %2483
      %v2485 = vsel %vm783, %v2480, %v2482
      %v2486 = vsel %vm783, %v2482, %v2484
      %v2490 = vsel %vm1310, %v2478, 0
      %2492 = vmatprep.subr.mxu0 %v2486
      %2493 = vmatpush1.msra.mxu0 %v2485
      %2494 = vmatprep.subr.mxu0 0.0
      %2495 = vmatpush1.msra.mxu0 0.0
      %2496 = vmatprep.subr.mxu0 0.0
      %2497 = vmatpush1.msra.mxu0 0.0
      %2498 = vmatprep.subr.mxu0 0.0
      %2499 = vmatpush1.msra.mxu0 0.0
      %2500 = vmatprep.subr.mxu0 0.0
      %2501 = vmatpush1.msra.mxu0 0.0
      %2502 = vmatprep.subr.mxu0 0.0
      %2503 = vmatpush1.msra.mxu0 0.0
      %2504 = vmatprep.subr.mxu0 0.0
      %2505 = vmatpush1.msra.mxu0 0.0
      %2506 = vmatprep.subr.mxu0 0.0
      %2507 = vmatpush1.msra.mxu0 0.0
      %2508 = vmatprep.subr.mxu0 0.0
      %2509 = vmatpush1.msra.mxu0 0.0
      %2510 = vmatprep.subr.mxu0 0.0
      %2511 = vmatpush1.msra.mxu0 0.0
      %2512 = vmatprep.subr.mxu0 0.0
      %2513 = vmatpush1.msra.mxu0 0.0
      %2514 = vmatprep.subr.mxu0 0.0
      %2515 = vmatpush1.msra.mxu0 0.0
      %2516 = vmatprep.subr.mxu0 0.0
      %2517 = vmatpush1.msra.mxu0 0.0
      %2518 = vmatprep.subr.mxu0 0.0
      %2519 = vmatpush1.msra.mxu0 0.0
      %2520 = vmatprep.subr.mxu0 0.0
      %2521 = vmatpush1.msra.mxu0 0.0
      %2522 = vmatprep.subr.mxu0 0.0
      %2523 = vmatpush1.msra.mxu0 0.0
      %2524 = vmatprep.subr.mxu0 0.0
      %2525 = vmatpush1.msra.mxu0 0.0
      %2526 = vmatprep.subr.mxu0 0.0
      %2527 = vmatpush1.msra.mxu0 0.0
      %2528 = vmatprep.subr.mxu0 0.0
      %2529 = vmatpush1.msra.mxu0 0.0
      %2530 = vmatprep.subr.mxu0 0.0
      %2531 = vmatpush1.msra.mxu0 0.0
      %2532 = vmatprep.subr.mxu0 0.0
      %2533 = vmatpush1.msra.mxu0 0.0
      %2534 = vmatprep.subr.mxu0 0.0
      %2535 = vmatpush1.msra.mxu0 0.0
      %2536 = vmatprep.subr.mxu0 0.0
      %2537 = vmatpush1.msra.mxu0 0.0
      %2538 = vmatprep.subr.mxu0 0.0
      %2539 = vmatpush1.msra.mxu0 0.0
      %2540 = vmatprep.subr.mxu0 0.0
      %2541 = vmatpush1.msra.mxu0 0.0
      %2542 = vmatprep.subr.mxu0 0.0
      %2543 = vmatpush1.msra.mxu0 0.0
      %2544 = vmatprep.subr.mxu0 0.0
      %2545 = vmatpush1.msra.mxu0 0.0
      %2546 = vmatprep.subr.mxu0 0.0
      %2547 = vmatpush1.msra.mxu0 0.0
      %2548 = vmatprep.subr.mxu0 0.0
      %2549 = vmatpush1.msra.mxu0 0.0
      %2550 = vmatprep.subr.mxu0 0.0
      %2551 = vmatpush1.msra.mxu0 0.0
      %2552 = vmatprep.subr.mxu0 0.0
      %2553 = vmatpush1.msra.mxu0 0.0
      %2554 = vmatprep.subr.mxu0 0.0
      %2555 = vmatpush1.msra.mxu0 0.0
      %2556 = vmatprep.mubr.f32.mxu0 0.0
      %2557 = vmatmul.mubr.f32.gmra.mrb[0].mxu0 %v2490
      %v2558 = vpop.f32.mrb[0].mxu0
      %v2559 = vadd.f32 0.0, %v2558
      %v2560 = vpop.f32.mrb[0].mxu0
      %v2561 = vadd.f32 0.0, %v2560
      %2562 = vdwg.mxu0
      %v2563 = vadd.f32 %v2475, %v2559
      %v2564 = vadd.f32 %v2476, %v2561
      %2565 = vrot.lane.b32.xlu0 %v2127, 110
      %v2566 = vpop.permute.xlu0 %2565
      %2567 = vrot.lane.b32.xlu0 %v2128, 110
      %v2568 = vpop.permute.xlu0 %2567
      %2569 = vrot.lane.b32.xlu0 %v2133, 110
      %v2570 = vpop.permute.xlu0 %2569
      %v2571 = vsel %vm872, %v2566, %v2568
      %v2572 = vsel %vm872, %v2568, %v2570
      %v2575 = vsel %vm579, %v2571, 0.0
      %v2576 = vsel %vm580, %v2572, 0.0
      %s2577 = scalar_lea.vmem %s4, 112
      %v2578 = vld [vmem:[%s2577] sm:$0xff]
      %v2580 = vsel %vm1310, %v2578, 0
      %2582 = vmatprep.subr.mxu0 %v2576
      %2583 = vmatpush1.msra.mxu0 %v2575
      %2584 = vmatprep.subr.mxu0 0.0
      %2585 = vmatpush1.msra.mxu0 0.0
      %2586 = vmatprep.subr.mxu0 0.0
      %2587 = vmatpush1.msra.mxu0 0.0
      %2588 = vmatprep.subr.mxu0 0.0
      %2589 = vmatpush1.msra.mxu0 0.0
      %2590 = vmatprep.subr.mxu0 0.0
      %2591 = vmatpush1.msra.mxu0 0.0
      %2592 = vmatprep.subr.mxu0 0.0
      %2593 = vmatpush1.msra.mxu0 0.0
      %2594 = vmatprep.subr.mxu0 0.0
      %2595 = vmatpush1.msra.mxu0 0.0
      %2596 = vmatprep.subr.mxu0 0.0
      %2597 = vmatpush1.msra.mxu0 0.0
      %2598 = vmatprep.subr.mxu0 0.0
      %2599 = vmatpush1.msra.mxu0 0.0
      %2600 = vmatprep.subr.mxu0 0.0
      %2601 = vmatpush1.msra.mxu0 0.0
      %2602 = vmatprep.subr.mxu0 0.0
      %2603 = vmatpush1.msra.mxu0 0.0
      %2604 = vmatprep.subr.mxu0 0.0
      %2605 = vmatpush1.msra.mxu0 0.0
      %2606 = vmatprep.subr.mxu0 0.0
      %2607 = vmatpush1.msra.mxu0 0.0
      %2608 = vmatprep.subr.mxu0 0.0
      %2609 = vmatpush1.msra.mxu0 0.0
      %2610 = vmatprep.subr.mxu0 0.0
      %2611 = vmatpush1.msra.mxu0 0.0
      %2612 = vmatprep.subr.mxu0 0.0
      %2613 = vmatpush1.msra.mxu0 0.0
      %2614 = vmatprep.subr.mxu0 0.0
      %2615 = vmatpush1.msra.mxu0 0.0
      %2616 = vmatprep.subr.mxu0 0.0
      %2617 = vmatpush1.msra.mxu0 0.0
      %2618 = vmatprep.subr.mxu0 0.0
      %2619 = vmatpush1.msra.mxu0 0.0
      %2620 = vmatprep.subr.mxu0 0.0
      %2621 = vmatpush1.msra.mxu0 0.0
      %2622 = vmatprep.subr.mxu0 0.0
      %2623 = vmatpush1.msra.mxu0 0.0
      %2624 = vmatprep.subr.mxu0 0.0
      %2625 = vmatpush1.msra.mxu0 0.0
      %2626 = vmatprep.subr.mxu0 0.0
      %2627 = vmatpush1.msra.mxu0 0.0
      %2628 = vmatprep.subr.mxu0 0.0
      %2629 = vmatpush1.msra.mxu0 0.0
      %2630 = vmatprep.subr.mxu0 0.0
      %2631 = vmatpush1.msra.mxu0 0.0
      %2632 = vmatprep.subr.mxu0 0.0
      %2633 = vmatpush1.msra.mxu0 0.0
      %2634 = vmatprep.subr.mxu0 0.0
      %2635 = vmatpush1.msra.mxu0 0.0
      %2636 = vmatprep.subr.mxu0 0.0
      %2637 = vmatpush1.msra.mxu0 0.0
      %2638 = vmatprep.subr.mxu0 0.0
      %2639 = vmatpush1.msra.mxu0 0.0
      %2640 = vmatprep.subr.mxu0 0.0
      %2641 = vmatpush1.msra.mxu0 0.0
      %2642 = vmatprep.subr.mxu0 0.0
      %2643 = vmatpush1.msra.mxu0 0.0
      %2644 = vmatprep.subr.mxu0 0.0
      %2645 = vmatpush1.msra.mxu0 0.0
      %2646 = vmatprep.mubr.f32.mxu0 0.0
      %2647 = vmatmul.mubr.f32.gmra.mrb[0].mxu0 %v2580
      %v2648 = vpop.f32.mrb[0].mxu0
      %v2649 = vadd.f32 0.0, %v2648
      %v2650 = vpop.f32.mrb[0].mxu0
      %v2651 = vadd.f32 0.0, %v2650
      %2652 = vdwg.mxu0
      %v2653 = vadd.f32 %v2563, %v2649
      %v2654 = vadd.f32 %v2564, %v2651
      %2655 = vrot.lane.b32.xlu0 %v2127, 96
      %v2656 = vpop.permute.xlu0 %2655
      %2657 = vrot.lane.b32.xlu0 %v2128, 96
      %v2658 = vpop.permute.xlu0 %2657
      %2659 = vrot.lane.b32.xlu0 %v2133, 96
      %v2660 = vpop.permute.xlu0 %2659
      %v2661 = vsel %vm969, %v2656, %v2658
      %v2662 = vsel %vm969, %v2658, %v2660
      %v2665 = vsel %vm397, %v2661, 0.0
      %v2666 = vsel %vm398, %v2662, 0.0
      %s2667 = scalar_lea.vmem %s4, 120
      %v2668 = vld [vmem:[%s2667] sm:$0xff]
      %v2670 = vsel %vm1310, %v2668, 0
      %2672 = vmatprep.subr.mxu0 %v2666
      %2673 = vmatpush1.msra.mxu0 %v2665
      %2674 = vmatprep.subr.mxu0 0.0
      %2675 = vmatpush1.msra.mxu0 0.0
      %2676 = vmatprep.subr.mxu0 0.0
      %2677 = vmatpush1.msra.mxu0 0.0
      %2678 = vmatprep.subr.mxu0 0.0
      %2679 = vmatpush1.msra.mxu0 0.0
      %2680 = vmatprep.subr.mxu0 0.0
      %2681 = vmatpush1.msra.mxu0 0.0
      %2682 = vmatprep.subr.mxu0 0.0
      %2683 = vmatpush1.msra.mxu0 0.0
      %2684 = vmatprep.subr.mxu0 0.0
      %2685 = vmatpush1.msra.mxu0 0.0
      %2686 = vmatprep.subr.mxu0 0.0
      %2687 = vmatpush1.msra.mxu0 0.0
      %2688 = vmatprep.subr.mxu0 0.0
      %2689 = vmatpush1.msra.mxu0 0.0
      %2690 = vmatprep.subr.mxu0 0.0
      %2691 = vmatpush1.msra.mxu0 0.0
      %2692 = vmatprep.subr.mxu0 0.0
      %2693 = vmatpush1.msra.mxu0 0.0
      %2694 = vmatprep.subr.mxu0 0.0
      %2695 = vmatpush1.msra.mxu0 0.0
      %2696 = vmatprep.subr.mxu0 0.0
      %2697 = vmatpush1.msra.mxu0 0.0
      %2698 = vmatprep.subr.mxu0 0.0
      %2699 = vmatpush1.msra.mxu0 0.0
      %2700 = vmatprep.subr.mxu0 0.0
      %2701 = vmatpush1.msra.mxu0 0.0
      %2702 = vmatprep.subr.mxu0 0.0
      %2703 = vmatpush1.msra.mxu0 0.0
      %2704 = vmatprep.subr.mxu0 0.0
      %2705 = vmatpush1.msra.mxu0 0.0
      %2706 = vmatprep.subr.mxu0 0.0
      %2707 = vmatpush1.msra.mxu0 0.0
      %2708 = vmatprep.subr.mxu0 0.0
      %2709 = vmatpush1.msra.mxu0 0.0
      %2710 = vmatprep.subr.mxu0 0.0
      %2711 = vmatpush1.msra.mxu0 0.0
      %2712 = vmatprep.subr.mxu0 0.0
      %2713 = vmatpush1.msra.mxu0 0.0
      %2714 = vmatprep.subr.mxu0 0.0
      %2715 = vmatpush1.msra.mxu0 0.0
      %2716 = vmatprep.subr.mxu0 0.0
      %2717 = vmatpush1.msra.mxu0 0.0
      %2718 = vmatprep.subr.mxu0 0.0
      %2719 = vmatpush1.msra.mxu0 0.0
      %2720 = vmatprep.subr.mxu0 0.0
      %2721 = vmatpush1.msra.mxu0 0.0
      %2722 = vmatprep.subr.mxu0 0.0
      %2723 = vmatpush1.msra.mxu0 0.0
      %2724 = vmatprep.subr.mxu0 0.0
      %2725 = vmatpush1.msra.mxu0 0.0
      %2726 = vmatprep.subr.mxu0 0.0
      %2727 = vmatpush1.msra.mxu0 0.0
      %2728 = vmatprep.subr.mxu0 0.0
      %2729 = vmatpush1.msra.mxu0 0.0
      %2730 = vmatprep.subr.mxu0 0.0
      %2731 = vmatpush1.msra.mxu0 0.0
      %2732 = vmatprep.subr.mxu0 0.0
      %2733 = vmatpush1.msra.mxu0 0.0
      %2734 = vmatprep.subr.mxu0 0.0
      %2735 = vmatpush1.msra.mxu0 0.0
      %2736 = vmatprep.mubr.f32.mxu0 0.0
      %2737 = vmatmul.mubr.f32.gmra.mrb[0].mxu0 %v2670
      %v2738 = vpop.f32.mrb[0].mxu0
      %v2739 = vadd.f32 0.0, %v2738
      %v2740 = vpop.f32.mrb[0].mxu0
      %v2741 = vadd.f32 0.0, %v2740
      %2742 = vdwg.mxu0
      %v2743 = vadd.f32 %v2653, %v2739
      %v2744 = vadd.f32 %v2654, %v2741
      %s2745 = scalar_lea.vmem %s4, 128
      %v2746 = vld [vmem:[%s2745] sm:$0xff]
      %2747 = vrot.lane.b32.xlu0 %v2127, 95
      %v2748 = vpop.permute.xlu0 %2747
      %2749 = vrot.lane.b32.xlu0 %v2128, 95
      %v2750 = vpop.permute.xlu0 %2749
      %2751 = vrot.lane.b32.xlu0 %v2133, 95
      %v2752 = vpop.permute.xlu0 %2751
      %v2753 = vsel %vm1068, %v2748, %v2750
      %v2754 = vsel %vm1068, %v2750, %v2752
      %v2758 = vsel %vm1310, %v2746, 0
      %2760 = vmatprep.subr.mxu0 %v2754
      %2761 = vmatpush1.msra.mxu0 %v2753
      %2762 = vmatprep.subr.mxu0 0.0
      %2763 = vmatpush1.msra.mxu0 0.0
      %2764 = vmatprep.subr.mxu0 0.0
      %2765 = vmatpush1.msra.mxu0 0.0
      %2766 = vmatprep.subr.mxu0 0.0
      %2767 = vmatpush1.msra.mxu0 0.0
      %2768 = vmatprep.subr.mxu0 0.0
      %2769 = vmatpush1.msra.mxu0 0.0
      %2770 = vmatprep.subr.mxu0 0.0
      %2771 = vmatpush1.msra.mxu0 0.0
      %2772 = vmatprep.subr.mxu0 0.0
      %2773 = vmatpush1.msra.mxu0 0.0
      %2774 = vmatprep.subr.mxu0 0.0
      %2775 = vmatpush1.msra.mxu0 0.0
      %2776 = vmatprep.subr.mxu0 0.0
      %2777 = vmatpush1.msra.mxu0 0.0
      %2778 = vmatprep.subr.mxu0 0.0
      %2779 = vmatpush1.msra.mxu0 0.0
      %2780 = vmatprep.subr.mxu0 0.0
      %2781 = vmatpush1.msra.mxu0 0.0
      %2782 = vmatprep.subr.mxu0 0.0
      %2783 = vmatpush1.msra.mxu0 0.0
      %2784 = vmatprep.subr.mxu0 0.0
      %2785 = vmatpush1.msra.mxu0 0.0
      %2786 = vmatprep.subr.mxu0 0.0
      %2787 = vmatpush1.msra.mxu0 0.0
      %2788 = vmatprep.subr.mxu0 0.0
      %2789 = vmatpush1.msra.mxu0 0.0
      %2790 = vmatprep.subr.mxu0 0.0
      %2791 = vmatpush1.msra.mxu0 0.0
      %2792 = vmatprep.subr.mxu0 0.0
      %2793 = vmatpush1.msra.mxu0 0.0
      %2794 = vmatprep.subr.mxu0 0.0
      %2795 = vmatpush1.msra.mxu0 0.0
      %2796 = vmatprep.subr.mxu0 0.0
      %2797 = vmatpush1.msra.mxu0 0.0
      %2798 = vmatprep.subr.mxu0 0.0
      %2799 = vmatpush1.msra.mxu0 0.0
      %2800 = vmatprep.subr.mxu0 0.0
      %2801 = vmatpush1.msra.mxu0 0.0
      %2802 = vmatprep.subr.mxu0 0.0
      %2803 = vmatpush1.msra.mxu0 0.0
      %2804 = vmatprep.subr.mxu0 0.0
      %2805 = vmatpush1.msra.mxu0 0.0
      %2806 = vmatprep.subr.mxu0 0.0
      %2807 = vmatpush1.msra.mxu0 0.0
      %2808 = vmatprep.subr.mxu0 0.0
      %2809 = vmatpush1.msra.mxu0 0.0
      %2810 = vmatprep.subr.mxu0 0.0
      %2811 = vmatpush1.msra.mxu0 0.0
      %2812 = vmatprep.subr.mxu0 0.0
      %2813 = vmatpush1.msra.mxu0 0.0
      %2814 = vmatprep.subr.mxu0 0.0
      %2815 = vmatpush1.msra.mxu0 0.0
      %2816 = vmatprep.subr.mxu0 0.0
      %2817 = vmatpush1.msra.mxu0 0.0
      %2818 = vmatprep.subr.mxu0 0.0
      %2819 = vmatpush1.msra.mxu0 0.0
      %2820 = vmatprep.subr.mxu0 0.0
      %2821 = vmatpush1.msra.mxu0 0.0
      %2822 = vmatprep.subr.mxu0 0.0
      %2823 = vmatpush1.msra.mxu0 0.0
      %2824 = vmatprep.mubr.f32.mxu0 0.0
      %2825 = vmatmul.mubr.f32.gmra.mrb[0].mxu0 %v2758
      %v2826 = vpop.f32.mrb[0].mxu0
      %v2827 = vadd.f32 0.0, %v2826
      %v2828 = vpop.f32.mrb[0].mxu0
      %v2829 = vadd.f32 0.0, %v2828
      %2830 = vdwg.mxu0
      %v2831 = vadd.f32 %v2743, %v2827
      %v2832 = vadd.f32 %v2744, %v2829
      %2833 = vrot.lane.b32.xlu0 %v2127, 94
      %v2834 = vpop.permute.xlu0 %2833
      %2835 = vrot.lane.b32.xlu0 %v2128, 94
      %v2836 = vpop.permute.xlu0 %2835
      %2837 = vrot.lane.b32.xlu0 %v2133, 94
      %v2838 = vpop.permute.xlu0 %2837
      %v2839 = vsel %vm1157, %v2834, %v2836
      %v2840 = vsel %vm1157, %v2836, %v2838
      %v2843 = vsel %vm579, %v2839, 0.0
      %v2844 = vsel %vm580, %v2840, 0.0
      %s2845 = scalar_lea.vmem %s4, 136
      %v2846 = vld [vmem:[%s2845] sm:$0xff]
      %v2848 = vsel %vm1310, %v2846, 0
      %2850 = vmatprep.subr.mxu0 %v2844
      %2851 = vmatpush1.msra.mxu0 %v2843
      %2852 = vmatprep.subr.mxu0 0.0
      %2853 = vmatpush1.msra.mxu0 0.0
      %2854 = vmatprep.subr.mxu0 0.0
      %2855 = vmatpush1.msra.mxu0 0.0
      %2856 = vmatprep.subr.mxu0 0.0
      %2857 = vmatpush1.msra.mxu0 0.0
      %2858 = vmatprep.subr.mxu0 0.0
      %2859 = vmatpush1.msra.mxu0 0.0
      %2860 = vmatprep.subr.mxu0 0.0
      %2861 = vmatpush1.msra.mxu0 0.0
      %2862 = vmatprep.subr.mxu0 0.0
      %2863 = vmatpush1.msra.mxu0 0.0
      %2864 = vmatprep.subr.mxu0 0.0
      %2865 = vmatpush1.msra.mxu0 0.0
      %2866 = vmatprep.subr.mxu0 0.0
      %2867 = vmatpush1.msra.mxu0 0.0
      %2868 = vmatprep.subr.mxu0 0.0
      %2869 = vmatpush1.msra.mxu0 0.0
      %2870 = vmatprep.subr.mxu0 0.0
      %2871 = vmatpush1.msra.mxu0 0.0
      %2872 = vmatprep.subr.mxu0 0.0
      %2873 = vmatpush1.msra.mxu0 0.0
      %2874 = vmatprep.subr.mxu0 0.0
      %2875 = vmatpush1.msra.mxu0 0.0
      %2876 = vmatprep.subr.mxu0 0.0
      %2877 = vmatpush1.msra.mxu0 0.0
      %2878 = vmatprep.subr.mxu0 0.0
      %2879 = vmatpush1.msra.mxu0 0.0
      %2880 = vmatprep.subr.mxu0 0.0
      %2881 = vmatpush1.msra.mxu0 0.0
      %2882 = vmatprep.subr.mxu0 0.0
      %2883 = vmatpush1.msra.mxu0 0.0
      %2884 = vmatprep.subr.mxu0 0.0
      %2885 = vmatpush1.msra.mxu0 0.0
      %2886 = vmatprep.subr.mxu0 0.0
      %2887 = vmatpush1.msra.mxu0 0.0
      %2888 = vmatprep.subr.mxu0 0.0
      %2889 = vmatpush1.msra.mxu0 0.0
      %2890 = vmatprep.subr.mxu0 0.0
      %2891 = vmatpush1.msra.mxu0 0.0
      %2892 = vmatprep.subr.mxu0 0.0
      %2893 = vmatpush1.msra.mxu0 0.0
      %2894 = vmatprep.subr.mxu0 0.0
      %2895 = vmatpush1.msra.mxu0 0.0
      %2896 = vmatprep.subr.mxu0 0.0
      %2897 = vmatpush1.msra.mxu0 0.0
      %2898 = vmatprep.subr.mxu0 0.0
      %2899 = vmatpush1.msra.mxu0 0.0
      %2900 = vmatprep.subr.mxu0 0.0
      %2901 = vmatpush1.msra.mxu0 0.0
      %2902 = vmatprep.subr.mxu0 0.0
      %2903 = vmatpush1.msra.mxu0 0.0
      %2904 = vmatprep.subr.mxu0 0.0
      %2905 = vmatpush1.msra.mxu0 0.0
      %2906 = vmatprep.subr.mxu0 0.0
      %2907 = vmatpush1.msra.mxu0 0.0
      %2908 = vmatprep.subr.mxu0 0.0
      %2909 = vmatpush1.msra.mxu0 0.0
      %2910 = vmatprep.subr.mxu0 0.0
      %2911 = vmatpush1.msra.mxu0 0.0
      %2912 = vmatprep.subr.mxu0 0.0
      %2913 = vmatpush1.msra.mxu0 0.0
      %2914 = vmatprep.mubr.f32.mxu0 0.0
      %2915 = vmatmul.mubr.f32.gmra.mrb[0].mxu0 %v2848
      %v2916 = vpop.f32.mrb[0].mxu0
      %v2917 = vadd.f32 0.0, %v2916
      %v2918 = vpop.f32.mrb[0].mxu0
      %v2919 = vadd.f32 0.0, %v2918
      %2920 = vdwg.mxu0
      %v2921 = vadd.f32 %v2831, %v2917
      %v2922 = vadd.f32 %v2832, %v2919
      %2924 = vset.pattern.permute.xlu0 0
      %2925 = vperm.xlu0 %2924, %v2113
      %v2926 = vpop.permute.xlu0 %2925
      %v2928 = vadd.f32 %v2921, %v2926
      %v2929 = vadd.f32 %v2922, %v2926
      %v2930 = vadd.f32 %v1253, %v2928
      %v2931 = vadd.f32 %v1254, %v2929
      %vm2932 = vcmask 523264
      %v2934 = vsel %vm2932, %v358, 0
      %2936 = vmatprep.subr.mxu0 %v360
      %2937 = vmatpush1.msra.mxu0 %v359
      %2938 = vmatprep.subr.mxu0 %v362
      %2939 = vmatpush1.msra.mxu0 %v361
      %2940 = vmatprep.subr.mxu0 %v364
      %2941 = vmatpush1.msra.mxu0 %v363
      %2942 = vmatprep.subr.mxu0 %v366
      %2943 = vmatpush1.msra.mxu0 %v365
      %2944 = vmatprep.subr.mxu0 %v368
      %2945 = vmatpush1.msra.mxu0 %v367
      %2946 = vmatprep.subr.mxu0 %v370
      %2947 = vmatpush1.msra.mxu0 %v369
      %2948 = vmatprep.subr.mxu0 %v372
      %2949 = vmatpush1.msra.mxu0 %v371
      %2950 = vmatprep.subr.mxu0 %v374
      %2951 = vmatpush1.msra.mxu0 %v373
      %2952 = vmatprep.subr.mxu0 0.0
      %2953 = vmatpush1.msra.mxu0 0.0
      %2954 = vmatprep.subr.mxu0 0.0
      %2955 = vmatpush1.msra.mxu0 0.0
      %2956 = vmatprep.subr.mxu0 0.0
      %2957 = vmatpush1.msra.mxu0 0.0
      %2958 = vmatprep.subr.mxu0 0.0
      %2959 = vmatpush1.msra.mxu0 0.0
      %2960 = vmatprep.subr.mxu0 0.0
      %2961 = vmatpush1.msra.mxu0 0.0
      %2962 = vmatprep.subr.mxu0 0.0
      %2963 = vmatpush1.msra.mxu0 0.0
      %2964 = vmatprep.subr.mxu0 0.0
      %2965 = vmatpush1.msra.mxu0 0.0
      %2966 = vmatprep.subr.mxu0 0.0
      %2967 = vmatpush1.msra.mxu0 0.0
      %2968 = vmatprep.subr.mxu0 0.0
      %2969 = vmatpush1.msra.mxu0 0.0
      %2970 = vmatprep.subr.mxu0 0.0
      %2971 = vmatpush1.msra.mxu0 0.0
      %2972 = vmatprep.subr.mxu0 0.0
      %2973 = vmatpush1.msra.mxu0 0.0
      %2974 = vmatprep.subr.mxu0 0.0
      %2975 = vmatpush1.msra.mxu0 0.0
      %2976 = vmatprep.subr.mxu0 0.0
      %2977 = vmatpush1.msra.mxu0 0.0
      %2978 = vmatprep.subr.mxu0 0.0
      %2979 = vmatpush1.msra.mxu0 0.0
      %2980 = vmatprep.subr.mxu0 0.0
      %2981 = vmatpush1.msra.mxu0 0.0
      %2982 = vmatprep.subr.mxu0 0.0
      %2983 = vmatpush1.msra.mxu0 0.0
      %2984 = vmatprep.subr.mxu0 0.0
      %2985 = vmatpush1.msra.mxu0 0.0
      %2986 = vmatprep.subr.mxu0 0.0
      %2987 = vmatpush1.msra.mxu0 0.0
      %2988 = vmatprep.subr.mxu0 0.0
      %2989 = vmatpush1.msra.mxu0 0.0
      %2990 = vmatprep.subr.mxu0 0.0
      %2991 = vmatpush1.msra.mxu0 0.0
      %2992 = vmatprep.subr.mxu0 0.0
      %2993 = vmatpush1.msra.mxu0 0.0
      %2994 = vmatprep.subr.mxu0 0.0
      %2995 = vmatpush1.msra.mxu0 0.0
      %2996 = vmatprep.subr.mxu0 0.0
      %2997 = vmatpush1.msra.mxu0 0.0
      %2998 = vmatprep.subr.mxu0 0.0
      %2999 = vmatpush1.msra.mxu0 0.0
      %3000 = vmatprep.mubr.f32.mxu0 0.0
      %3001 = vmatmul.mubr.f32.gmra.mrb[0].mxu0 %v2934
      %v3002 = vpop.f32.mrb[0].mxu0
      %v3003 = vadd.f32 %v2930, %v3002
      %v3004 = vpop.f32.mrb[0].mxu0
      %v3005 = vadd.f32 %v2931, %v3004
      %3006 = vdwg.mxu0
      %v3007 = vmax.f32 %v3003, 0.0
      %v3008 = vmax.f32 %v3005, 0.0
      %s3009 = scalar_lea.vmem %s6, 16
      %v3010 = vld [vmem:[%s3009] sm:$0xff]
      %3012 = vset.pattern.permute.xlu0 0
      %3013 = vperm.xlu0 %3012, %v3010
      %v3014 = vpop.permute.xlu0 %3013
      %v3016 = vmul.f32 %v3007, %v3014
      %v3017 = vmul.f32 %v3008, %v3014
      %s3018 = scalar_lea.vmem %s7, 16
      %v3019 = vld [vmem:[%s3018] sm:$0xff]
      %3021 = vset.pattern.permute.xlu0 0
      %3022 = vperm.xlu0 %3021, %v3019
      %v3023 = vpop.permute.xlu0 %3022
      %v3025 = vadd.f32 %v3016, %v3023
      %v3026 = vadd.f32 %v3017, %v3023
      %s3027 = scalar_lea.vmem %s5, 24
      %v3028 = vld [vmem:[%s3027] sm:$0xff]
      %3031 = vrot.lane.b32.xlu0 %v3025, 17
      %v3032 = vpop.permute.xlu0 %3031
      %3033 = vrot.lane.b32.xlu0 %v3026, 17
      %v3034 = vpop.permute.xlu0 %3033
      %v3035 = vsel %vm383, %v3032, %v3034
      %3039 = vst.msk [vmem:[#allocation2] sm:$0xff] %vm1285, %v3032
      %3040 = vst [vmem:[#allocation2 + $0x8] sm:$0xff] %v3035
      %3041 = vst.msk [vmem:[#allocation2 + $0x10] sm:$0xff] %vm383, %v3034
      %v3042 = vld [vmem:[#allocation2] sm:$0xff]
      %v3043 = vld [vmem:[#allocation2 + $0x8] sm:$0xff]
      %v3044 = vsel %vm397, %v3042, 0.0
      %v3045 = vsel %vm398, %v3043, 0.0
      %s3046 = scalar_lea.vmem %s4, 144
      %v3047 = vld [vmem:[%s3046] sm:$0xff]
      %v3048 = vld [vmem:[#allocation2 + $0x10] sm:$0xff]
      %s3049 = scalar_lea.vmem %s4, 152
      %v3050 = vld [vmem:[%s3049] sm:$0xff]
      %3054 = vrot.lane.b32.xlu0 %v3042, 127
      %v3055 = vpop.permute.xlu0 %3054
      %3056 = vrot.lane.b32.xlu0 %v3043, 127
      %v3057 = vpop.permute.xlu0 %3056
      %3058 = vrot.lane.b32.xlu0 %v3048, 127
      %v3059 = vpop.permute.xlu0 %3058
      %v3060 = vsel %vm414, %v3055, %v3057
      %v3061 = vsel %vm414, %v3057, %v3059
      %v3065 = vsel %vm1310, %v3050, 0
      %3067 = vmatprep.subr.mxu0 %v3061
      %3068 = vmatpush1.msra.mxu0 %v3060
      %3069 = vmatprep.subr.mxu0 0.0
      %3070 = vmatpush1.msra.mxu0 0.0
      %3071 = vmatprep.subr.mxu0 0.0
      %3072 = vmatpush1.msra.mxu0 0.0
      %3073 = vmatprep.subr.mxu0 0.0
      %3074 = vmatpush1.msra.mxu0 0.0
      %3075 = vmatprep.subr.mxu0 0.0
      %3076 = vmatpush1.msra.mxu0 0.0
      %3077 = vmatprep.subr.mxu0 0.0
      %3078 = vmatpush1.msra.mxu0 0.0
      %3079 = vmatprep.subr.mxu0 0.0
      %3080 = vmatpush1.msra.mxu0 0.0
      %3081 = vmatprep.subr.mxu0 0.0
      %3082 = vmatpush1.msra.mxu0 0.0
      %3083 = vmatprep.subr.mxu0 0.0
      %3084 = vmatpush1.msra.mxu0 0.0
      %3085 = vmatprep.subr.mxu0 0.0
      %3086 = vmatpush1.msra.mxu0 0.0
      %3087 = vmatprep.subr.mxu0 0.0
      %3088 = vmatpush1.msra.mxu0 0.0
      %3089 = vmatprep.subr.mxu0 0.0
      %3090 = vmatpush1.msra.mxu0 0.0
      %3091 = vmatprep.subr.mxu0 0.0
      %3092 = vmatpush1.msra.mxu0 0.0
      %3093 = vmatprep.subr.mxu0 0.0
      %3094 = vmatpush1.msra.mxu0 0.0
      %3095 = vmatprep.subr.mxu0 0.0
      %3096 = vmatpush1.msra.mxu0 0.0
      %3097 = vmatprep.subr.mxu0 0.0
      %3098 = vmatpush1.msra.mxu0 0.0
      %3099 = vmatprep.subr.mxu0 0.0
      %3100 = vmatpush1.msra.mxu0 0.0
      %3101 = vmatprep.subr.mxu0 0.0
      %3102 = vmatpush1.msra.mxu0 0.0
      %3103 = vmatprep.subr.mxu0 0.0
      %3104 = vmatpush1.msra.mxu0 0.0
      %3105 = vmatprep.subr.mxu0 0.0
      %3106 = vmatpush1.msra.mxu0 0.0
      %3107 = vmatprep.subr.mxu0 0.0
      %3108 = vmatpush1.msra.mxu0 0.0
      %3109 = vmatprep.subr.mxu0 0.0
      %3110 = vmatpush1.msra.mxu0 0.0
      %3111 = vmatprep.subr.mxu0 0.0
      %3112 = vmatpush1.msra.mxu0 0.0
      %3113 = vmatprep.subr.mxu0 0.0
      %3114 = vmatpush1.msra.mxu0 0.0
      %3115 = vmatprep.subr.mxu0 0.0
      %3116 = vmatpush1.msra.mxu0 0.0
      %3117 = vmatprep.subr.mxu0 0.0
      %3118 = vmatpush1.msra.mxu0 0.0
      %3119 = vmatprep.subr.mxu0 0.0
      %3120 = vmatpush1.msra.mxu0 0.0
      %3121 = vmatprep.subr.mxu0 0.0
      %3122 = vmatpush1.msra.mxu0 0.0
      %3123 = vmatprep.subr.mxu0 0.0
      %3124 = vmatpush1.msra.mxu0 0.0
      %3125 = vmatprep.subr.mxu0 0.0
      %3126 = vmatpush1.msra.mxu0 0.0
      %3127 = vmatprep.subr.mxu0 0.0
      %3128 = vmatpush1.msra.mxu0 0.0
      %3129 = vmatprep.subr.mxu0 0.0
      %3130 = vmatpush1.msra.mxu0 0.0
      %3131 = vmatprep.mubr.f32.mxu0 0.0
      %3132 = vmatmul.mubr.f32.gmra.mrb[0].mxu0 %v3065
      %v3133 = vpop.f32.mrb[0].mxu0
      %v3134 = vadd.f32 0.0, %v3133
      %v3135 = vpop.f32.mrb[0].mxu0
      %v3136 = vadd.f32 0.0, %v3135
      %3137 = vdwg.mxu0
      %v3139 = vsel %vm1310, %v3047, 0
      %3141 = vmatprep.subr.mxu0 %v3045
      %3142 = vmatpush1.msra.mxu0 %v3044
      %3143 = vmatprep.subr.mxu0 0.0
      %3144 = vmatpush1.msra.mxu0 0.0
      %3145 = vmatprep.subr.mxu0 0.0
      %3146 = vmatpush1.msra.mxu0 0.0
      %3147 = vmatprep.subr.mxu0 0.0
      %3148 = vmatpush1.msra.mxu0 0.0
      %3149 = vmatprep.subr.mxu0 0.0
      %3150 = vmatpush1.msra.mxu0 0.0
      %3151 = vmatprep.subr.mxu0 0.0
      %3152 = vmatpush1.msra.mxu0 0.0
      %3153 = vmatprep.subr.mxu0 0.0
      %3154 = vmatpush1.msra.mxu0 0.0
      %3155 = vmatprep.subr.mxu0 0.0
      %3156 = vmatpush1.msra.mxu0 0.0
      %3157 = vmatprep.subr.mxu0 0.0
      %3158 = vmatpush1.msra.mxu0 0.0
      %3159 = vmatprep.subr.mxu0 0.0
      %3160 = vmatpush1.msra.mxu0 0.0
      %3161 = vmatprep.subr.mxu0 0.0
      %3162 = vmatpush1.msra.mxu0 0.0
      %3163 = vmatprep.subr.mxu0 0.0
      %3164 = vmatpush1.msra.mxu0 0.0
      %3165 = vmatprep.subr.mxu0 0.0
      %3166 = vmatpush1.msra.mxu0 0.0
      %3167 = vmatprep.subr.mxu0 0.0
      %3168 = vmatpush1.msra.mxu0 0.0
      %3169 = vmatprep.subr.mxu0 0.0
      %3170 = vmatpush1.msra.mxu0 0.0
      %3171 = vmatprep.subr.mxu0 0.0
      %3172 = vmatpush1.msra.mxu0 0.0
      %3173 = vmatprep.subr.mxu0 0.0
      %3174 = vmatpush1.msra.mxu0 0.0
      %3175 = vmatprep.subr.mxu0 0.0
      %3176 = vmatpush1.msra.mxu0 0.0
      %3177 = vmatprep.subr.mxu0 0.0
      %3178 = vmatpush1.msra.mxu0 0.0
      %3179 = vmatprep.subr.mxu0 0.0
      %3180 = vmatpush1.msra.mxu0 0.0
      %3181 = vmatprep.subr.mxu0 0.0
      %3182 = vmatpush1.msra.mxu0 0.0
      %3183 = vmatprep.subr.mxu0 0.0
      %3184 = vmatpush1.msra.mxu0 0.0
      %3185 = vmatprep.subr.mxu0 0.0
      %3186 = vmatpush1.msra.mxu0 0.0
      %3187 = vmatprep.subr.mxu0 0.0
      %3188 = vmatpush1.msra.mxu0 0.0
      %3189 = vmatprep.subr.mxu0 0.0
      %3190 = vmatpush1.msra.mxu0 0.0
      %3191 = vmatprep.subr.mxu0 0.0
      %3192 = vmatpush1.msra.mxu0 0.0
      %3193 = vmatprep.subr.mxu0 0.0
      %3194 = vmatpush1.msra.mxu0 0.0
      %3195 = vmatprep.subr.mxu0 0.0
      %3196 = vmatpush1.msra.mxu0 0.0
      %3197 = vmatprep.subr.mxu0 0.0
      %3198 = vmatpush1.msra.mxu0 0.0
      %3199 = vmatprep.subr.mxu0 0.0
      %3200 = vmatpush1.msra.mxu0 0.0
      %3201 = vmatprep.subr.mxu0 0.0
      %3202 = vmatpush1.msra.mxu0 0.0
      %3203 = vmatprep.subr.mxu0 0.0
      %3204 = vmatpush1.msra.mxu0 0.0
      %3205 = vmatprep.mubr.f32.mxu0 0.0
      %3206 = vmatmul.mubr.f32.gmra.mrb[0].mxu0 %v3139
      %v3207 = vpop.f32.mrb[0].mxu0
      %v3208 = vadd.f32 %v3134, %v3207
      %v3209 = vpop.f32.mrb[0].mxu0
      %v3210 = vadd.f32 %v3136, %v3209
      %3211 = vdwg.mxu0
      %3212 = vrot.lane.b32.xlu0 %v3042, 126
      %v3213 = vpop.permute.xlu0 %3212
      %3214 = vrot.lane.b32.xlu0 %v3043, 126
      %v3215 = vpop.permute.xlu0 %3214
      %3216 = vrot.lane.b32.xlu0 %v3048, 126
      %v3217 = vpop.permute.xlu0 %3216
      %v3218 = vsel %vm587, %v3213, %v3215
      %v3219 = vsel %vm587, %v3215, %v3217
      %v3222 = vsel %vm579, %v3218, 0.0
      %v3223 = vsel %vm580, %v3219, 0.0
      %s3224 = scalar_lea.vmem %s4, 160
      %v3225 = vld [vmem:[%s3224] sm:$0xff]
      %v3227 = vsel %vm1310, %v3225, 0
      %3229 = vmatprep.subr.mxu0 %v3223
      %3230 = vmatpush1.msra.mxu0 %v3222
      %3231 = vmatprep.subr.mxu0 0.0
      %3232 = vmatpush1.msra.mxu0 0.0
      %3233 = vmatprep.subr.mxu0 0.0
      %3234 = vmatpush1.msra.mxu0 0.0
      %3235 = vmatprep.subr.mxu0 0.0
      %3236 = vmatpush1.msra.mxu0 0.0
      %3237 = vmatprep.subr.mxu0 0.0
      %3238 = vmatpush1.msra.mxu0 0.0
      %3239 = vmatprep.subr.mxu0 0.0
      %3240 = vmatpush1.msra.mxu0 0.0
      %3241 = vmatprep.subr.mxu0 0.0
      %3242 = vmatpush1.msra.mxu0 0.0
      %3243 = vmatprep.subr.mxu0 0.0
      %3244 = vmatpush1.msra.mxu0 0.0
      %3245 = vmatprep.subr.mxu0 0.0
      %3246 = vmatpush1.msra.mxu0 0.0
      %3247 = vmatprep.subr.mxu0 0.0
      %3248 = vmatpush1.msra.mxu0 0.0
      %3249 = vmatprep.subr.mxu0 0.0
      %3250 = vmatpush1.msra.mxu0 0.0
      %3251 = vmatprep.subr.mxu0 0.0
      %3252 = vmatpush1.msra.mxu0 0.0
      %3253 = vmatprep.subr.mxu0 0.0
      %3254 = vmatpush1.msra.mxu0 0.0
      %3255 = vmatprep.subr.mxu0 0.0
      %3256 = vmatpush1.msra.mxu0 0.0
      %3257 = vmatprep.subr.mxu0 0.0
      %3258 = vmatpush1.msra.mxu0 0.0
      %3259 = vmatprep.subr.mxu0 0.0
      %3260 = vmatpush1.msra.mxu0 0.0
      %3261 = vmatprep.subr.mxu0 0.0
      %3262 = vmatpush1.msra.mxu0 0.0
      %3263 = vmatprep.subr.mxu0 0.0
      %3264 = vmatpush1.msra.mxu0 0.0
      %3265 = vmatprep.subr.mxu0 0.0
      %3266 = vmatpush1.msra.mxu0 0.0
      %3267 = vmatprep.subr.mxu0 0.0
      %3268 = vmatpush1.msra.mxu0 0.0
      %3269 = vmatprep.subr.mxu0 0.0
      %3270 = vmatpush1.msra.mxu0 0.0
      %3271 = vmatprep.subr.mxu0 0.0
      %3272 = vmatpush1.msra.mxu0 0.0
      %3273 = vmatprep.subr.mxu0 0.0
      %3274 = vmatpush1.msra.mxu0 0.0
      %3275 = vmatprep.subr.mxu0 0.0
      %3276 = vmatpush1.msra.mxu0 0.0
      %3277 = vmatprep.subr.mxu0 0.0
      %3278 = vmatpush1.msra.mxu0 0.0
      %3279 = vmatprep.subr.mxu0 0.0
      %3280 = vmatpush1.msra.mxu0 0.0
      %3281 = vmatprep.subr.mxu0 0.0
      %3282 = vmatpush1.msra.mxu0 0.0
      %3283 = vmatprep.subr.mxu0 0.0
      %3284 = vmatpush1.msra.mxu0 0.0
      %3285 = vmatprep.subr.mxu0 0.0
      %3286 = vmatpush1.msra.mxu0 0.0
      %3287 = vmatprep.subr.mxu0 0.0
      %3288 = vmatpush1.msra.mxu0 0.0
      %3289 = vmatprep.subr.mxu0 0.0
      %3290 = vmatpush1.msra.mxu0 0.0
      %3291 = vmatprep.subr.mxu0 0.0
      %3292 = vmatpush1.msra.mxu0 0.0
      %3293 = vmatprep.mubr.f32.mxu0 0.0
      %3294 = vmatmul.mubr.f32.gmra.mrb[0].mxu0 %v3227
      %v3295 = vpop.f32.mrb[0].mxu0
      %v3296 = vadd.f32 0.0, %v3295
      %v3297 = vpop.f32.mrb[0].mxu0
      %v3298 = vadd.f32 0.0, %v3297
      %3299 = vdwg.mxu0
      %v3300 = vadd.f32 %v3208, %v3296
      %v3301 = vadd.f32 %v3210, %v3298
      %3302 = vrot.lane.b32.xlu0 %v3042, 112
      %v3303 = vpop.permute.xlu0 %3302
      %3304 = vrot.lane.b32.xlu0 %v3043, 112
      %v3305 = vpop.permute.xlu0 %3304
      %3306 = vrot.lane.b32.xlu0 %v3048, 112
      %v3307 = vpop.permute.xlu0 %3306
      %v3308 = vsel %vm684, %v3303, %v3305
      %v3309 = vsel %vm684, %v3305, %v3307
      %v3312 = vsel %vm397, %v3308, 0.0
      %v3313 = vsel %vm398, %v3309, 0.0
      %s3314 = scalar_lea.vmem %s4, 168
      %v3315 = vld [vmem:[%s3314] sm:$0xff]
      %v3317 = vsel %vm1310, %v3315, 0
      %3319 = vmatprep.subr.mxu0 %v3313
      %3320 = vmatpush1.msra.mxu0 %v3312
      %3321 = vmatprep.subr.mxu0 0.0
      %3322 = vmatpush1.msra.mxu0 0.0
      %3323 = vmatprep.subr.mxu0 0.0
      %3324 = vmatpush1.msra.mxu0 0.0
      %3325 = vmatprep.subr.mxu0 0.0
      %3326 = vmatpush1.msra.mxu0 0.0
      %3327 = vmatprep.subr.mxu0 0.0
      %3328 = vmatpush1.msra.mxu0 0.0
      %3329 = vmatprep.subr.mxu0 0.0
      %3330 = vmatpush1.msra.mxu0 0.0
      %3331 = vmatprep.subr.mxu0 0.0
      %3332 = vmatpush1.msra.mxu0 0.0
      %3333 = vmatprep.subr.mxu0 0.0
      %3334 = vmatpush1.msra.mxu0 0.0
      %3335 = vmatprep.subr.mxu0 0.0
      %3336 = vmatpush1.msra.mxu0 0.0
      %3337 = vmatprep.subr.mxu0 0.0
      %3338 = vmatpush1.msra.mxu0 0.0
      %3339 = vmatprep.subr.mxu0 0.0
      %3340 = vmatpush1.msra.mxu0 0.0
      %3341 = vmatprep.subr.mxu0 0.0
      %3342 = vmatpush1.msra.mxu0 0.0
      %3343 = vmatprep.subr.mxu0 0.0
      %3344 = vmatpush1.msra.mxu0 0.0
      %3345 = vmatprep.subr.mxu0 0.0
      %3346 = vmatpush1.msra.mxu0 0.0
      %3347 = vmatprep.subr.mxu0 0.0
      %3348 = vmatpush1.msra.mxu0 0.0
      %3349 = vmatprep.subr.mxu0 0.0
      %3350 = vmatpush1.msra.mxu0 0.0
      %3351 = vmatprep.subr.mxu0 0.0
      %3352 = vmatpush1.msra.mxu0 0.0
      %3353 = vmatprep.subr.mxu0 0.0
      %3354 = vmatpush1.msra.mxu0 0.0
      %3355 = vmatprep.subr.mxu0 0.0
      %3356 = vmatpush1.msra.mxu0 0.0
      %3357 = vmatprep.subr.mxu0 0.0
      %3358 = vmatpush1.msra.mxu0 0.0
      %3359 = vmatprep.subr.mxu0 0.0
      %3360 = vmatpush1.msra.mxu0 0.0
      %3361 = vmatprep.subr.mxu0 0.0
      %3362 = vmatpush1.msra.mxu0 0.0
      %3363 = vmatprep.subr.mxu0 0.0
      %3364 = vmatpush1.msra.mxu0 0.0
      %3365 = vmatprep.subr.mxu0 0.0
      %3366 = vmatpush1.msra.mxu0 0.0
      %3367 = vmatprep.subr.mxu0 0.0
      %3368 = vmatpush1.msra.mxu0 0.0
      %3369 = vmatprep.subr.mxu0 0.0
      %3370 = vmatpush1.msra.mxu0 0.0
      %3371 = vmatprep.subr.mxu0 0.0
      %3372 = vmatpush1.msra.mxu0 0.0
      %3373 = vmatprep.subr.mxu0 0.0
      %3374 = vmatpush1.msra.mxu0 0.0
      %3375 = vmatprep.subr.mxu0 0.0
      %3376 = vmatpush1.msra.mxu0 0.0
      %3377 = vmatprep.subr.mxu0 0.0
      %3378 = vmatpush1.msra.mxu0 0.0
      %3379 = vmatprep.subr.mxu0 0.0
      %3380 = vmatpush1.msra.mxu0 0.0
      %3381 = vmatprep.subr.mxu0 0.0
      %3382 = vmatpush1.msra.mxu0 0.0
      %3383 = vmatprep.mubr.f32.mxu0 0.0
      %3384 = vmatmul.mubr.f32.gmra.mrb[0].mxu0 %v3317
      %v3385 = vpop.f32.mrb[0].mxu0
      %v3386 = vadd.f32 0.0, %v3385
      %v3387 = vpop.f32.mrb[0].mxu0
      %v3388 = vadd.f32 0.0, %v3387
      %3389 = vdwg.mxu0
      %v3390 = vadd.f32 %v3300, %v3386
      %v3391 = vadd.f32 %v3301, %v3388
      %s3392 = scalar_lea.vmem %s4, 176
      %v3393 = vld [vmem:[%s3392] sm:$0xff]
      %3394 = vrot.lane.b32.xlu0 %v3042, 111
      %v3395 = vpop.permute.xlu0 %3394
      %3396 = vrot.lane.b32.xlu0 %v3043, 111
      %v3397 = vpop.permute.xlu0 %3396
      %3398 = vrot.lane.b32.xlu0 %v3048, 111
      %v3399 = vpop.permute.xlu0 %3398
      %v3400 = vsel %vm783, %v3395, %v3397
      %v3401 = vsel %vm783, %v3397, %v3399
      %v3405 = vsel %vm1310, %v3393, 0
      %3407 = vmatprep.subr.mxu0 %v3401
      %3408 = vmatpush1.msra.mxu0 %v3400
      %3409 = vmatprep.subr.mxu0 0.0
      %3410 = vmatpush1.msra.mxu0 0.0
      %3411 = vmatprep.subr.mxu0 0.0
      %3412 = vmatpush1.msra.mxu0 0.0
      %3413 = vmatprep.subr.mxu0 0.0
      %3414 = vmatpush1.msra.mxu0 0.0
      %3415 = vmatprep.subr.mxu0 0.0
      %3416 = vmatpush1.msra.mxu0 0.0
      %3417 = vmatprep.subr.mxu0 0.0
      %3418 = vmatpush1.msra.mxu0 0.0
      %3419 = vmatprep.subr.mxu0 0.0
      %3420 = vmatpush1.msra.mxu0 0.0
      %3421 = vmatprep.subr.mxu0 0.0
      %3422 = vmatpush1.msra.mxu0 0.0
      %3423 = vmatprep.subr.mxu0 0.0
      %3424 = vmatpush1.msra.mxu0 0.0
      %3425 = vmatprep.subr.mxu0 0.0
      %3426 = vmatpush1.msra.mxu0 0.0
      %3427 = vmatprep.subr.mxu0 0.0
      %3428 = vmatpush1.msra.mxu0 0.0
      %3429 = vmatprep.subr.mxu0 0.0
      %3430 = vmatpush1.msra.mxu0 0.0
      %3431 = vmatprep.subr.mxu0 0.0
      %3432 = vmatpush1.msra.mxu0 0.0
      %3433 = vmatprep.subr.mxu0 0.0
      %3434 = vmatpush1.msra.mxu0 0.0
      %3435 = vmatprep.subr.mxu0 0.0
      %3436 = vmatpush1.msra.mxu0 0.0
      %3437 = vmatprep.subr.mxu0 0.0
      %3438 = vmatpush1.msra.mxu0 0.0
      %3439 = vmatprep.subr.mxu0 0.0
      %3440 = vmatpush1.msra.mxu0 0.0
      %3441 = vmatprep.subr.mxu0 0.0
      %3442 = vmatpush1.msra.mxu0 0.0
      %3443 = vmatprep.subr.mxu0 0.0
      %3444 = vmatpush1.msra.mxu0 0.0
      %3445 = vmatprep.subr.mxu0 0.0
      %3446 = vmatpush1.msra.mxu0 0.0
      %3447 = vmatprep.subr.mxu0 0.0
      %3448 = vmatpush1.msra.mxu0 0.0
      %3449 = vmatprep.subr.mxu0 0.0
      %3450 = vmatpush1.msra.mxu0 0.0
      %3451 = vmatprep.subr.mxu0 0.0
      %3452 = vmatpush1.msra.mxu0 0.0
      %3453 = vmatprep.subr.mxu0 0.0
      %3454 = vmatpush1.msra.mxu0 0.0
      %3455 = vmatprep.subr.mxu0 0.0
      %3456 = vmatpush1.msra.mxu0 0.0
      %3457 = vmatprep.subr.mxu0 0.0
      %3458 = vmatpush1.msra.mxu0 0.0
      %3459 = vmatprep.subr.mxu0 0.0
      %3460 = vmatpush1.msra.mxu0 0.0
      %3461 = vmatprep.subr.mxu0 0.0
      %3462 = vmatpush1.msra.mxu0 0.0
      %3463 = vmatprep.subr.mxu0 0.0
      %3464 = vmatpush1.msra.mxu0 0.0
      %3465 = vmatprep.subr.mxu0 0.0
      %3466 = vmatpush1.msra.mxu0 0.0
      %3467 = vmatprep.subr.mxu0 0.0
      %3468 = vmatpush1.msra.mxu0 0.0
      %3469 = vmatprep.subr.mxu0 0.0
      %3470 = vmatpush1.msra.mxu0 0.0
      %3471 = vmatprep.mubr.f32.mxu0 0.0
      %3472 = vmatmul.mubr.f32.gmra.mrb[0].mxu0 %v3405
      %v3473 = vpop.f32.mrb[0].mxu0
      %v3474 = vadd.f32 0.0, %v3473
      %v3475 = vpop.f32.mrb[0].mxu0
      %v3476 = vadd.f32 0.0, %v3475
      %3477 = vdwg.mxu0
      %v3478 = vadd.f32 %v3390, %v3474
      %v3479 = vadd.f32 %v3391, %v3476
      %3480 = vrot.lane.b32.xlu0 %v3042, 110
      %v3481 = vpop.permute.xlu0 %3480
      %3482 = vrot.lane.b32.xlu0 %v3043, 110
      %v3483 = vpop.permute.xlu0 %3482
      %3484 = vrot.lane.b32.xlu0 %v3048, 110
      %v3485 = vpop.permute.xlu0 %3484
      %v3486 = vsel %vm872, %v3481, %v3483
      %v3487 = vsel %vm872, %v3483, %v3485
      %v3490 = vsel %vm579, %v3486, 0.0
      %v3491 = vsel %vm580, %v3487, 0.0
      %s3492 = scalar_lea.vmem %s4, 184
      %v3493 = vld [vmem:[%s3492] sm:$0xff]
      %v3495 = vsel %vm1310, %v3493, 0
      %3497 = vmatprep.subr.mxu0 %v3491
      %3498 = vmatpush1.msra.mxu0 %v3490
      %3499 = vmatprep.subr.mxu0 0.0
      %3500 = vmatpush1.msra.mxu0 0.0
      %3501 = vmatprep.subr.mxu0 0.0
      %3502 = vmatpush1.msra.mxu0 0.0
      %3503 = vmatprep.subr.mxu0 0.0
      %3504 = vmatpush1.msra.mxu0 0.0
      %3505 = vmatprep.subr.mxu0 0.0
      %3506 = vmatpush1.msra.mxu0 0.0
      %3507 = vmatprep.subr.mxu0 0.0
      %3508 = vmatpush1.msra.mxu0 0.0
      %3509 = vmatprep.subr.mxu0 0.0
      %3510 = vmatpush1.msra.mxu0 0.0
      %3511 = vmatprep.subr.mxu0 0.0
      %3512 = vmatpush1.msra.mxu0 0.0
      %3513 = vmatprep.subr.mxu0 0.0
      %3514 = vmatpush1.msra.mxu0 0.0
      %3515 = vmatprep.subr.mxu0 0.0
      %3516 = vmatpush1.msra.mxu0 0.0
      %3517 = vmatprep.subr.mxu0 0.0
      %3518 = vmatpush1.msra.mxu0 0.0
      %3519 = vmatprep.subr.mxu0 0.0
      %3520 = vmatpush1.msra.mxu0 0.0
      %3521 = vmatprep.subr.mxu0 0.0
      %3522 = vmatpush1.msra.mxu0 0.0
      %3523 = vmatprep.subr.mxu0 0.0
      %3524 = vmatpush1.msra.mxu0 0.0
      %3525 = vmatprep.subr.mxu0 0.0
      %3526 = vmatpush1.msra.mxu0 0.0
      %3527 = vmatprep.subr.mxu0 0.0
      %3528 = vmatpush1.msra.mxu0 0.0
      %3529 = vmatprep.subr.mxu0 0.0
      %3530 = vmatpush1.msra.mxu0 0.0
      %3531 = vmatprep.subr.mxu0 0.0
      %3532 = vmatpush1.msra.mxu0 0.0
      %3533 = vmatprep.subr.mxu0 0.0
      %3534 = vmatpush1.msra.mxu0 0.0
      %3535 = vmatprep.subr.mxu0 0.0
      %3536 = vmatpush1.msra.mxu0 0.0
      %3537 = vmatprep.subr.mxu0 0.0
      %3538 = vmatpush1.msra.mxu0 0.0
      %3539 = vmatprep.subr.mxu0 0.0
      %3540 = vmatpush1.msra.mxu0 0.0
      %3541 = vmatprep.subr.mxu0 0.0
      %3542 = vmatpush1.msra.mxu0 0.0
      %3543 = vmatprep.subr.mxu0 0.0
      %3544 = vmatpush1.msra.mxu0 0.0
      %3545 = vmatprep.subr.mxu0 0.0
      %3546 = vmatpush1.msra.mxu0 0.0
      %3547 = vmatprep.subr.mxu0 0.0
      %3548 = vmatpush1.msra.mxu0 0.0
      %3549 = vmatprep.subr.mxu0 0.0
      %3550 = vmatpush1.msra.mxu0 0.0
      %3551 = vmatprep.subr.mxu0 0.0
      %3552 = vmatpush1.msra.mxu0 0.0
      %3553 = vmatprep.subr.mxu0 0.0
      %3554 = vmatpush1.msra.mxu0 0.0
      %3555 = vmatprep.subr.mxu0 0.0
      %3556 = vmatpush1.msra.mxu0 0.0
      %3557 = vmatprep.subr.mxu0 0.0
      %3558 = vmatpush1.msra.mxu0 0.0
      %3559 = vmatprep.subr.mxu0 0.0
      %3560 = vmatpush1.msra.mxu0 0.0
      %3561 = vmatprep.mubr.f32.mxu0 0.0
      %3562 = vmatmul.mubr.f32.gmra.mrb[0].mxu0 %v3495
      %v3563 = vpop.f32.mrb[0].mxu0
      %v3564 = vadd.f32 0.0, %v3563
      %v3565 = vpop.f32.mrb[0].mxu0
      %v3566 = vadd.f32 0.0, %v3565
      %3567 = vdwg.mxu0
      %v3568 = vadd.f32 %v3478, %v3564
      %v3569 = vadd.f32 %v3479, %v3566
      %3570 = vrot.lane.b32.xlu0 %v3042, 96
      %v3571 = vpop.permute.xlu0 %3570
      %3572 = vrot.lane.b32.xlu0 %v3043, 96
      %v3573 = vpop.permute.xlu0 %3572
      %3574 = vrot.lane.b32.xlu0 %v3048, 96
      %v3575 = vpop.permute.xlu0 %3574
      %v3576 = vsel %vm969, %v3571, %v3573
      %v3577 = vsel %vm969, %v3573, %v3575
      %v3580 = vsel %vm397, %v3576, 0.0
      %v3581 = vsel %vm398, %v3577, 0.0
      %s3582 = scalar_lea.vmem %s4, 192
      %v3583 = vld [vmem:[%s3582] sm:$0xff]
      %v3585 = vsel %vm1310, %v3583, 0
      %3587 = vmatprep.subr.mxu0 %v3581
      %3588 = vmatpush1.msra.mxu0 %v3580
      %3589 = vmatprep.subr.mxu0 0.0
      %3590 = vmatpush1.msra.mxu0 0.0
      %3591 = vmatprep.subr.mxu0 0.0
      %3592 = vmatpush1.msra.mxu0 0.0
      %3593 = vmatprep.subr.mxu0 0.0
      %3594 = vmatpush1.msra.mxu0 0.0
      %3595 = vmatprep.subr.mxu0 0.0
      %3596 = vmatpush1.msra.mxu0 0.0
      %3597 = vmatprep.subr.mxu0 0.0
      %3598 = vmatpush1.msra.mxu0 0.0
      %3599 = vmatprep.subr.mxu0 0.0
      %3600 = vmatpush1.msra.mxu0 0.0
      %3601 = vmatprep.subr.mxu0 0.0
      %3602 = vmatpush1.msra.mxu0 0.0
      %3603 = vmatprep.subr.mxu0 0.0
      %3604 = vmatpush1.msra.mxu0 0.0
      %3605 = vmatprep.subr.mxu0 0.0
      %3606 = vmatpush1.msra.mxu0 0.0
      %3607 = vmatprep.subr.mxu0 0.0
      %3608 = vmatpush1.msra.mxu0 0.0
      %3609 = vmatprep.subr.mxu0 0.0
      %3610 = vmatpush1.msra.mxu0 0.0
      %3611 = vmatprep.subr.mxu0 0.0
      %3612 = vmatpush1.msra.mxu0 0.0
      %3613 = vmatprep.subr.mxu0 0.0
      %3614 = vmatpush1.msra.mxu0 0.0
      %3615 = vmatprep.subr.mxu0 0.0
      %3616 = vmatpush1.msra.mxu0 0.0
      %3617 = vmatprep.subr.mxu0 0.0
      %3618 = vmatpush1.msra.mxu0 0.0
      %3619 = vmatprep.subr.mxu0 0.0
      %3620 = vmatpush1.msra.mxu0 0.0
      %3621 = vmatprep.subr.mxu0 0.0
      %3622 = vmatpush1.msra.mxu0 0.0
      %3623 = vmatprep.subr.mxu0 0.0
      %3624 = vmatpush1.msra.mxu0 0.0
      %3625 = vmatprep.subr.mxu0 0.0
      %3626 = vmatpush1.msra.mxu0 0.0
      %3627 = vmatprep.subr.mxu0 0.0
      %3628 = vmatpush1.msra.mxu0 0.0
      %3629 = vmatprep.subr.mxu0 0.0
      %3630 = vmatpush1.msra.mxu0 0.0
      %3631 = vmatprep.subr.mxu0 0.0
      %3632 = vmatpush1.msra.mxu0 0.0
      %3633 = vmatprep.subr.mxu0 0.0
      %3634 = vmatpush1.msra.mxu0 0.0
      %3635 = vmatprep.subr.mxu0 0.0
      %3636 = vmatpush1.msra.mxu0 0.0
      %3637 = vmatprep.subr.mxu0 0.0
      %3638 = vmatpush1.msra.mxu0 0.0
      %3639 = vmatprep.subr.mxu0 0.0
      %3640 = vmatpush1.msra.mxu0 0.0
      %3641 = vmatprep.subr.mxu0 0.0
      %3642 = vmatpush1.msra.mxu0 0.0
      %3643 = vmatprep.subr.mxu0 0.0
      %3644 = vmatpush1.msra.mxu0 0.0
      %3645 = vmatprep.subr.mxu0 0.0
      %3646 = vmatpush1.msra.mxu0 0.0
      %3647 = vmatprep.subr.mxu0 0.0
      %3648 = vmatpush1.msra.mxu0 0.0
      %3649 = vmatprep.subr.mxu0 0.0
      %3650 = vmatpush1.msra.mxu0 0.0
      %3651 = vmatprep.mubr.f32.mxu0 0.0
      %3652 = vmatmul.mubr.f32.gmra.mrb[0].mxu0 %v3585
      %v3653 = vpop.f32.mrb[0].mxu0
      %v3654 = vadd.f32 0.0, %v3653
      %v3655 = vpop.f32.mrb[0].mxu0
      %v3656 = vadd.f32 0.0, %v3655
      %3657 = vdwg.mxu0
      %v3658 = vadd.f32 %v3568, %v3654
      %v3659 = vadd.f32 %v3569, %v3656
      %s3660 = scalar_lea.vmem %s4, 200
      %v3661 = vld [vmem:[%s3660] sm:$0xff]
      %3662 = vrot.lane.b32.xlu0 %v3042, 95
      %v3663 = vpop.permute.xlu0 %3662
      %3664 = vrot.lane.b32.xlu0 %v3043, 95
      %v3665 = vpop.permute.xlu0 %3664
      %3666 = vrot.lane.b32.xlu0 %v3048, 95
      %v3667 = vpop.permute.xlu0 %3666
      %v3668 = vsel %vm1068, %v3663, %v3665
      %v3669 = vsel %vm1068, %v3665, %v3667
      %v3673 = vsel %vm1310, %v3661, 0
      %3675 = vmatprep.subr.mxu0 %v3669
      %3676 = vmatpush1.msra.mxu0 %v3668
      %3677 = vmatprep.subr.mxu0 0.0
      %3678 = vmatpush1.msra.mxu0 0.0
      %3679 = vmatprep.subr.mxu0 0.0
      %3680 = vmatpush1.msra.mxu0 0.0
      %3681 = vmatprep.subr.mxu0 0.0
      %3682 = vmatpush1.msra.mxu0 0.0
      %3683 = vmatprep.subr.mxu0 0.0
      %3684 = vmatpush1.msra.mxu0 0.0
      %3685 = vmatprep.subr.mxu0 0.0
      %3686 = vmatpush1.msra.mxu0 0.0
      %3687 = vmatprep.subr.mxu0 0.0
      %3688 = vmatpush1.msra.mxu0 0.0
      %3689 = vmatprep.subr.mxu0 0.0
      %3690 = vmatpush1.msra.mxu0 0.0
      %3691 = vmatprep.subr.mxu0 0.0
      %3692 = vmatpush1.msra.mxu0 0.0
      %3693 = vmatprep.subr.mxu0 0.0
      %3694 = vmatpush1.msra.mxu0 0.0
      %3695 = vmatprep.subr.mxu0 0.0
      %3696 = vmatpush1.msra.mxu0 0.0
      %3697 = vmatprep.subr.mxu0 0.0
      %3698 = vmatpush1.msra.mxu0 0.0
      %3699 = vmatprep.subr.mxu0 0.0
      %3700 = vmatpush1.msra.mxu0 0.0
      %3701 = vmatprep.subr.mxu0 0.0
      %3702 = vmatpush1.msra.mxu0 0.0
      %3703 = vmatprep.subr.mxu0 0.0
      %3704 = vmatpush1.msra.mxu0 0.0
      %3705 = vmatprep.subr.mxu0 0.0
      %3706 = vmatpush1.msra.mxu0 0.0
      %3707 = vmatprep.subr.mxu0 0.0
      %3708 = vmatpush1.msra.mxu0 0.0
      %3709 = vmatprep.subr.mxu0 0.0
      %3710 = vmatpush1.msra.mxu0 0.0
      %3711 = vmatprep.subr.mxu0 0.0
      %3712 = vmatpush1.msra.mxu0 0.0
      %3713 = vmatprep.subr.mxu0 0.0
      %3714 = vmatpush1.msra.mxu0 0.0
      %3715 = vmatprep.subr.mxu0 0.0
      %3716 = vmatpush1.msra.mxu0 0.0
      %3717 = vmatprep.subr.mxu0 0.0
      %3718 = vmatpush1.msra.mxu0 0.0
      %3719 = vmatprep.subr.mxu0 0.0
      %3720 = vmatpush1.msra.mxu0 0.0
      %3721 = vmatprep.subr.mxu0 0.0
      %3722 = vmatpush1.msra.mxu0 0.0
      %3723 = vmatprep.subr.mxu0 0.0
      %3724 = vmatpush1.msra.mxu0 0.0
      %3725 = vmatprep.subr.mxu0 0.0
      %3726 = vmatpush1.msra.mxu0 0.0
      %3727 = vmatprep.subr.mxu0 0.0
      %3728 = vmatpush1.msra.mxu0 0.0
      %3729 = vmatprep.subr.mxu0 0.0
      %3730 = vmatpush1.msra.mxu0 0.0
      %3731 = vmatprep.subr.mxu0 0.0
      %3732 = vmatpush1.msra.mxu0 0.0
      %3733 = vmatprep.subr.mxu0 0.0
      %3734 = vmatpush1.msra.mxu0 0.0
      %3735 = vmatprep.subr.mxu0 0.0
      %3736 = vmatpush1.msra.mxu0 0.0
      %3737 = vmatprep.subr.mxu0 0.0
      %3738 = vmatpush1.msra.mxu0 0.0
      %3739 = vmatprep.mubr.f32.mxu0 0.0
      %3740 = vmatmul.mubr.f32.gmra.mrb[0].mxu0 %v3673
      %v3741 = vpop.f32.mrb[0].mxu0
      %v3742 = vadd.f32 0.0, %v3741
      %v3743 = vpop.f32.mrb[0].mxu0
      %v3744 = vadd.f32 0.0, %v3743
      %3745 = vdwg.mxu0
      %v3746 = vadd.f32 %v3658, %v3742
      %v3747 = vadd.f32 %v3659, %v3744
      %3748 = vrot.lane.b32.xlu0 %v3042, 94
      %v3749 = vpop.permute.xlu0 %3748
      %3750 = vrot.lane.b32.xlu0 %v3043, 94
      %v3751 = vpop.permute.xlu0 %3750
      %3752 = vrot.lane.b32.xlu0 %v3048, 94
      %v3753 = vpop.permute.xlu0 %3752
      %v3754 = vsel %vm1157, %v3749, %v3751
      %v3755 = vsel %vm1157, %v3751, %v3753
      %v3758 = vsel %vm579, %v3754, 0.0
      %v3759 = vsel %vm580, %v3755, 0.0
      %s3760 = scalar_lea.vmem %s4, 208
      %v3761 = vld [vmem:[%s3760] sm:$0xff]
      %v3763 = vsel %vm1310, %v3761, 0
      %3765 = vmatprep.subr.mxu0 %v3759
      %3766 = vmatpush1.msra.mxu0 %v3758
      %3767 = vmatprep.subr.mxu0 0.0
      %3768 = vmatpush1.msra.mxu0 0.0
      %3769 = vmatprep.subr.mxu0 0.0
      %3770 = vmatpush1.msra.mxu0 0.0
      %3771 = vmatprep.subr.mxu0 0.0
      %3772 = vmatpush1.msra.mxu0 0.0
      %3773 = vmatprep.subr.mxu0 0.0
      %3774 = vmatpush1.msra.mxu0 0.0
      %3775 = vmatprep.subr.mxu0 0.0
      %3776 = vmatpush1.msra.mxu0 0.0
      %3777 = vmatprep.subr.mxu0 0.0
      %3778 = vmatpush1.msra.mxu0 0.0
      %3779 = vmatprep.subr.mxu0 0.0
      %3780 = vmatpush1.msra.mxu0 0.0
      %3781 = vmatprep.subr.mxu0 0.0
      %3782 = vmatpush1.msra.mxu0 0.0
      %3783 = vmatprep.subr.mxu0 0.0
      %3784 = vmatpush1.msra.mxu0 0.0
      %3785 = vmatprep.subr.mxu0 0.0
      %3786 = vmatpush1.msra.mxu0 0.0
      %3787 = vmatprep.subr.mxu0 0.0
      %3788 = vmatpush1.msra.mxu0 0.0
      %3789 = vmatprep.subr.mxu0 0.0
      %3790 = vmatpush1.msra.mxu0 0.0
      %3791 = vmatprep.subr.mxu0 0.0
      %3792 = vmatpush1.msra.mxu0 0.0
      %3793 = vmatprep.subr.mxu0 0.0
      %3794 = vmatpush1.msra.mxu0 0.0
      %3795 = vmatprep.subr.mxu0 0.0
      %3796 = vmatpush1.msra.mxu0 0.0
      %3797 = vmatprep.subr.mxu0 0.0
      %3798 = vmatpush1.msra.mxu0 0.0
      %3799 = vmatprep.subr.mxu0 0.0
      %3800 = vmatpush1.msra.mxu0 0.0
      %3801 = vmatprep.subr.mxu0 0.0
      %3802 = vmatpush1.msra.mxu0 0.0
      %3803 = vmatprep.subr.mxu0 0.0
      %3804 = vmatpush1.msra.mxu0 0.0
      %3805 = vmatprep.subr.mxu0 0.0
      %3806 = vmatpush1.msra.mxu0 0.0
      %3807 = vmatprep.subr.mxu0 0.0
      %3808 = vmatpush1.msra.mxu0 0.0
      %3809 = vmatprep.subr.mxu0 0.0
      %3810 = vmatpush1.msra.mxu0 0.0
      %3811 = vmatprep.subr.mxu0 0.0
      %3812 = vmatpush1.msra.mxu0 0.0
      %3813 = vmatprep.subr.mxu0 0.0
      %3814 = vmatpush1.msra.mxu0 0.0
      %3815 = vmatprep.subr.mxu0 0.0
      %3816 = vmatpush1.msra.mxu0 0.0
      %3817 = vmatprep.subr.mxu0 0.0
      %3818 = vmatpush1.msra.mxu0 0.0
      %3819 = vmatprep.subr.mxu0 0.0
      %3820 = vmatpush1.msra.mxu0 0.0
      %3821 = vmatprep.subr.mxu0 0.0
      %3822 = vmatpush1.msra.mxu0 0.0
      %3823 = vmatprep.subr.mxu0 0.0
      %3824 = vmatpush1.msra.mxu0 0.0
      %3825 = vmatprep.subr.mxu0 0.0
      %3826 = vmatpush1.msra.mxu0 0.0
      %3827 = vmatprep.subr.mxu0 0.0
      %3828 = vmatpush1.msra.mxu0 0.0
      %3829 = vmatprep.mubr.f32.mxu0 0.0
      %3830 = vmatmul.mubr.f32.gmra.mrb[0].mxu0 %v3763
      %v3831 = vpop.f32.mrb[0].mxu0
      %v3832 = vadd.f32 0.0, %v3831
      %v3833 = vpop.f32.mrb[0].mxu0
      %v3834 = vadd.f32 0.0, %v3833
      %3835 = vdwg.mxu0
      %v3836 = vadd.f32 %v3746, %v3832
      %v3837 = vadd.f32 %v3747, %v3834
      %3839 = vset.pattern.permute.xlu0 0
      %3840 = vperm.xlu0 %3839, %v3028
      %v3841 = vpop.permute.xlu0 %3840
      %v3843 = vadd.f32 %v3836, %v3841
      %v3844 = vadd.f32 %v3837, %v3841
      %v3845 = vmax.f32 %v3843, 0.0
      %v3846 = vmax.f32 %v3844, 0.0
      %s3847 = scalar_lea.vmem %s6, 24
      %v3848 = vld [vmem:[%s3847] sm:$0xff]
      %3850 = vset.pattern.permute.xlu0 0
      %3851 = vperm.xlu0 %3850, %v3848
      %v3852 = vpop.permute.xlu0 %3851
      %v3854 = vmul.f32 %v3845, %v3852
      %v3855 = vmul.f32 %v3846, %v3852
      %s3856 = scalar_lea.vmem %s7, 24
      %v3857 = vld [vmem:[%s3856] sm:$0xff]
      %3859 = vset.pattern.permute.xlu0 0
      %3860 = vperm.xlu0 %3859, %v3857
      %v3861 = vpop.permute.xlu0 %3860
      %v3863 = vadd.f32 %v3854, %v3861
      %v3864 = vadd.f32 %v3855, %v3861
      %s3865 = scalar_lea.vmem %s5, 32
      %v3866 = vld [vmem:[%s3865] sm:$0xff]
      %3869 = vrot.lane.b32.xlu0 %v3863, 17
      %v3870 = vpop.permute.xlu0 %3869
      %3871 = vrot.lane.b32.xlu0 %v3864, 17
      %v3872 = vpop.permute.xlu0 %3871
      %v3873 = vsel %vm383, %v3870, %v3872
      %3877 = vst.msk [vmem:[#allocation2] sm:$0xff] %vm1285, %v3870
      %3878 = vst [vmem:[#allocation2 + $0x8] sm:$0xff] %v3873
      %3879 = vst.msk [vmem:[#allocation2 + $0x10] sm:$0xff] %vm383, %v3872
      %v3880 = vld [vmem:[#allocation2] sm:$0xff]
      %v3881 = vld [vmem:[#allocation2 + $0x8] sm:$0xff]
      %v3882 = vsel %vm397, %v3880, 0.0
      %v3883 = vsel %vm398, %v3881, 0.0
      %s3884 = scalar_lea.vmem %s4, 216
      %v3885 = vld [vmem:[%s3884] sm:$0xff]
      %v3886 = vld [vmem:[#allocation2 + $0x10] sm:$0xff]
      %s3887 = scalar_lea.vmem %s4, 224
      %v3888 = vld [vmem:[%s3887] sm:$0xff]
      %3892 = vrot.lane.b32.xlu0 %v3880, 127
      %v3893 = vpop.permute.xlu0 %3892
      %3894 = vrot.lane.b32.xlu0 %v3881, 127
      %v3895 = vpop.permute.xlu0 %3894
      %3896 = vrot.lane.b32.xlu0 %v3886, 127
      %v3897 = vpop.permute.xlu0 %3896
      %v3898 = vsel %vm414, %v3893, %v3895
      %v3899 = vsel %vm414, %v3895, %v3897
      %v3903 = vsel %vm1310, %v3888, 0
      %3905 = vmatprep.subr.mxu0 %v3899
      %3906 = vmatpush1.msra.mxu0 %v3898
      %3907 = vmatprep.subr.mxu0 0.0
      %3908 = vmatpush1.msra.mxu0 0.0
      %3909 = vmatprep.subr.mxu0 0.0
      %3910 = vmatpush1.msra.mxu0 0.0
      %3911 = vmatprep.subr.mxu0 0.0
      %3912 = vmatpush1.msra.mxu0 0.0
      %3913 = vmatprep.subr.mxu0 0.0
      %3914 = vmatpush1.msra.mxu0 0.0
      %3915 = vmatprep.subr.mxu0 0.0
      %3916 = vmatpush1.msra.mxu0 0.0
      %3917 = vmatprep.subr.mxu0 0.0
      %3918 = vmatpush1.msra.mxu0 0.0
      %3919 = vmatprep.subr.mxu0 0.0
      %3920 = vmatpush1.msra.mxu0 0.0
      %3921 = vmatprep.subr.mxu0 0.0
      %3922 = vmatpush1.msra.mxu0 0.0
      %3923 = vmatprep.subr.mxu0 0.0
      %3924 = vmatpush1.msra.mxu0 0.0
      %3925 = vmatprep.subr.mxu0 0.0
      %3926 = vmatpush1.msra.mxu0 0.0
      %3927 = vmatprep.subr.mxu0 0.0
      %3928 = vmatpush1.msra.mxu0 0.0
      %3929 = vmatprep.subr.mxu0 0.0
      %3930 = vmatpush1.msra.mxu0 0.0
      %3931 = vmatprep.subr.mxu0 0.0
      %3932 = vmatpush1.msra.mxu0 0.0
      %3933 = vmatprep.subr.mxu0 0.0
      %3934 = vmatpush1.msra.mxu0 0.0
      %3935 = vmatprep.subr.mxu0 0.0
      %3936 = vmatpush1.msra.mxu0 0.0
      %3937 = vmatprep.subr.mxu0 0.0
      %3938 = vmatpush1.msra.mxu0 0.0
      %3939 = vmatprep.subr.mxu0 0.0
      %3940 = vmatpush1.msra.mxu0 0.0
      %3941 = vmatprep.subr.mxu0 0.0
      %3942 = vmatpush1.msra.mxu0 0.0
      %3943 = vmatprep.subr.mxu0 0.0
      %3944 = vmatpush1.msra.mxu0 0.0
      %3945 = vmatprep.subr.mxu0 0.0
      %3946 = vmatpush1.msra.mxu0 0.0
      %3947 = vmatprep.subr.mxu0 0.0
      %3948 = vmatpush1.msra.mxu0 0.0
      %3949 = vmatprep.subr.mxu0 0.0
      %3950 = vmatpush1.msra.mxu0 0.0
      %3951 = vmatprep.subr.mxu0 0.0
      %3952 = vmatpush1.msra.mxu0 0.0
      %3953 = vmatprep.subr.mxu0 0.0
      %3954 = vmatpush1.msra.mxu0 0.0
      %3955 = vmatprep.subr.mxu0 0.0
      %3956 = vmatpush1.msra.mxu0 0.0
      %3957 = vmatprep.subr.mxu0 0.0
      %3958 = vmatpush1.msra.mxu0 0.0
      %3959 = vmatprep.subr.mxu0 0.0
      %3960 = vmatpush1.msra.mxu0 0.0
      %3961 = vmatprep.subr.mxu0 0.0
      %3962 = vmatpush1.msra.mxu0 0.0
      %3963 = vmatprep.subr.mxu0 0.0
      %3964 = vmatpush1.msra.mxu0 0.0
      %3965 = vmatprep.subr.mxu0 0.0
      %3966 = vmatpush1.msra.mxu0 0.0
      %3967 = vmatprep.subr.mxu0 0.0
      %3968 = vmatpush1.msra.mxu0 0.0
      %3969 = vmatprep.mubr.f32.mxu0 0.0
      %3970 = vmatmul.mubr.f32.gmra.mrb[0].mxu0 %v3903
      %v3971 = vpop.f32.mrb[0].mxu0
      %v3972 = vadd.f32 0.0, %v3971
      %v3973 = vpop.f32.mrb[0].mxu0
      %v3974 = vadd.f32 0.0, %v3973
      %3975 = vdwg.mxu0
      %v3977 = vsel %vm1310, %v3885, 0
      %3979 = vmatprep.subr.mxu0 %v3883
      %3980 = vmatpush1.msra.mxu0 %v3882
      %3981 = vmatprep.subr.mxu0 0.0
      %3982 = vmatpush1.msra.mxu0 0.0
      %3983 = vmatprep.subr.mxu0 0.0
      %3984 = vmatpush1.msra.mxu0 0.0
      %3985 = vmatprep.subr.mxu0 0.0
      %3986 = vmatpush1.msra.mxu0 0.0
      %3987 = vmatprep.subr.mxu0 0.0
      %3988 = vmatpush1.msra.mxu0 0.0
      %3989 = vmatprep.subr.mxu0 0.0
      %3990 = vmatpush1.msra.mxu0 0.0
      %3991 = vmatprep.subr.mxu0 0.0
      %3992 = vmatpush1.msra.mxu0 0.0
      %3993 = vmatprep.subr.mxu0 0.0
      %3994 = vmatpush1.msra.mxu0 0.0
      %3995 = vmatprep.subr.mxu0 0.0
      %3996 = vmatpush1.msra.mxu0 0.0
      %3997 = vmatprep.subr.mxu0 0.0
      %3998 = vmatpush1.msra.mxu0 0.0
      %3999 = vmatprep.subr.mxu0 0.0
      %4000 = vmatpush1.msra.mxu0 0.0
      %4001 = vmatprep.subr.mxu0 0.0
      %4002 = vmatpush1.msra.mxu0 0.0
      %4003 = vmatprep.subr.mxu0 0.0
      %4004 = vmatpush1.msra.mxu0 0.0
      %4005 = vmatprep.subr.mxu0 0.0
      %4006 = vmatpush1.msra.mxu0 0.0
      %4007 = vmatprep.subr.mxu0 0.0
      %4008 = vmatpush1.msra.mxu0 0.0
      %4009 = vmatprep.subr.mxu0 0.0
      %4010 = vmatpush1.msra.mxu0 0.0
      %4011 = vmatprep.subr.mxu0 0.0
      %4012 = vmatpush1.msra.mxu0 0.0
      %4013 = vmatprep.subr.mxu0 0.0
      %4014 = vmatpush1.msra.mxu0 0.0
      %4015 = vmatprep.subr.mxu0 0.0
      %4016 = vmatpush1.msra.mxu0 0.0
      %4017 = vmatprep.subr.mxu0 0.0
      %4018 = vmatpush1.msra.mxu0 0.0
      %4019 = vmatprep.subr.mxu0 0.0
      %4020 = vmatpush1.msra.mxu0 0.0
      %4021 = vmatprep.subr.mxu0 0.0
      %4022 = vmatpush1.msra.mxu0 0.0
      %4023 = vmatprep.subr.mxu0 0.0
      %4024 = vmatpush1.msra.mxu0 0.0
      %4025 = vmatprep.subr.mxu0 0.0
      %4026 = vmatpush1.msra.mxu0 0.0
      %4027 = vmatprep.subr.mxu0 0.0
      %4028 = vmatpush1.msra.mxu0 0.0
      %4029 = vmatprep.subr.mxu0 0.0
      %4030 = vmatpush1.msra.mxu0 0.0
      %4031 = vmatprep.subr.mxu0 0.0
      %4032 = vmatpush1.msra.mxu0 0.0
      %4033 = vmatprep.subr.mxu0 0.0
      %4034 = vmatpush1.msra.mxu0 0.0
      %4035 = vmatprep.subr.mxu0 0.0
      %4036 = vmatpush1.msra.mxu0 0.0
      %4037 = vmatprep.subr.mxu0 0.0
      %4038 = vmatpush1.msra.mxu0 0.0
      %4039 = vmatprep.subr.mxu0 0.0
      %4040 = vmatpush1.msra.mxu0 0.0
      %4041 = vmatprep.subr.mxu0 0.0
      %4042 = vmatpush1.msra.mxu0 0.0
      %4043 = vmatprep.mubr.f32.mxu0 0.0
      %4044 = vmatmul.mubr.f32.gmra.mrb[0].mxu0 %v3977
      %v4045 = vpop.f32.mrb[0].mxu0
      %v4046 = vadd.f32 %v3972, %v4045
      %v4047 = vpop.f32.mrb[0].mxu0
      %v4048 = vadd.f32 %v3974, %v4047
      %4049 = vdwg.mxu0
      %4050 = vrot.lane.b32.xlu0 %v3880, 126
      %v4051 = vpop.permute.xlu0 %4050
      %4052 = vrot.lane.b32.xlu0 %v3881, 126
      %v4053 = vpop.permute.xlu0 %4052
      %4054 = vrot.lane.b32.xlu0 %v3886, 126
      %v4055 = vpop.permute.xlu0 %4054
      %v4056 = vsel %vm587, %v4051, %v4053
      %v4057 = vsel %vm587, %v4053, %v4055
      %v4060 = vsel %vm579, %v4056, 0.0
      %v4061 = vsel %vm580, %v4057, 0.0
      %s4062 = scalar_lea.vmem %s4, 232
      %v4063 = vld [vmem:[%s4062] sm:$0xff]
      %v4065 = vsel %vm1310, %v4063, 0
      %4067 = vmatprep.subr.mxu0 %v4061
      %4068 = vmatpush1.msra.mxu0 %v4060
      %4069 = vmatprep.subr.mxu0 0.0
      %4070 = vmatpush1.msra.mxu0 0.0
      %4071 = vmatprep.subr.mxu0 0.0
      %4072 = vmatpush1.msra.mxu0 0.0
      %4073 = vmatprep.subr.mxu0 0.0
      %4074 = vmatpush1.msra.mxu0 0.0
      %4075 = vmatprep.subr.mxu0 0.0
      %4076 = vmatpush1.msra.mxu0 0.0
      %4077 = vmatprep.subr.mxu0 0.0
      %4078 = vmatpush1.msra.mxu0 0.0
      %4079 = vmatprep.subr.mxu0 0.0
      %4080 = vmatpush1.msra.mxu0 0.0
      %4081 = vmatprep.subr.mxu0 0.0
      %4082 = vmatpush1.msra.mxu0 0.0
      %4083 = vmatprep.subr.mxu0 0.0
      %4084 = vmatpush1.msra.mxu0 0.0
      %4085 = vmatprep.subr.mxu0 0.0
      %4086 = vmatpush1.msra.mxu0 0.0
      %4087 = vmatprep.subr.mxu0 0.0
      %4088 = vmatpush1.msra.mxu0 0.0
      %4089 = vmatprep.subr.mxu0 0.0
      %4090 = vmatpush1.msra.mxu0 0.0
      %4091 = vmatprep.subr.mxu0 0.0
      %4092 = vmatpush1.msra.mxu0 0.0
      %4093 = vmatprep.subr.mxu0 0.0
      %4094 = vmatpush1.msra.mxu0 0.0
      %4095 = vmatprep.subr.mxu0 0.0
      %4096 = vmatpush1.msra.mxu0 0.0
      %4097 = vmatprep.subr.mxu0 0.0
      %4098 = vmatpush1.msra.mxu0 0.0
      %4099 = vmatprep.subr.mxu0 0.0
      %4100 = vmatpush1.msra.mxu0 0.0
      %4101 = vmatprep.subr.mxu0 0.0
      %4102 = vmatpush1.msra.mxu0 0.0
      %4103 = vmatprep.subr.mxu0 0.0
      %4104 = vmatpush1.msra.mxu0 0.0
      %4105 = vmatprep.subr.mxu0 0.0
      %4106 = vmatpush1.msra.mxu0 0.0
      %4107 = vmatprep.subr.mxu0 0.0
      %4108 = vmatpush1.msra.mxu0 0.0
      %4109 = vmatprep.subr.mxu0 0.0
      %4110 = vmatpush1.msra.mxu0 0.0
      %4111 = vmatprep.subr.mxu0 0.0
      %4112 = vmatpush1.msra.mxu0 0.0
      %4113 = vmatprep.subr.mxu0 0.0
      %4114 = vmatpush1.msra.mxu0 0.0
      %4115 = vmatprep.subr.mxu0 0.0
      %4116 = vmatpush1.msra.mxu0 0.0
      %4117 = vmatprep.subr.mxu0 0.0
      %4118 = vmatpush1.msra.mxu0 0.0
      %4119 = vmatprep.subr.mxu0 0.0
      %4120 = vmatpush1.msra.mxu0 0.0
      %4121 = vmatprep.subr.mxu0 0.0
      %4122 = vmatpush1.msra.mxu0 0.0
      %4123 = vmatprep.subr.mxu0 0.0
      %4124 = vmatpush1.msra.mxu0 0.0
      %4125 = vmatprep.subr.mxu0 0.0
      %4126 = vmatpush1.msra.mxu0 0.0
      %4127 = vmatprep.subr.mxu0 0.0
      %4128 = vmatpush1.msra.mxu0 0.0
      %4129 = vmatprep.subr.mxu0 0.0
      %4130 = vmatpush1.msra.mxu0 0.0
      %4131 = vmatprep.mubr.f32.mxu0 0.0
      %4132 = vmatmul.mubr.f32.gmra.mrb[0].mxu0 %v4065
      %v4133 = vpop.f32.mrb[0].mxu0
      %v4134 = vadd.f32 0.0, %v4133
      %v4135 = vpop.f32.mrb[0].mxu0
      %v4136 = vadd.f32 0.0, %v4135
      %4137 = vdwg.mxu0
      %v4138 = vadd.f32 %v4046, %v4134
      %v4139 = vadd.f32 %v4048, %v4136
      %4140 = vrot.lane.b32.xlu0 %v3880, 112
      %v4141 = vpop.permute.xlu0 %4140
      %4142 = vrot.lane.b32.xlu0 %v3881, 112
      %v4143 = vpop.permute.xlu0 %4142
      %4144 = vrot.lane.b32.xlu0 %v3886, 112
      %v4145 = vpop.permute.xlu0 %4144
      %v4146 = vsel %vm684, %v4141, %v4143
      %v4147 = vsel %vm684, %v4143, %v4145
      %v4150 = vsel %vm397, %v4146, 0.0
      %v4151 = vsel %vm398, %v4147, 0.0
      %s4152 = scalar_lea.vmem %s4, 240
      %v4153 = vld [vmem:[%s4152] sm:$0xff]
      %v4155 = vsel %vm1310, %v4153, 0
      %4157 = vmatprep.subr.mxu0 %v4151
      %4158 = vmatpush1.msra.mxu0 %v4150
      %4159 = vmatprep.subr.mxu0 0.0
      %4160 = vmatpush1.msra.mxu0 0.0
      %4161 = vmatprep.subr.mxu0 0.0
      %4162 = vmatpush1.msra.mxu0 0.0
      %4163 = vmatprep.subr.mxu0 0.0
      %4164 = vmatpush1.msra.mxu0 0.0
      %4165 = vmatprep.subr.mxu0 0.0
      %4166 = vmatpush1.msra.mxu0 0.0
      %4167 = vmatprep.subr.mxu0 0.0
      %4168 = vmatpush1.msra.mxu0 0.0
      %4169 = vmatprep.subr.mxu0 0.0
      %4170 = vmatpush1.msra.mxu0 0.0
      %4171 = vmatprep.subr.mxu0 0.0
      %4172 = vmatpush1.msra.mxu0 0.0
      %4173 = vmatprep.subr.mxu0 0.0
      %4174 = vmatpush1.msra.mxu0 0.0
      %4175 = vmatprep.subr.mxu0 0.0
      %4176 = vmatpush1.msra.mxu0 0.0
      %4177 = vmatprep.subr.mxu0 0.0
      %4178 = vmatpush1.msra.mxu0 0.0
      %4179 = vmatprep.subr.mxu0 0.0
      %4180 = vmatpush1.msra.mxu0 0.0
      %4181 = vmatprep.subr.mxu0 0.0
      %4182 = vmatpush1.msra.mxu0 0.0
      %4183 = vmatprep.subr.mxu0 0.0
      %4184 = vmatpush1.msra.mxu0 0.0
      %4185 = vmatprep.subr.mxu0 0.0
      %4186 = vmatpush1.msra.mxu0 0.0
      %4187 = vmatprep.subr.mxu0 0.0
      %4188 = vmatpush1.msra.mxu0 0.0
      %4189 = vmatprep.subr.mxu0 0.0
      %4190 = vmatpush1.msra.mxu0 0.0
      %4191 = vmatprep.subr.mxu0 0.0
      %4192 = vmatpush1.msra.mxu0 0.0
      %4193 = vmatprep.subr.mxu0 0.0
      %4194 = vmatpush1.msra.mxu0 0.0
      %4195 = vmatprep.subr.mxu0 0.0
      %4196 = vmatpush1.msra.mxu0 0.0
      %4197 = vmatprep.subr.mxu0 0.0
      %4198 = vmatpush1.msra.mxu0 0.0
      %4199 = vmatprep.subr.mxu0 0.0
      %4200 = vmatpush1.msra.mxu0 0.0
      %4201 = vmatprep.subr.mxu0 0.0
      %4202 = vmatpush1.msra.mxu0 0.0
      %4203 = vmatprep.subr.mxu0 0.0
      %4204 = vmatpush1.msra.mxu0 0.0
      %4205 = vmatprep.subr.mxu0 0.0
      %4206 = vmatpush1.msra.mxu0 0.0
      %4207 = vmatprep.subr.mxu0 0.0
      %4208 = vmatpush1.msra.mxu0 0.0
      %4209 = vmatprep.subr.mxu0 0.0
      %4210 = vmatpush1.msra.mxu0 0.0
      %4211 = vmatprep.subr.mxu0 0.0
      %4212 = vmatpush1.msra.mxu0 0.0
      %4213 = vmatprep.subr.mxu0 0.0
      %4214 = vmatpush1.msra.mxu0 0.0
      %4215 = vmatprep.subr.mxu0 0.0
      %4216 = vmatpush1.msra.mxu0 0.0
      %4217 = vmatprep.subr.mxu0 0.0
      %4218 = vmatpush1.msra.mxu0 0.0
      %4219 = vmatprep.subr.mxu0 0.0
      %4220 = vmatpush1.msra.mxu0 0.0
      %4221 = vmatprep.mubr.f32.mxu0 0.0
      %4222 = vmatmul.mubr.f32.gmra.mrb[0].mxu0 %v4155
      %v4223 = vpop.f32.mrb[0].mxu0
      %v4224 = vadd.f32 0.0, %v4223
      %v4225 = vpop.f32.mrb[0].mxu0
      %v4226 = vadd.f32 0.0, %v4225
      %4227 = vdwg.mxu0
      %v4228 = vadd.f32 %v4138, %v4224
      %v4229 = vadd.f32 %v4139, %v4226
      %s4230 = scalar_lea.vmem %s4, 248
      %v4231 = vld [vmem:[%s4230] sm:$0xff]
      %4232 = vrot.lane.b32.xlu0 %v3880, 111
      %v4233 = vpop.permute.xlu0 %4232
      %4234 = vrot.lane.b32.xlu0 %v3881, 111
      %v4235 = vpop.permute.xlu0 %4234
      %4236 = vrot.lane.b32.xlu0 %v3886, 111
      %v4237 = vpop.permute.xlu0 %4236
      %v4238 = vsel %vm783, %v4233, %v4235
      %v4239 = vsel %vm783, %v4235, %v4237
      %v4243 = vsel %vm1310, %v4231, 0
      %4245 = vmatprep.subr.mxu0 %v4239
      %4246 = vmatpush1.msra.mxu0 %v4238
      %4247 = vmatprep.subr.mxu0 0.0
      %4248 = vmatpush1.msra.mxu0 0.0
      %4249 = vmatprep.subr.mxu0 0.0
      %4250 = vmatpush1.msra.mxu0 0.0
      %4251 = vmatprep.subr.mxu0 0.0
      %4252 = vmatpush1.msra.mxu0 0.0
      %4253 = vmatprep.subr.mxu0 0.0
      %4254 = vmatpush1.msra.mxu0 0.0
      %4255 = vmatprep.subr.mxu0 0.0
      %4256 = vmatpush1.msra.mxu0 0.0
      %4257 = vmatprep.subr.mxu0 0.0
      %4258 = vmatpush1.msra.mxu0 0.0
      %4259 = vmatprep.subr.mxu0 0.0
      %4260 = vmatpush1.msra.mxu0 0.0
      %4261 = vmatprep.subr.mxu0 0.0
      %4262 = vmatpush1.msra.mxu0 0.0
      %4263 = vmatprep.subr.mxu0 0.0
      %4264 = vmatpush1.msra.mxu0 0.0
      %4265 = vmatprep.subr.mxu0 0.0
      %4266 = vmatpush1.msra.mxu0 0.0
      %4267 = vmatprep.subr.mxu0 0.0
      %4268 = vmatpush1.msra.mxu0 0.0
      %4269 = vmatprep.subr.mxu0 0.0
      %4270 = vmatpush1.msra.mxu0 0.0
      %4271 = vmatprep.subr.mxu0 0.0
      %4272 = vmatpush1.msra.mxu0 0.0
      %4273 = vmatprep.subr.mxu0 0.0
      %4274 = vmatpush1.msra.mxu0 0.0
      %4275 = vmatprep.subr.mxu0 0.0
      %4276 = vmatpush1.msra.mxu0 0.0
      %4277 = vmatprep.subr.mxu0 0.0
      %4278 = vmatpush1.msra.mxu0 0.0
      %4279 = vmatprep.subr.mxu0 0.0
      %4280 = vmatpush1.msra.mxu0 0.0
      %4281 = vmatprep.subr.mxu0 0.0
      %4282 = vmatpush1.msra.mxu0 0.0
      %4283 = vmatprep.subr.mxu0 0.0
      %4284 = vmatpush1.msra.mxu0 0.0
      %4285 = vmatprep.subr.mxu0 0.0
      %4286 = vmatpush1.msra.mxu0 0.0
      %4287 = vmatprep.subr.mxu0 0.0
      %4288 = vmatpush1.msra.mxu0 0.0
      %4289 = vmatprep.subr.mxu0 0.0
      %4290 = vmatpush1.msra.mxu0 0.0
      %4291 = vmatprep.subr.mxu0 0.0
      %4292 = vmatpush1.msra.mxu0 0.0
      %4293 = vmatprep.subr.mxu0 0.0
      %4294 = vmatpush1.msra.mxu0 0.0
      %4295 = vmatprep.subr.mxu0 0.0
      %4296 = vmatpush1.msra.mxu0 0.0
      %4297 = vmatprep.subr.mxu0 0.0
      %4298 = vmatpush1.msra.mxu0 0.0
      %4299 = vmatprep.subr.mxu0 0.0
      %4300 = vmatpush1.msra.mxu0 0.0
      %4301 = vmatprep.subr.mxu0 0.0
      %4302 = vmatpush1.msra.mxu0 0.0
      %4303 = vmatprep.subr.mxu0 0.0
      %4304 = vmatpush1.msra.mxu0 0.0
      %4305 = vmatprep.subr.mxu0 0.0
      %4306 = vmatpush1.msra.mxu0 0.0
      %4307 = vmatprep.subr.mxu0 0.0
      %4308 = vmatpush1.msra.mxu0 0.0
      %4309 = vmatprep.mubr.f32.mxu0 0.0
      %4310 = vmatmul.mubr.f32.gmra.mrb[0].mxu0 %v4243
      %v4311 = vpop.f32.mrb[0].mxu0
      %v4312 = vadd.f32 0.0, %v4311
      %v4313 = vpop.f32.mrb[0].mxu0
      %v4314 = vadd.f32 0.0, %v4313
      %4315 = vdwg.mxu0
      %v4316 = vadd.f32 %v4228, %v4312
      %v4317 = vadd.f32 %v4229, %v4314
      %4318 = vrot.lane.b32.xlu0 %v3880, 110
      %v4319 = vpop.permute.xlu0 %4318
      %4320 = vrot.lane.b32.xlu0 %v3881, 110
      %v4321 = vpop.permute.xlu0 %4320
      %4322 = vrot.lane.b32.xlu0 %v3886, 110
      %v4323 = vpop.permute.xlu0 %4322
      %v4324 = vsel %vm872, %v4319, %v4321
      %v4325 = vsel %vm872, %v4321, %v4323
      %v4328 = vsel %vm579, %v4324, 0.0
      %v4329 = vsel %vm580, %v4325, 0.0
      %s4330 = scalar_lea.vmem %s4, 256
      %v4331 = vld [vmem:[%s4330] sm:$0xff]
      %v4333 = vsel %vm1310, %v4331, 0
      %4335 = vmatprep.subr.mxu0 %v4329
      %4336 = vmatpush1.msra.mxu0 %v4328
      %4337 = vmatprep.subr.mxu0 0.0
      %4338 = vmatpush1.msra.mxu0 0.0
      %4339 = vmatprep.subr.mxu0 0.0
      %4340 = vmatpush1.msra.mxu0 0.0
      %4341 = vmatprep.subr.mxu0 0.0
      %4342 = vmatpush1.msra.mxu0 0.0
      %4343 = vmatprep.subr.mxu0 0.0
      %4344 = vmatpush1.msra.mxu0 0.0
      %4345 = vmatprep.subr.mxu0 0.0
      %4346 = vmatpush1.msra.mxu0 0.0
      %4347 = vmatprep.subr.mxu0 0.0
      %4348 = vmatpush1.msra.mxu0 0.0
      %4349 = vmatprep.subr.mxu0 0.0
      %4350 = vmatpush1.msra.mxu0 0.0
      %4351 = vmatprep.subr.mxu0 0.0
      %4352 = vmatpush1.msra.mxu0 0.0
      %4353 = vmatprep.subr.mxu0 0.0
      %4354 = vmatpush1.msra.mxu0 0.0
      %4355 = vmatprep.subr.mxu0 0.0
      %4356 = vmatpush1.msra.mxu0 0.0
      %4357 = vmatprep.subr.mxu0 0.0
      %4358 = vmatpush1.msra.mxu0 0.0
      %4359 = vmatprep.subr.mxu0 0.0
      %4360 = vmatpush1.msra.mxu0 0.0
      %4361 = vmatprep.subr.mxu0 0.0
      %4362 = vmatpush1.msra.mxu0 0.0
      %4363 = vmatprep.subr.mxu0 0.0
      %4364 = vmatpush1.msra.mxu0 0.0
      %4365 = vmatprep.subr.mxu0 0.0
      %4366 = vmatpush1.msra.mxu0 0.0
      %4367 = vmatprep.subr.mxu0 0.0
      %4368 = vmatpush1.msra.mxu0 0.0
      %4369 = vmatprep.subr.mxu0 0.0
      %4370 = vmatpush1.msra.mxu0 0.0
      %4371 = vmatprep.subr.mxu0 0.0
      %4372 = vmatpush1.msra.mxu0 0.0
      %4373 = vmatprep.subr.mxu0 0.0
      %4374 = vmatpush1.msra.mxu0 0.0
      %4375 = vmatprep.subr.mxu0 0.0
      %4376 = vmatpush1.msra.mxu0 0.0
      %4377 = vmatprep.subr.mxu0 0.0
      %4378 = vmatpush1.msra.mxu0 0.0
      %4379 = vmatprep.subr.mxu0 0.0
      %4380 = vmatpush1.msra.mxu0 0.0
      %4381 = vmatprep.subr.mxu0 0.0
      %4382 = vmatpush1.msra.mxu0 0.0
      %4383 = vmatprep.subr.mxu0 0.0
      %4384 = vmatpush1.msra.mxu0 0.0
      %4385 = vmatprep.subr.mxu0 0.0
      %4386 = vmatpush1.msra.mxu0 0.0
      %4387 = vmatprep.subr.mxu0 0.0
      %4388 = vmatpush1.msra.mxu0 0.0
      %4389 = vmatprep.subr.mxu0 0.0
      %4390 = vmatpush1.msra.mxu0 0.0
      %4391 = vmatprep.subr.mxu0 0.0
      %4392 = vmatpush1.msra.mxu0 0.0
      %4393 = vmatprep.subr.mxu0 0.0
      %4394 = vmatpush1.msra.mxu0 0.0
      %4395 = vmatprep.subr.mxu0 0.0
      %4396 = vmatpush1.msra.mxu0 0.0
      %4397 = vmatprep.subr.mxu0 0.0
      %4398 = vmatpush1.msra.mxu0 0.0
      %4399 = vmatprep.mubr.f32.mxu0 0.0
      %4400 = vmatmul.mubr.f32.gmra.mrb[0].mxu0 %v4333
      %v4401 = vpop.f32.mrb[0].mxu0
      %v4402 = vadd.f32 0.0, %v4401
      %v4403 = vpop.f32.mrb[0].mxu0
      %v4404 = vadd.f32 0.0, %v4403
      %4405 = vdwg.mxu0
      %v4406 = vadd.f32 %v4316, %v4402
      %v4407 = vadd.f32 %v4317, %v4404
      %4408 = vrot.lane.b32.xlu0 %v3880, 96
      %v4409 = vpop.permute.xlu0 %4408
      %4410 = vrot.lane.b32.xlu0 %v3881, 96
      %v4411 = vpop.permute.xlu0 %4410
      %4412 = vrot.lane.b32.xlu0 %v3886, 96
      %v4413 = vpop.permute.xlu0 %4412
      %v4414 = vsel %vm969, %v4409, %v4411
      %v4415 = vsel %vm969, %v4411, %v4413
      %v4418 = vsel %vm397, %v4414, 0.0
      %v4419 = vsel %vm398, %v4415, 0.0
      %s4420 = scalar_lea.vmem %s4, 264
      %v4421 = vld [vmem:[%s4420] sm:$0xff]
      %v4423 = vsel %vm1310, %v4421, 0
      %4425 = vmatprep.subr.mxu0 %v4419
      %4426 = vmatpush1.msra.mxu0 %v4418
      %4427 = vmatprep.subr.mxu0 0.0
      %4428 = vmatpush1.msra.mxu0 0.0
      %4429 = vmatprep.subr.mxu0 0.0
      %4430 = vmatpush1.msra.mxu0 0.0
      %4431 = vmatprep.subr.mxu0 0.0
      %4432 = vmatpush1.msra.mxu0 0.0
      %4433 = vmatprep.subr.mxu0 0.0
      %4434 = vmatpush1.msra.mxu0 0.0
      %4435 = vmatprep.subr.mxu0 0.0
      %4436 = vmatpush1.msra.mxu0 0.0
      %4437 = vmatprep.subr.mxu0 0.0
      %4438 = vmatpush1.msra.mxu0 0.0
      %4439 = vmatprep.subr.mxu0 0.0
      %4440 = vmatpush1.msra.mxu0 0.0
      %4441 = vmatprep.subr.mxu0 0.0
      %4442 = vmatpush1.msra.mxu0 0.0
      %4443 = vmatprep.subr.mxu0 0.0
      %4444 = vmatpush1.msra.mxu0 0.0
      %4445 = vmatprep.subr.mxu0 0.0
      %4446 = vmatpush1.msra.mxu0 0.0
      %4447 = vmatprep.subr.mxu0 0.0
      %4448 = vmatpush1.msra.mxu0 0.0
      %4449 = vmatprep.subr.mxu0 0.0
      %4450 = vmatpush1.msra.mxu0 0.0
      %4451 = vmatprep.subr.mxu0 0.0
      %4452 = vmatpush1.msra.mxu0 0.0
      %4453 = vmatprep.subr.mxu0 0.0
      %4454 = vmatpush1.msra.mxu0 0.0
      %4455 = vmatprep.subr.mxu0 0.0
      %4456 = vmatpush1.msra.mxu0 0.0
      %4457 = vmatprep.subr.mxu0 0.0
      %4458 = vmatpush1.msra.mxu0 0.0
      %4459 = vmatprep.subr.mxu0 0.0
      %4460 = vmatpush1.msra.mxu0 0.0
      %4461 = vmatprep.subr.mxu0 0.0
      %4462 = vmatpush1.msra.mxu0 0.0
      %4463 = vmatprep.subr.mxu0 0.0
      %4464 = vmatpush1.msra.mxu0 0.0
      %4465 = vmatprep.subr.mxu0 0.0
      %4466 = vmatpush1.msra.mxu0 0.0
      %4467 = vmatprep.subr.mxu0 0.0
      %4468 = vmatpush1.msra.mxu0 0.0
      %4469 = vmatprep.subr.mxu0 0.0
      %4470 = vmatpush1.msra.mxu0 0.0
      %4471 = vmatprep.subr.mxu0 0.0
      %4472 = vmatpush1.msra.mxu0 0.0
      %4473 = vmatprep.subr.mxu0 0.0
      %4474 = vmatpush1.msra.mxu0 0.0
      %4475 = vmatprep.subr.mxu0 0.0
      %4476 = vmatpush1.msra.mxu0 0.0
      %4477 = vmatprep.subr.mxu0 0.0
      %4478 = vmatpush1.msra.mxu0 0.0
      %4479 = vmatprep.subr.mxu0 0.0
      %4480 = vmatpush1.msra.mxu0 0.0
      %4481 = vmatprep.subr.mxu0 0.0
      %4482 = vmatpush1.msra.mxu0 0.0
      %4483 = vmatprep.subr.mxu0 0.0
      %4484 = vmatpush1.msra.mxu0 0.0
      %4485 = vmatprep.subr.mxu0 0.0
      %4486 = vmatpush1.msra.mxu0 0.0
      %4487 = vmatprep.subr.mxu0 0.0
      %4488 = vmatpush1.msra.mxu0 0.0
      %4489 = vmatprep.mubr.f32.mxu0 0.0
      %4490 = vmatmul.mubr.f32.gmra.mrb[0].mxu0 %v4423
      %v4491 = vpop.f32.mrb[0].mxu0
      %v4492 = vadd.f32 0.0, %v4491
      %v4493 = vpop.f32.mrb[0].mxu0
      %v4494 = vadd.f32 0.0, %v4493
      %4495 = vdwg.mxu0
      %v4496 = vadd.f32 %v4406, %v4492
      %v4497 = vadd.f32 %v4407, %v4494
      %s4498 = scalar_lea.vmem %s4, 272
      %v4499 = vld [vmem:[%s4498] sm:$0xff]
      %4500 = vrot.lane.b32.xlu0 %v3880, 95
      %v4501 = vpop.permute.xlu0 %4500
      %4502 = vrot.lane.b32.xlu0 %v3881, 95
      %v4503 = vpop.permute.xlu0 %4502
      %4504 = vrot.lane.b32.xlu0 %v3886, 95
      %v4505 = vpop.permute.xlu0 %4504
      %v4506 = vsel %vm1068, %v4501, %v4503
      %v4507 = vsel %vm1068, %v4503, %v4505
      %v4511 = vsel %vm1310, %v4499, 0
      %4513 = vmatprep.subr.mxu0 %v4507
      %4514 = vmatpush1.msra.mxu0 %v4506
      %4515 = vmatprep.subr.mxu0 0.0
      %4516 = vmatpush1.msra.mxu0 0.0
      %4517 = vmatprep.subr.mxu0 0.0
      %4518 = vmatpush1.msra.mxu0 0.0
      %4519 = vmatprep.subr.mxu0 0.0
      %4520 = vmatpush1.msra.mxu0 0.0
      %4521 = vmatprep.subr.mxu0 0.0
      %4522 = vmatpush1.msra.mxu0 0.0
      %4523 = vmatprep.subr.mxu0 0.0
      %4524 = vmatpush1.msra.mxu0 0.0
      %4525 = vmatprep.subr.mxu0 0.0
      %4526 = vmatpush1.msra.mxu0 0.0
      %4527 = vmatprep.subr.mxu0 0.0
      %4528 = vmatpush1.msra.mxu0 0.0
      %4529 = vmatprep.subr.mxu0 0.0
      %4530 = vmatpush1.msra.mxu0 0.0
      %4531 = vmatprep.subr.mxu0 0.0
      %4532 = vmatpush1.msra.mxu0 0.0
      %4533 = vmatprep.subr.mxu0 0.0
      %4534 = vmatpush1.msra.mxu0 0.0
      %4535 = vmatprep.subr.mxu0 0.0
      %4536 = vmatpush1.msra.mxu0 0.0
      %4537 = vmatprep.subr.mxu0 0.0
      %4538 = vmatpush1.msra.mxu0 0.0
      %4539 = vmatprep.subr.mxu0 0.0
      %4540 = vmatpush1.msra.mxu0 0.0
      %4541 = vmatprep.subr.mxu0 0.0
      %4542 = vmatpush1.msra.mxu0 0.0
      %4543 = vmatprep.subr.mxu0 0.0
      %4544 = vmatpush1.msra.mxu0 0.0
      %4545 = vmatprep.subr.mxu0 0.0
      %4546 = vmatpush1.msra.mxu0 0.0
      %4547 = vmatprep.subr.mxu0 0.0
      %4548 = vmatpush1.msra.mxu0 0.0
      %4549 = vmatprep.subr.mxu0 0.0
      %4550 = vmatpush1.msra.mxu0 0.0
      %4551 = vmatprep.subr.mxu0 0.0
      %4552 = vmatpush1.msra.mxu0 0.0
      %4553 = vmatprep.subr.mxu0 0.0
      %4554 = vmatpush1.msra.mxu0 0.0
      %4555 = vmatprep.subr.mxu0 0.0
      %4556 = vmatpush1.msra.mxu0 0.0
      %4557 = vmatprep.subr.mxu0 0.0
      %4558 = vmatpush1.msra.mxu0 0.0
      %4559 = vmatprep.subr.mxu0 0.0
      %4560 = vmatpush1.msra.mxu0 0.0
      %4561 = vmatprep.subr.mxu0 0.0
      %4562 = vmatpush1.msra.mxu0 0.0
      %4563 = vmatprep.subr.mxu0 0.0
      %4564 = vmatpush1.msra.mxu0 0.0
      %4565 = vmatprep.subr.mxu0 0.0
      %4566 = vmatpush1.msra.mxu0 0.0
      %4567 = vmatprep.subr.mxu0 0.0
      %4568 = vmatpush1.msra.mxu0 0.0
      %4569 = vmatprep.subr.mxu0 0.0
      %4570 = vmatpush1.msra.mxu0 0.0
      %4571 = vmatprep.subr.mxu0 0.0
      %4572 = vmatpush1.msra.mxu0 0.0
      %4573 = vmatprep.subr.mxu0 0.0
      %4574 = vmatpush1.msra.mxu0 0.0
      %4575 = vmatprep.subr.mxu0 0.0
      %4576 = vmatpush1.msra.mxu0 0.0
      %4577 = vmatprep.mubr.f32.mxu0 0.0
      %4578 = vmatmul.mubr.f32.gmra.mrb[0].mxu0 %v4511
      %v4579 = vpop.f32.mrb[0].mxu0
      %v4580 = vadd.f32 0.0, %v4579
      %v4581 = vpop.f32.mrb[0].mxu0
      %v4582 = vadd.f32 0.0, %v4581
      %4583 = vdwg.mxu0
      %v4584 = vadd.f32 %v4496, %v4580
      %v4585 = vadd.f32 %v4497, %v4582
      %4586 = vrot.lane.b32.xlu0 %v3880, 94
      %v4587 = vpop.permute.xlu0 %4586
      %4588 = vrot.lane.b32.xlu0 %v3881, 94
      %v4589 = vpop.permute.xlu0 %4588
      %4590 = vrot.lane.b32.xlu0 %v3886, 94
      %v4591 = vpop.permute.xlu0 %4590
      %v4592 = vsel %vm1157, %v4587, %v4589
      %v4593 = vsel %vm1157, %v4589, %v4591
      %v4596 = vsel %vm579, %v4592, 0.0
      %v4597 = vsel %vm580, %v4593, 0.0
      %s4598 = scalar_lea.vmem %s4, 280
      %v4599 = vld [vmem:[%s4598] sm:$0xff]
      %v4601 = vsel %vm1310, %v4599, 0
      %4603 = vmatprep.subr.mxu0 %v4597
      %4604 = vmatpush1.msra.mxu0 %v4596
      %4605 = vmatprep.subr.mxu0 0.0
      %4606 = vmatpush1.msra.mxu0 0.0
      %4607 = vmatprep.subr.mxu0 0.0
      %4608 = vmatpush1.msra.mxu0 0.0
      %4609 = vmatprep.subr.mxu0 0.0
      %4610 = vmatpush1.msra.mxu0 0.0
      %4611 = vmatprep.subr.mxu0 0.0
      %4612 = vmatpush1.msra.mxu0 0.0
      %4613 = vmatprep.subr.mxu0 0.0
      %4614 = vmatpush1.msra.mxu0 0.0
      %4615 = vmatprep.subr.mxu0 0.0
      %4616 = vmatpush1.msra.mxu0 0.0
      %4617 = vmatprep.subr.mxu0 0.0
      %4618 = vmatpush1.msra.mxu0 0.0
      %4619 = vmatprep.subr.mxu0 0.0
      %4620 = vmatpush1.msra.mxu0 0.0
      %4621 = vmatprep.subr.mxu0 0.0
      %4622 = vmatpush1.msra.mxu0 0.0
      %4623 = vmatprep.subr.mxu0 0.0
      %4624 = vmatpush1.msra.mxu0 0.0
      %4625 = vmatprep.subr.mxu0 0.0
      %4626 = vmatpush1.msra.mxu0 0.0
      %4627 = vmatprep.subr.mxu0 0.0
      %4628 = vmatpush1.msra.mxu0 0.0
      %4629 = vmatprep.subr.mxu0 0.0
      %4630 = vmatpush1.msra.mxu0 0.0
      %4631 = vmatprep.subr.mxu0 0.0
      %4632 = vmatpush1.msra.mxu0 0.0
      %4633 = vmatprep.subr.mxu0 0.0
      %4634 = vmatpush1.msra.mxu0 0.0
      %4635 = vmatprep.subr.mxu0 0.0
      %4636 = vmatpush1.msra.mxu0 0.0
      %4637 = vmatprep.subr.mxu0 0.0
      %4638 = vmatpush1.msra.mxu0 0.0
      %4639 = vmatprep.subr.mxu0 0.0
      %4640 = vmatpush1.msra.mxu0 0.0
      %4641 = vmatprep.subr.mxu0 0.0
      %4642 = vmatpush1.msra.mxu0 0.0
      %4643 = vmatprep.subr.mxu0 0.0
      %4644 = vmatpush1.msra.mxu0 0.0
      %4645 = vmatprep.subr.mxu0 0.0
      %4646 = vmatpush1.msra.mxu0 0.0
      %4647 = vmatprep.subr.mxu0 0.0
      %4648 = vmatpush1.msra.mxu0 0.0
      %4649 = vmatprep.subr.mxu0 0.0
      %4650 = vmatpush1.msra.mxu0 0.0
      %4651 = vmatprep.subr.mxu0 0.0
      %4652 = vmatpush1.msra.mxu0 0.0
      %4653 = vmatprep.subr.mxu0 0.0
      %4654 = vmatpush1.msra.mxu0 0.0
      %4655 = vmatprep.subr.mxu0 0.0
      %4656 = vmatpush1.msra.mxu0 0.0
      %4657 = vmatprep.subr.mxu0 0.0
      %4658 = vmatpush1.msra.mxu0 0.0
      %4659 = vmatprep.subr.mxu0 0.0
      %4660 = vmatpush1.msra.mxu0 0.0
      %4661 = vmatprep.subr.mxu0 0.0
      %4662 = vmatpush1.msra.mxu0 0.0
      %4663 = vmatprep.subr.mxu0 0.0
      %4664 = vmatpush1.msra.mxu0 0.0
      %4665 = vmatprep.subr.mxu0 0.0
      %4666 = vmatpush1.msra.mxu0 0.0
      %4667 = vmatprep.mubr.f32.mxu0 0.0
      %4668 = vmatmul.mubr.f32.gmra.mrb[0].mxu0 %v4601
      %v4669 = vpop.f32.mrb[0].mxu0
      %v4670 = vadd.f32 0.0, %v4669
      %v4671 = vpop.f32.mrb[0].mxu0
      %v4672 = vadd.f32 0.0, %v4671
      %4673 = vdwg.mxu0
      %v4674 = vadd.f32 %v4584, %v4670
      %v4675 = vadd.f32 %v4585, %v4672
      %4677 = vset.pattern.permute.xlu0 0
      %4678 = vperm.xlu0 %4677, %v3866
      %v4679 = vpop.permute.xlu0 %4678
      %v4681 = vadd.f32 %v4674, %v4679
      %v4682 = vadd.f32 %v4675, %v4679
      %v4683 = vadd.f32 %v3003, %v4681
      %v4684 = vadd.f32 %v3005, %v4682
      %4685 = vst [vmem:[%s322] sm:$0xff] %v4683
      %4686 = vst [vmem:[%s322 + $0x8] sm:$0xff] %v4684
      %p4687 = scmp.lt.s32.totalorder %s19, 1
      %s4688 = scalar_select %p4687, %s19, 1
      %s4689 = smul.addr %s4688, 2
      %s4690 = smul.addr %s4689, 8
      %s4691 = scalar_lea.vmem %s8, %s4690
      // Predicated region
      $region53: #{refinement_module_forward.1} parent=51 // pred_check
        %p4692 = pneg %p215
      $region54: #{refinement_module_forward.1} parent=51 // pred_check_branch
        %4694 = sbr.rel (%p4692) target = $region56
      $region55: #{refinement_module_forward.1} parent=51 // pred_region
        _
      $region56: #{refinement_module_forward.1} parent=51 // pred_fallthru
        _
    $region52: #{refinement_module_forward.1} parent=5 // pred_fallthru
      _
    %p4695 = scmp.le.s32.totalorder 2, %s14
    // Predicated region
    $region57: #{refinement_module_forward.1} parent=5 // pred_check
      %p4696 = pneg %p4695
    $region58: #{refinement_module_forward.1} parent=5 // pred_check_branch
      %4698 = sbr.rel (%p4696) target = $region60
    $region59: #{refinement_module_forward.1} parent=5 // pred_region
      %s4699 = ssub.s32 %s14, 2
      // Predicated region
      $region61: #{refinement_module_forward.1} parent=59 // pred_check
        %p4700 = pneg %p221
      $region62: #{refinement_module_forward.1} parent=59 // pred_check_branch
        %4702 = sbr.rel (%p4700) target = $region64
      $region63: #{refinement_module_forward.1} parent=59 // pred_region
        %p4703 = scmp.lt.s32.totalorder %s20, 1
        %s4704 = scalar_select %p4703, %s20, 1
        %s4705 = smul.addr %s4704, 2
        %s4706 = smul.addr %s4705, 8
        %s4707 = scalar_lea.vmem %s8, %s4706
      $region64: #{refinement_module_forward.1} parent=59 // pred_fallthru
        _
    $region60: #{refinement_module_forward.1} parent=5 // pred_fallthru
      _
  $region6: #{refinement_module_forward.1} parent=0 // loop_footer
    %s18 = sadd.s32 1, %s14
  $region7: #{refinement_module_forward.1} parent=0 // loop_footer_branch
    %13 = sbr.rel target = $region3
  $region8: #{refinement_module_forward.1} parent=0 // loop_exit
    _

</llo_original>
